<compile_context>
chip_gen: v7x
topology: tpu7x:2x2x1
jax: 0.10.0
libtpu: 0.0.40
codegen_flags: <defaults>
</compile_context>

<pallas_src>
import functools
import math

import jax
import jax.numpy as jnp
from jax.experimental import pallas as pl
from jax.experimental.pallas import tpu as pltpu


_OUT_W = 8  # edge-stage output width (column 0 = prediction)


def _round_up(x, m):
    return ((x + m - 1) // m) * m


def _mm(a, b):
    """MXU matmul: bf16 inputs, f32 accumulation."""
    return jnp.dot(a.astype(jnp.bfloat16), b.astype(jnp.bfloat16),
                   preferred_element_type=jnp.float32)


def _ln(h, gamma, beta, eps=1e-5):
    """Row-wise LayerNorm in f32 (torch.nn.LayerNorm semantics)."""
    mu = jnp.mean(h, axis=-1, keepdims=True)
    var = jnp.mean(jnp.square(h - mu), axis=-1, keepdims=True)
    return (h - mu) * jax.lax.rsqrt(var + eps) * gamma + beta


# --------------------------------------------------------------------------
# Kernel 1: node stage (gridless, all-resident at these sizes)
# --------------------------------------------------------------------------
def _node_stage_kernel(x_ref, a_ref, rdeg_ref, ngoh_ref, w_ne_ref, w_conv_ref,
                       wg_ref, vec_ref, nemb_ref, gemb_ref, *, H, R, N):
    v = vec_ref[...]                                   # (13, H) packed small params

    def vrow(i):
        return v[i:i + 1, :]

    # node encoder: LN(ReLU(x @ W + b))
    h = _ln(jnp.maximum(_mm(x_ref[...], w_ne_ref[...]) + vrow(0), 0.0),
            vrow(1), vrow(2))

    for layer in range(3):
        base = layer * (R + 1) * H
        hb = h.astype(jnp.bfloat16)
        # All R relation aggregations as ONE (R*N, N) x (N, H) MXU matmul against
        # the vertically stacked 0/1 count operator; mean normalization (1/deg)
        # applied in f32 afterwards (VPU work hidden under the MXU).
        agg = jnp.dot(a_ref[...], hb, preferred_element_type=jnp.float32)
        agg = (agg * rdeg_ref[...]).astype(jnp.bfloat16)            # (R*N, H)
        # Fuse root + all R relation transforms into one K=(R+1)*H matmul.
        hcat = jnp.concatenate(
            [hb] + [agg[r * N:(r + 1) * N, :] for r in range(R)], axis=1)
        out = _mm(hcat, w_conv_ref[base:base + (R + 1) * H, :]) + vrow(3 + 3 * layer)
        h = h + jnp.maximum(_ln(out, vrow(4 + 3 * layer), vrow(5 + 3 * layer)), 0.0)

    nemb_ref[...] = h.astype(nemb_ref.dtype)            # node embeddings (bf16)

    # GlobalAttention pooling: per-graph softmax of gate scores, weighted sum.
    # Graphs are padded only to the sublane (8), so the (N, G)->(G, N) flip is
    # tiny; per-graph max + guarded denominator for numerical safety.
    gate = _mm(h, wg_ref[...]) + v[12:13, 0:1]           # (N, 1)
    masked = jnp.where(ngoh_ref[...] > 0.0, gate, -1e30)  # (N, G_pad)
    m_t = masked.T                                       # (G_pad, N)
    gmax = jnp.max(m_t, axis=-1, keepdims=True)
    p = jnp.exp(m_t - gmax)
    denom = jnp.maximum(jnp.sum(p, axis=-1, keepdims=True), 1e-20)
    alpha = p / denom                                    # (G_pad, N) f32
    gemb_ref[...] = jnp.dot(alpha, h,
                            preferred_element_type=jnp.float32).astype(gemb_ref.dtype)


# --------------------------------------------------------------------------
# Kernel 2: edge stage (grid over TE-edge blocks, fully "parallel")
# --------------------------------------------------------------------------
def _edge_stage_kernel(ed_ref, w_ee_ref, w_att_ref, w_atte_ref, wa2_ref,
                       wm1_ref, wm2_ref, vec_ref, out_ref, *, H):
    v = vec_ref[...]                                     # (11, PACK_W) packed params
    ed = ed_ref[...]                                     # (TE, PACK_W) bf16 slab

    # edge encoder: full-slab matmul against a zero-padded weight (no lane-offset
    # slicing of the edge_attr columns).
    eemb = _ln(jnp.maximum(_mm(ed, w_ee_ref[...]) + v[0:1, :H], 0.0),
               v[1:2, :H], v[2:3, :H])

    # EdgeAttention: src/dst/graph contributions via one full-slab K=PACK_W
    # matmul, edge-embedding contribution via one K=H matmul; attention-hidden
    # and transform pre-activations produced together (width 2H).
    pre = _mm(ed, w_att_ref[...]) + _mm(eemb, w_atte_ref[...]) + v[3:4, :2 * H]
    att_h = jnp.maximum(pre[:, 0:H], 0.0)
    score = jax.nn.sigmoid(_mm(att_h, wa2_ref[...]) + v[6:7, 0:1])   # (TE, 1)
    t = _ln(jnp.maximum(pre[:, H:2 * H], 0.0), v[4:5, :H], v[5:6, :H])
    attended = t * score

    # edge MLP (dropout = identity in eval).  Narrow (TE, 8) f32 output block:
    # ~32 B/edge written vs ~256 B/edge read, so the stage is read-bound.
    Hh = H // 2
    m1 = _ln(jnp.maximum(_mm(attended, wm1_ref[...]) + v[7:8, :Hh], 0.0),
             v[8:9, :Hh], v[9:10, :Hh])
    out_ref[...] = _mm(m1, wm2_ref[...]) + v[10:11, :_OUT_W]


# --------------------------------------------------------------------------
# VMEM budgeting (generation-aware)
# --------------------------------------------------------------------------
def _vmem_capacity_bytes():
    try:
        cap = getattr(pltpu.get_tpu_info(), "vmem_capacity_bytes", None)
        if cap:
            return int(cap)
    except Exception:
        pass
    return 64 * 1024 * 1024   # conservative (v7x); v5e/v6e have 128 MiB


def _nbytes(*arrays):
    return sum(int(a.size) * a.dtype.itemsize for a in arrays)


def _vmem_limit_bytes(resident_bytes, streamed_block_bytes=0):
    # Grow with the actual resident footprint plus double-buffered streaming
    # tiles; never below 32 MiB, capped at 90% of this chip's physical VMEM.
    cap = _vmem_capacity_bytes()
    need = 4 * int(resident_bytes) + 4 * int(streamed_block_bytes) + (16 << 20)
    return int(min(max(need, 32 << 20), int(cap * 0.9)))


# --------------------------------------------------------------------------
# Wrapper
# --------------------------------------------------------------------------
def resistance_rgcn_forward(x, edge_index, edge_attr, batch, params,
                            num_graphs, num_relations=4):
    f32, bf16 = jnp.float32, jnp.bfloat16
    H = params['w_ne'].shape[1]
    R = num_relations
    N, F_node = x.shape
    E, F_edge = edge_attr.shape

    N_pad = _round_up(N, 128)
    G_pad = _round_up(max(num_graphs, 1), 8)             # sublane alignment only

    src = edge_index[0].astype(jnp.int32)
    dst = edge_index[1].astype(jnp.int32)
    batch = batch.astype(jnp.int32)

    # ---- relation operator: exact 0/1 counts (bf16); 1/deg applied in-kernel (f32)
    edge_type = jnp.argmax(edge_attr[:, :4], axis=1)
    a = jnp.zeros((R, N_pad, N_pad), f32).at[edge_type, dst, src].add(1.0)
    deg = jnp.sum(a, axis=2)                              # (R, N_pad)
    rdeg = jnp.where(deg > 0, 1.0 / jnp.maximum(deg, 1.0), 0.0).reshape(R * N_pad, 1)
    a_vstack = a.reshape(R * N_pad, N_pad).astype(bf16)
    # TODO(synk): at large N on v7x keep a_vstack in HBM and tile the agg matmul
    #             (emit_pipeline) or switch to segment-sum aggregation.

    batch_pad = jnp.full((N_pad,), -1, jnp.int32).at[:N].set(batch)
    ngoh = (batch_pad[:, None] == jnp.arange(G_pad)[None, :]).astype(f32)

    x_pad = jnp.zeros((N_pad, F_node), f32).at[:N].set(x).astype(bf16)

    # ---- packed node-stage parameters ---------------------------------------
    w_ne = params['w_ne'].astype(bf16)
    conv_blocks = []
    for l in range(1, 4):
        conv_blocks.append(params[f'conv{l}_root'])
        for r in range(R):
            conv_blocks.append(params[f'conv{l}_w'][r])
    w_conv = jnp.concatenate(conv_blocks, axis=0).astype(bf16)   # (3*(R+1)*H, H)
    wg = params['wg'].astype(bf16)                               # (H, 1)
    vec_rows = [params['b_ne'], params['g_ne'], params['be_ne']]
    for l in range(1, 4):
        vec_rows += [params[f'conv{l}_b'], params[f'ln{l}_g'], params[f'ln{l}_be']]
    vec_rows.append(jnp.zeros((1, H), f32).at[0, 0].set(params['bg'][0, 0]))
    vec_n = jnp.concatenate(vec_rows, axis=0).astype(f32)        # (13, H)

    node_inputs = (x_pad, a_vstack, rdeg, ngoh, w_ne, w_conv, wg, vec_n)
    node_emb, graph_emb = pl.pallas_call(
        functools.partial(_node_stage_kernel, H=H, R=R, N=N_pad),
        out_shape=(jax.ShapeDtypeStruct((N_pad, H), bf16),
                   jax.ShapeDtypeStruct((G_pad, H), bf16)),
        in_specs=[pl.BlockSpec(memory_space=pltpu.MemorySpace.VMEM)] * len(node_inputs),
        out_specs=(pl.BlockSpec(memory_space=pltpu.MemorySpace.VMEM),
                   pl.BlockSpec(memory_space=pltpu.MemorySpace.VMEM)),
        compiler_params=pltpu.CompilerParams(
            vmem_limit_bytes=_vmem_limit_bytes(
                _nbytes(*node_inputs) + (N_pad + G_pad) * H * 2)),
    )(*node_inputs)

    # ---- O(E*H) bf16 index gathers, packed into one lane-dense bf16 slab ----
    # TODO(synk): move these gathers in-kernel (scalar-prefetched indices + DMA)
    #             to drop the intermediate HBM slab for large E.
    src_emb = jnp.take(node_emb, src, axis=0)                    # (E, H) bf16
    dst_emb = jnp.take(node_emb, dst, axis=0)
    eg_emb = jnp.take(graph_emb, jnp.take(batch, src), axis=0)

    TE = min(512, _round_up(E, 128))
    E_pad = _round_up(E, TE)
    PACK_W = _round_up(3 * H + F_edge, 128)
    assert 2 * H <= PACK_W

    edata = jnp.zeros((E_pad, PACK_W), bf16)
    edata = edata.at[:E, 0:H].set(src_emb)
    edata = edata.at[:E, H:2 * H].set(dst_emb)
    edata = edata.at[:E, 2 * H:3 * H].set(eg_emb)
    edata = edata.at[:E, 3 * H:3 * H + F_edge].set(edge_attr.astype(bf16))

    # ---- packed edge-stage parameters (zero-padded to full-K slab widths) ----
    def hc(a_, b_):
        return jnp.concatenate([a_, b_], axis=1)

    w_ee = (jnp.zeros((PACK_W, H), f32)
            .at[3 * H:3 * H + F_edge, :].set(params['w_ee']).astype(bf16))
    wa1, wt1 = params['wa1'], params['wt1']
    # slab column order: (src, dst, graph); PyTorch concat order: (src, dst, eemb, graph)
    w_att = jnp.zeros((PACK_W, 2 * H), f32)
    w_att = w_att.at[0:H, :].set(hc(wa1[0:H], wt1[0:H]))
    w_att = w_att.at[H:2 * H, :].set(hc(wa1[H:2 * H], wt1[H:2 * H]))
    w_att = w_att.at[2 * H:3 * H, :].set(hc(wa1[3 * H:4 * H], wt1[3 * H:4 * H]))
    w_att = w_att.astype(bf16)
    w_atte = hc(wa1[2 * H:3 * H], wt1[2 * H:3 * H]).astype(bf16)         # (H, 2H)
    wa2 = params['wa2'].astype(bf16)                                      # (H, 1)
    wm1 = params['wm1'].astype(bf16)                                      # (H, H//2)
    wm2 = (jnp.zeros((H // 2, _OUT_W), f32)
           .at[:, 0:1].set(params['wm2']).astype(bf16))

    def row(vec, width):
        return jnp.zeros((1, PACK_W), f32).at[:, :width].set(vec)

    vec_e = jnp.concatenate([
        row(params['b_ee'], H), row(params['g_ee'], H), row(params['be_ee'], H),
        row(hc(params['ba1'], params['bt1']), 2 * H),
        row(params['gt'], H), row(params['bet'], H),
        row(params['ba2'], 1),
        row(params['bm1'], H // 2), row(params['gm'], H // 2), row(params['bem'], H // 2),
        row(params['bm2'], 1),
    ], axis=0)                                                            # (11, PACK_W)

    weights = (w_ee, w_att, w_atte, wa2, wm1, wm2, vec_e)
    block_bytes = TE * PACK_W * 2 + TE * _OUT_W * 4
    out = pl.pallas_call(
        functools.partial(_edge_stage_kernel, H=H),
        out_shape=jax.ShapeDtypeStruct((E_pad, _OUT_W), f32),
        grid=(E_pad // TE,),
        in_specs=[pl.BlockSpec((TE, PACK_W), lambda i: (i, 0))]
                 + [pl.BlockSpec(w.shape, lambda i: (0, 0)) for w in weights],
        out_specs=pl.BlockSpec((TE, _OUT_W), lambda i: (i, 0)),
        compiler_params=pltpu.CompilerParams(
            dimension_semantics=("parallel",),
            vmem_limit_bytes=_vmem_limit_bytes(_nbytes(*weights), block_bytes)),
    )(edata, *weights)

    return out[:E, 0]


# --------------------------------------------------------------------------
# Deterministic synthetic parameters (shapes mirror the PyTorch module)
# --------------------------------------------------------------------------
def init_params(key, num_node_features, num_edge_features, H, R):
    keys = iter(jax.random.split(key, 64))

    def lin(fi, fo):
        k1, k2 = jax.random.split(next(keys))
        b = 1.0 / math.sqrt(fi)
        return (jax.random.uniform(k1, (fi, fo), jnp.float32, -b, b),
                jax.random.uniform(k2, (1, fo), jnp.float32, -b, b))

    def ln_p(c):
        return jnp.ones((1, c), jnp.float32), jnp.zeros((1, c), jnp.float32)

    p = {}
    p['w_ne'], p['b_ne'] = lin(num_node_features, H)
    p['g_ne'], p['be_ne'] = ln_p(H)
    for l in range(1, 4):
        s = 1.0 / math.sqrt(H)
        p[f'conv{l}_w'] = jax.random.uniform(next(keys), (R, H, H), jnp.float32, -s, s)
        p[f'conv{l}_root'] = jax.random.uniform(next(keys), (H, H), jnp.float32, -s, s)
        p[f'conv{l}_b'] = jnp.zeros((1, H), jnp.float32)
        p[f'ln{l}_g'], p[f'ln{l}_be'] = ln_p(H)
    p['wg'], p['bg'] = lin(H, 1)
    p['w_ee'], p['b_ee'] = lin(num_edge_features, H)
    p['g_ee'], p['be_ee'] = ln_p(H)
    p['wa1'], p['ba1'] = lin(4 * H, H)
    p['wa2'], p['ba2'] = lin(H, 1)
    p['wt1'], p['bt1'] = lin(4 * H, H)
    p['gt'], p['bet'] = ln_p(H)
    p['wm1'], p['bm1'] = lin(H, H // 2)
    p['gm'], p['bem'] = ln_p(H // 2)
    p['wm2'], p['bm2'] = lin(H // 2, 1)
    return p


if __name__ == "__main__":
    key = jax.random.PRNGKey(0)
    N, E, G = 16, 32, 2
    F_NODE, F_EDGE, H, R = 8, 6, 32, 4

    kx, ke, ks, kd, kp = jax.random.split(key, 5)
    x = jax.random.normal(kx, (N, F_NODE), jnp.float32)
    edge_attr = jax.random.normal(ke, (E, F_EDGE), jnp.float32)
    batch = jnp.concatenate([jnp.zeros(N // 2, jnp.int32),
                             jnp.ones(N // 2, jnp.int32)])
    # edges stay within each graph
    src0 = jax.random.randint(ks, (E // 2,), 0, N // 2)
    dst0 = jax.random.randint(kd, (E // 2,), 0, N // 2)
    src = jnp.concatenate([src0, src0 + N // 2]).astype(jnp.int32)
    dst = jnp.concatenate([dst0, dst0 + N // 2]).astype(jnp.int32)
    edge_index = jnp.stack([src, dst])

    params = init_params(kp, F_NODE, F_EDGE, H, R)

    resistance_pred = resistance_rgcn_forward(
        x, edge_index, edge_attr, batch, params, num_graphs=G, num_relations=R)
    resistance_pred = jax.block_until_ready(resistance_pred)

    assert resistance_pred.shape == (E,)
    assert bool(jnp.all(jnp.isfinite(resistance_pred)))
    print("KERNEL_OK")
</pallas_src>

<mosaic_0001>
module attributes {stable_mosaic.version = 11 : i64} {
  func.func @_node_stage_kernel(%arg0: memref<128x8xbf16, #tpu.memory_space<vmem>>, %arg1: memref<512x128xbf16, #tpu.memory_space<vmem>>, %arg2: memref<512x1xf32, #tpu.memory_space<vmem>>, %arg3: memref<128x8xf32, #tpu.memory_space<vmem>>, %arg4: memref<8x32xbf16, #tpu.memory_space<vmem>>, %arg5: memref<480x32xbf16, #tpu.memory_space<vmem>>, %arg6: memref<32x1xbf16, #tpu.memory_space<vmem>>, %arg7: memref<13x32xf32, #tpu.memory_space<vmem>>, %arg8: memref<128x32xbf16, #tpu.memory_space<vmem>>, %arg9: memref<8x32xbf16, #tpu.memory_space<vmem>>) attributes {dimension_semantics = [], scalar_prefetch = 0 : i64, scratch_operands = 0 : i64, tpu.core_type = #tpu.core_type<tc>} {
    %c0 = arith.constant 0 : index
    %c0_0 = arith.constant 0 : index
    %0 = vector.load %arg7[%c0, %c0_0] : memref<13x32xf32, #tpu.memory_space<vmem>>, vector<13x32xf32>
    %c0_1 = arith.constant 0 : index
    %c0_2 = arith.constant 0 : index
    %1 = vector.load %arg0[%c0_1, %c0_2] : memref<128x8xbf16, #tpu.memory_space<vmem>>, vector<128x8xbf16>
    %c0_3 = arith.constant 0 : index
    %c0_4 = arith.constant 0 : index
    %2 = vector.load %arg4[%c0_3, %c0_4] : memref<8x32xbf16, #tpu.memory_space<vmem>>, vector<8x32xbf16>
    %cst = arith.constant dense<0.000000e+00> : vector<128x32xf32>
    %3 = tpu.matmul %1, %2, %cst {dimension_numbers = #tpu.dot_dimension_numbers<[1], [0], [0], [1], [0, 0, 1, 1], [], []>} : vector<128x8xbf16>, vector<8x32xbf16>, vector<128x32xf32> -> vector<128x32xf32>
    %4 = vector.extract_strided_slice %0 {offsets = [0, 0], sizes = [1, 32], strides = [1, 1]} : vector<13x32xf32> to vector<1x32xf32>
    %5 = vector.broadcast %4 : vector<1x32xf32> to vector<128x32xf32>
    %6 = arith.addf %3, %5 : vector<128x32xf32>
    %cst_5 = arith.constant 0.000000e+00 : f32
    %7 = vector.broadcast %cst_5 : f32 to vector<128x32xf32>
    %8 = arith.maximumf %6, %7 : vector<128x32xf32>
    %9 = vector.extract_strided_slice %0 {offsets = [1, 0], sizes = [1, 32], strides = [1, 1]} : vector<13x32xf32> to vector<1x32xf32>
    %10 = vector.extract_strided_slice %0 {offsets = [2, 0], sizes = [1, 32], strides = [1, 1]} : vector<13x32xf32> to vector<1x32xf32>
    %cst_6 = arith.constant dense<0.000000e+00> : vector<128xf32>
    %11 = vector.multi_reduction <add>, %8, %cst_6 [1] : vector<128x32xf32> to vector<128xf32>
    %12 = vector.shape_cast %11 : vector<128xf32> to vector<128x1xf32>
    %cst_7 = arith.constant 3.200000e+01 : f32
    %13 = vector.broadcast %cst_7 : f32 to vector<128x1xf32>
    %14 = arith.divf %12, %13 : vector<128x1xf32>
    %15 = vector.broadcast %14 : vector<128x1xf32> to vector<128x32xf32>
    %16 = arith.subf %8, %15 : vector<128x32xf32>
    %17 = arith.mulf %16, %16 : vector<128x32xf32>
    %cst_8 = arith.constant dense<0.000000e+00> : vector<128xf32>
    %18 = vector.multi_reduction <add>, %17, %cst_8 [1] : vector<128x32xf32> to vector<128xf32>
    %19 = vector.shape_cast %18 : vector<128xf32> to vector<128x1xf32>
    %cst_9 = arith.constant 3.200000e+01 : f32
    %20 = vector.broadcast %cst_9 : f32 to vector<128x1xf32>
    %21 = arith.divf %19, %20 : vector<128x1xf32>
    %22 = vector.broadcast %14 : vector<128x1xf32> to vector<128x32xf32>
    %23 = arith.subf %8, %22 : vector<128x32xf32>
    %cst_10 = arith.constant 9.99999974E-6 : f32
    %24 = vector.broadcast %cst_10 : f32 to vector<128x1xf32>
    %25 = arith.addf %21, %24 : vector<128x1xf32>
    %26 = math.rsqrt %25 : vector<128x1xf32>
    %27 = vector.broadcast %26 : vector<128x1xf32> to vector<128x32xf32>
    %28 = arith.mulf %23, %27 : vector<128x32xf32>
    %29 = vector.broadcast %9 : vector<1x32xf32> to vector<128x32xf32>
    %30 = arith.mulf %28, %29 : vector<128x32xf32>
    %31 = vector.broadcast %10 : vector<1x32xf32> to vector<128x32xf32>
    %32 = arith.addf %30, %31 : vector<128x32xf32>
    %33 = arith.truncf %32 : vector<128x32xf32> to vector<128x32xbf16>
    %c0_11 = arith.constant 0 : index
    %c0_12 = arith.constant 0 : index
    %34 = vector.load %arg1[%c0_11, %c0_12] : memref<512x128xbf16, #tpu.memory_space<vmem>>, vector<512x128xbf16>
    %cst_13 = arith.constant dense<0.000000e+00> : vector<512x32xf32>
    %35 = tpu.matmul %34, %33, %cst_13 {dimension_numbers = #tpu.dot_dimension_numbers<[1], [0], [0], [1], [0, 0, 1, 1], [], []>} : vector<512x128xbf16>, vector<128x32xbf16>, vector<512x32xf32> -> vector<512x32xf32>
    %c0_14 = arith.constant 0 : index
    %c0_15 = arith.constant 0 : index
    %36 = vector.load %arg2[%c0_14, %c0_15] : memref<512x1xf32, #tpu.memory_space<vmem>>, vector<512x1xf32>
    %37 = vector.broadcast %36 : vector<512x1xf32> to vector<512x32xf32>
    %38 = arith.mulf %35, %37 : vector<512x32xf32>
    %39 = arith.truncf %38 : vector<512x32xf32> to vector<512x32xbf16>
    %40 = vector.extract_strided_slice %39 {offsets = [0, 0], sizes = [128, 32], strides = [1, 1]} : vector<512x32xbf16> to vector<128x32xbf16>
    %41 = vector.extract_strided_slice %39 {offsets = [128, 0], sizes = [128, 32], strides = [1, 1]} : vector<512x32xbf16> to vector<128x32xbf16>
    %42 = vector.extract_strided_slice %39 {offsets = [256, 0], sizes = [128, 32], strides = [1, 1]} : vector<512x32xbf16> to vector<128x32xbf16>
    %43 = vector.extract_strided_slice %39 {offsets = [384, 0], sizes = [128, 32], strides = [1, 1]} : vector<512x32xbf16> to vector<128x32xbf16>
    %44 = tpu.concatenate %33, %40, %41, %42, %43 in 1 : vector<128x32xbf16>, vector<128x32xbf16>, vector<128x32xbf16>, vector<128x32xbf16>, vector<128x32xbf16> -> vector<128x160xbf16>
    %c0_16 = arith.constant 0 : index
    %c0_17 = arith.constant 0 : index
    %45 = vector.load %arg5[%c0_16, %c0_17] : memref<480x32xbf16, #tpu.memory_space<vmem>>, vector<160x32xbf16>
    %cst_18 = arith.constant dense<0.000000e+00> : vector<128x32xf32>
    %46 = tpu.matmul %44, %45, %cst_18 {dimension_numbers = #tpu.dot_dimension_numbers<[1], [0], [0], [1], [0, 0, 1, 1], [], []>} : vector<128x160xbf16>, vector<160x32xbf16>, vector<128x32xf32> -> vector<128x32xf32>
    %47 = vector.extract_strided_slice %0 {offsets = [3, 0], sizes = [1, 32], strides = [1, 1]} : vector<13x32xf32> to vector<1x32xf32>
    %48 = vector.broadcast %47 : vector<1x32xf32> to vector<128x32xf32>
    %49 = arith.addf %46, %48 : vector<128x32xf32>
    %50 = vector.extract_strided_slice %0 {offsets = [4, 0], sizes = [1, 32], strides = [1, 1]} : vector<13x32xf32> to vector<1x32xf32>
    %51 = vector.extract_strided_slice %0 {offsets = [5, 0], sizes = [1, 32], strides = [1, 1]} : vector<13x32xf32> to vector<1x32xf32>
    %cst_19 = arith.constant dense<0.000000e+00> : vector<128xf32>
    %52 = vector.multi_reduction <add>, %49, %cst_19 [1] : vector<128x32xf32> to vector<128xf32>
    %53 = vector.shape_cast %52 : vector<128xf32> to vector<128x1xf32>
    %cst_20 = arith.constant 3.200000e+01 : f32
    %54 = vector.broadcast %cst_20 : f32 to vector<128x1xf32>
    %55 = arith.divf %53, %54 : vector<128x1xf32>
    %56 = vector.broadcast %55 : vector<128x1xf32> to vector<128x32xf32>
    %57 = arith.subf %49, %56 : vector<128x32xf32>
    %58 = arith.mulf %57, %57 : vector<128x32xf32>
    %cst_21 = arith.constant dense<0.000000e+00> : vector<128xf32>
    %59 = vector.multi_reduction <add>, %58, %cst_21 [1] : vector<128x32xf32> to vector<128xf32>
    %60 = vector.shape_cast %59 : vector<128xf32> to vector<128x1xf32>
    %cst_22 = arith.constant 3.200000e+01 : f32
    %61 = vector.broadcast %cst_22 : f32 to vector<128x1xf32>
    %62 = arith.divf %60, %61 : vector<128x1xf32>
    %63 = vector.broadcast %55 : vector<128x1xf32> to vector<128x32xf32>
    %64 = arith.subf %49, %63 : vector<128x32xf32>
    %cst_23 = arith.constant 9.99999974E-6 : f32
    %65 = vector.broadcast %cst_23 : f32 to vector<128x1xf32>
    %66 = arith.addf %62, %65 : vector<128x1xf32>
    %67 = math.rsqrt %66 : vector<128x1xf32>
    %68 = vector.broadcast %67 : vector<128x1xf32> to vector<128x32xf32>
    %69 = arith.mulf %64, %68 : vector<128x32xf32>
    %70 = vector.broadcast %50 : vector<1x32xf32> to vector<128x32xf32>
    %71 = arith.mulf %69, %70 : vector<128x32xf32>
    %72 = vector.broadcast %51 : vector<1x32xf32> to vector<128x32xf32>
    %73 = arith.addf %71, %72 : vector<128x32xf32>
    %cst_24 = arith.constant 0.000000e+00 : f32
    %74 = vector.broadcast %cst_24 : f32 to vector<128x32xf32>
    %75 = arith.maximumf %73, %74 : vector<128x32xf32>
    %76 = arith.addf %32, %75 : vector<128x32xf32>
    %77 = arith.truncf %76 : vector<128x32xf32> to vector<128x32xbf16>
    %c0_25 = arith.constant 0 : index
    %c0_26 = arith.constant 0 : index
    %78 = vector.load %arg1[%c0_25, %c0_26] : memref<512x128xbf16, #tpu.memory_space<vmem>>, vector<512x128xbf16>
    %cst_27 = arith.constant dense<0.000000e+00> : vector<512x32xf32>
    %79 = tpu.matmul %78, %77, %cst_27 {dimension_numbers = #tpu.dot_dimension_numbers<[1], [0], [0], [1], [0, 0, 1, 1], [], []>} : vector<512x128xbf16>, vector<128x32xbf16>, vector<512x32xf32> -> vector<512x32xf32>
    %c0_28 = arith.constant 0 : index
    %c0_29 = arith.constant 0 : index
    %80 = vector.load %arg2[%c0_28, %c0_29] : memref<512x1xf32, #tpu.memory_space<vmem>>, vector<512x1xf32>
    %81 = vector.broadcast %80 : vector<512x1xf32> to vector<512x32xf32>
    %82 = arith.mulf %79, %81 : vector<512x32xf32>
    %83 = arith.truncf %82 : vector<512x32xf32> to vector<512x32xbf16>
    %84 = vector.extract_strided_slice %83 {offsets = [0, 0], sizes = [128, 32], strides = [1, 1]} : vector<512x32xbf16> to vector<128x32xbf16>
    %85 = vector.extract_strided_slice %83 {offsets = [128, 0], sizes = [128, 32], strides = [1, 1]} : vector<512x32xbf16> to vector<128x32xbf16>
    %86 = vector.extract_strided_slice %83 {offsets = [256, 0], sizes = [128, 32], strides = [1, 1]} : vector<512x32xbf16> to vector<128x32xbf16>
    %87 = vector.extract_strided_slice %83 {offsets = [384, 0], sizes = [128, 32], strides = [1, 1]} : vector<512x32xbf16> to vector<128x32xbf16>
    %88 = tpu.concatenate %77, %84, %85, %86, %87 in 1 : vector<128x32xbf16>, vector<128x32xbf16>, vector<128x32xbf16>, vector<128x32xbf16>, vector<128x32xbf16> -> vector<128x160xbf16>
    %c160 = arith.constant 160 : index
    %c0_30 = arith.constant 0 : index
    %89 = vector.load %arg5[%c160, %c0_30] : memref<480x32xbf16, #tpu.memory_space<vmem>>, vector<160x32xbf16>
    %cst_31 = arith.constant dense<0.000000e+00> : vector<128x32xf32>
    %90 = tpu.matmul %88, %89, %cst_31 {dimension_numbers = #tpu.dot_dimension_numbers<[1], [0], [0], [1], [0, 0, 1, 1], [], []>} : vector<128x160xbf16>, vector<160x32xbf16>, vector<128x32xf32> -> vector<128x32xf32>
    %91 = vector.extract_strided_slice %0 {offsets = [6, 0], sizes = [1, 32], strides = [1, 1]} : vector<13x32xf32> to vector<1x32xf32>
    %92 = vector.broadcast %91 : vector<1x32xf32> to vector<128x32xf32>
    %93 = arith.addf %90, %92 : vector<128x32xf32>
    %94 = vector.extract_strided_slice %0 {offsets = [7, 0], sizes = [1, 32], strides = [1, 1]} : vector<13x32xf32> to vector<1x32xf32>
    %95 = vector.extract_strided_slice %0 {offsets = [8, 0], sizes = [1, 32], strides = [1, 1]} : vector<13x32xf32> to vector<1x32xf32>
    %cst_32 = arith.constant dense<0.000000e+00> : vector<128xf32>
    %96 = vector.multi_reduction <add>, %93, %cst_32 [1] : vector<128x32xf32> to vector<128xf32>
    %97 = vector.shape_cast %96 : vector<128xf32> to vector<128x1xf32>
    %cst_33 = arith.constant 3.200000e+01 : f32
    %98 = vector.broadcast %cst_33 : f32 to vector<128x1xf32>
    %99 = arith.divf %97, %98 : vector<128x1xf32>
    %100 = vector.broadcast %99 : vector<128x1xf32> to vector<128x32xf32>
    %101 = arith.subf %93, %100 : vector<128x32xf32>
    %102 = arith.mulf %101, %101 : vector<128x32xf32>
    %cst_34 = arith.constant dense<0.000000e+00> : vector<128xf32>
    %103 = vector.multi_reduction <add>, %102, %cst_34 [1] : vector<128x32xf32> to vector<128xf32>
    %104 = vector.shape_cast %103 : vector<128xf32> to vector<128x1xf32>
    %cst_35 = arith.constant 3.200000e+01 : f32
    %105 = vector.broadcast %cst_35 : f32 to vector<128x1xf32>
    %106 = arith.divf %104, %105 : vector<128x1xf32>
    %107 = vector.broadcast %99 : vector<128x1xf32> to vector<128x32xf32>
    %108 = arith.subf %93, %107 : vector<128x32xf32>
    %cst_36 = arith.constant 9.99999974E-6 : f32
    %109 = vector.broadcast %cst_36 : f32 to vector<128x1xf32>
    %110 = arith.addf %106, %109 : vector<128x1xf32>
    %111 = math.rsqrt %110 : vector<128x1xf32>
    %112 = vector.broadcast %111 : vector<128x1xf32> to vector<128x32xf32>
    %113 = arith.mulf %108, %112 : vector<128x32xf32>
    %114 = vector.broadcast %94 : vector<1x32xf32> to vector<128x32xf32>
    %115 = arith.mulf %113, %114 : vector<128x32xf32>
    %116 = vector.broadcast %95 : vector<1x32xf32> to vector<128x32xf32>
    %117 = arith.addf %115, %116 : vector<128x32xf32>
    %cst_37 = arith.constant 0.000000e+00 : f32
    %118 = vector.broadcast %cst_37 : f32 to vector<128x32xf32>
    %119 = arith.maximumf %117, %118 : vector<128x32xf32>
    %120 = arith.addf %76, %119 : vector<128x32xf32>
    %121 = arith.truncf %120 : vector<128x32xf32> to vector<128x32xbf16>
    %c0_38 = arith.constant 0 : index
    %c0_39 = arith.constant 0 : index
    %122 = vector.load %arg1[%c0_38, %c0_39] : memref<512x128xbf16, #tpu.memory_space<vmem>>, vector<512x128xbf16>
    %cst_40 = arith.constant dense<0.000000e+00> : vector<512x32xf32>
    %123 = tpu.matmul %122, %121, %cst_40 {dimension_numbers = #tpu.dot_dimension_numbers<[1], [0], [0], [1], [0, 0, 1, 1], [], []>} : vector<512x128xbf16>, vector<128x32xbf16>, vector<512x32xf32> -> vector<512x32xf32>
    %c0_41 = arith.constant 0 : index
    %c0_42 = arith.constant 0 : index
    %124 = vector.load %arg2[%c0_41, %c0_42] : memref<512x1xf32, #tpu.memory_space<vmem>>, vector<512x1xf32>
    %125 = vector.broadcast %124 : vector<512x1xf32> to vector<512x32xf32>
    %126 = arith.mulf %123, %125 : vector<512x32xf32>
    %127 = arith.truncf %126 : vector<512x32xf32> to vector<512x32xbf16>
    %128 = vector.extract_strided_slice %127 {offsets = [0, 0], sizes = [128, 32], strides = [1, 1]} : vector<512x32xbf16> to vector<128x32xbf16>
    %129 = vector.extract_strided_slice %127 {offsets = [128, 0], sizes = [128, 32], strides = [1, 1]} : vector<512x32xbf16> to vector<128x32xbf16>
    %130 = vector.extract_strided_slice %127 {offsets = [256, 0], sizes = [128, 32], strides = [1, 1]} : vector<512x32xbf16> to vector<128x32xbf16>
    %131 = vector.extract_strided_slice %127 {offsets = [384, 0], sizes = [128, 32], strides = [1, 1]} : vector<512x32xbf16> to vector<128x32xbf16>
    %132 = tpu.concatenate %121, %128, %129, %130, %131 in 1 : vector<128x32xbf16>, vector<128x32xbf16>, vector<128x32xbf16>, vector<128x32xbf16>, vector<128x32xbf16> -> vector<128x160xbf16>
    %c320 = arith.constant 320 : index
    %c0_43 = arith.constant 0 : index
    %133 = vector.load %arg5[%c320, %c0_43] : memref<480x32xbf16, #tpu.memory_space<vmem>>, vector<160x32xbf16>
    %cst_44 = arith.constant dense<0.000000e+00> : vector<128x32xf32>
    %134 = tpu.matmul %132, %133, %cst_44 {dimension_numbers = #tpu.dot_dimension_numbers<[1], [0], [0], [1], [0, 0, 1, 1], [], []>} : vector<128x160xbf16>, vector<160x32xbf16>, vector<128x32xf32> -> vector<128x32xf32>
    %135 = vector.extract_strided_slice %0 {offsets = [9, 0], sizes = [1, 32], strides = [1, 1]} : vector<13x32xf32> to vector<1x32xf32>
    %136 = vector.broadcast %135 : vector<1x32xf32> to vector<128x32xf32>
    %137 = arith.addf %134, %136 : vector<128x32xf32>
    %138 = vector.extract_strided_slice %0 {offsets = [10, 0], sizes = [1, 32], strides = [1, 1]} : vector<13x32xf32> to vector<1x32xf32>
    %139 = vector.extract_strided_slice %0 {offsets = [11, 0], sizes = [1, 32], strides = [1, 1]} : vector<13x32xf32> to vector<1x32xf32>
    %cst_45 = arith.constant dense<0.000000e+00> : vector<128xf32>
    %140 = vector.multi_reduction <add>, %137, %cst_45 [1] : vector<128x32xf32> to vector<128xf32>
    %141 = vector.shape_cast %140 : vector<128xf32> to vector<128x1xf32>
    %cst_46 = arith.constant 3.200000e+01 : f32
    %142 = vector.broadcast %cst_46 : f32 to vector<128x1xf32>
    %143 = arith.divf %141, %142 : vector<128x1xf32>
    %144 = vector.broadcast %143 : vector<128x1xf32> to vector<128x32xf32>
    %145 = arith.subf %137, %144 : vector<128x32xf32>
    %146 = arith.mulf %145, %145 : vector<128x32xf32>
    %cst_47 = arith.constant dense<0.000000e+00> : vector<128xf32>
    %147 = vector.multi_reduction <add>, %146, %cst_47 [1] : vector<128x32xf32> to vector<128xf32>
    %148 = vector.shape_cast %147 : vector<128xf32> to vector<128x1xf32>
    %cst_48 = arith.constant 3.200000e+01 : f32
    %149 = vector.broadcast %cst_48 : f32 to vector<128x1xf32>
    %150 = arith.divf %148, %149 : vector<128x1xf32>
    %151 = vector.broadcast %143 : vector<128x1xf32> to vector<128x32xf32>
    %152 = arith.subf %137, %151 : vector<128x32xf32>
    %cst_49 = arith.constant 9.99999974E-6 : f32
    %153 = vector.broadcast %cst_49 : f32 to vector<128x1xf32>
    %154 = arith.addf %150, %153 : vector<128x1xf32>
    %155 = math.rsqrt %154 : vector<128x1xf32>
    %156 = vector.broadcast %155 : vector<128x1xf32> to vector<128x32xf32>
    %157 = arith.mulf %152, %156 : vector<128x32xf32>
    %158 = vector.broadcast %138 : vector<1x32xf32> to vector<128x32xf32>
    %159 = arith.mulf %157, %158 : vector<128x32xf32>
    %160 = vector.broadcast %139 : vector<1x32xf32> to vector<128x32xf32>
    %161 = arith.addf %159, %160 : vector<128x32xf32>
    %cst_50 = arith.constant 0.000000e+00 : f32
    %162 = vector.broadcast %cst_50 : f32 to vector<128x32xf32>
    %163 = arith.maximumf %161, %162 : vector<128x32xf32>
    %164 = arith.addf %120, %163 : vector<128x32xf32>
    %165 = arith.truncf %164 : vector<128x32xf32> to vector<128x32xbf16>
    %c0_51 = arith.constant 0 : index
    %c0_52 = arith.constant 0 : index
    %166 = vector.load %arg8[%c0_51, %c0_52] : memref<128x32xbf16, #tpu.memory_space<vmem>>, vector<128x32xbf16>
    tpu.vector_store %arg8[%c0_51, %c0_52], %165 {strides = array<i32>} : memref<128x32xbf16, #tpu.memory_space<vmem>>, vector<128x32xbf16>,
    %c0_53 = arith.constant 0 : index
    %c0_54 = arith.constant 0 : index
    %167 = vector.load %arg6[%c0_53, %c0_54] : memref<32x1xbf16, #tpu.memory_space<vmem>>, vector<32x1xbf16>
    %168 = arith.truncf %164 : vector<128x32xf32> to vector<128x32xbf16>
    %cst_55 = arith.constant dense<0.000000e+00> : vector<128x1xf32>
    %169 = tpu.matmul %168, %167, %cst_55 {dimension_numbers = #tpu.dot_dimension_numbers<[1], [0], [0], [1], [0, 0, 1, 1], [], []>} : vector<128x32xbf16>, vector<32x1xbf16>, vector<128x1xf32> -> vector<128x1xf32>
    %170 = vector.extract_strided_slice %0 {offsets = [12, 0], sizes = [1, 1], strides = [1, 1]} : vector<13x32xf32> to vector<1x1xf32>
    %171 = vector.broadcast %170 : vector<1x1xf32> to vector<128x1xf32>
    %172 = arith.addf %169, %171 : vector<128x1xf32>
    %c0_56 = arith.constant 0 : index
    %c0_57 = arith.constant 0 : index
    %173 = vector.load %arg3[%c0_56, %c0_57] : memref<128x8xf32, #tpu.memory_space<vmem>>, vector<128x8xf32>
    %cst_58 = arith.constant 0.000000e+00 : f32
    %174 = vector.broadcast %cst_58 : f32 to vector<128x8xf32>
    %175 = arith.cmpf ogt, %173, %174 : vector<128x8xf32>
    %cst_59 = arith.constant -1.000000e+30 : f32
    %176 = vector.shape_cast %172 : vector<128x1xf32> to vector<128x1xf32>
    %177 = vector.broadcast %176 : vector<128x1xf32> to vector<128x8xf32>
    %178 = vector.broadcast %cst_59 : f32 to vector<128x8xf32>
    %179 = arith.select %175, %177, %178 : vector<128x8xi1>, vector<128x8xf32>
    %180 = tpu.transpose %179, [1, 0] : vector<128x8xf32> -> vector<8x128xf32>
    %cst_60 = arith.constant dense<0xFF800000> : vector<8xf32>
    %181 = vector.multi_reduction <maximumf>, %180, %cst_60 [1] : vector<8x128xf32> to vector<8xf32>
    %182 = vector.shape_cast %181 : vector<8xf32> to vector<8x1xf32>
    %183 = vector.broadcast %182 : vector<8x1xf32> to vector<8x128xf32>
    %184 = arith.subf %180, %183 : vector<8x128xf32>
    %185 = math.exp %184 : vector<8x128xf32>
    %cst_61 = arith.constant dense<0.000000e+00> : vector<8xf32>
    %186 = vector.multi_reduction <add>, %185, %cst_61 [1] : vector<8x128xf32> to vector<8xf32>
    %187 = vector.shape_cast %186 : vector<8xf32> to vector<8x1xf32>
    %cst_62 = arith.constant 9.99999968E-21 : f32
    %188 = vector.broadcast %cst_62 : f32 to vector<8x1xf32>
    %189 = arith.maximumf %187, %188 : vector<8x1xf32>
    %190 = vector.broadcast %189 : vector<8x1xf32> to vector<8x128xf32>
    %191 = arith.divf %185, %190 : vector<8x128xf32>
    %cst_63 = arith.constant dense<0.000000e+00> : vector<8x32xf32>
    %192 = tpu.matmul %191, %164, %cst_63 {dimension_numbers = #tpu.dot_dimension_numbers<[1], [0], [0], [1], [0, 0, 1, 1], [], []>} : vector<8x128xf32>, vector<128x32xf32>, vector<8x32xf32> -> vector<8x32xf32>
    %193 = arith.truncf %192 : vector<8x32xf32> to vector<8x32xbf16>
    %c0_64 = arith.constant 0 : index
    %c0_65 = arith.constant 0 : index
    %194 = vector.load %arg9[%c0_64, %c0_65] : memref<8x32xbf16, #tpu.memory_space<vmem>>, vector<8x32xbf16>
    tpu.vector_store %arg9[%c0_64, %c0_65], %193 {strides = array<i32>} : memref<8x32xbf16, #tpu.memory_space<vmem>>, vector<8x32xbf16>,
    return
  }
}

</mosaic_0001>

<llo_original>
// kernel: tpu_custom_call.1
$region0: #{tpu_custom_call.1}
  #allocation0 [shape = 'u32[]', space=smem, size = 0x4, offset = 0x4, fixed_abs, tag = 'smem constant byte address 0x4 - core index']
  #allocation1 [shape = 'u32[144,128]{1,0:T(1,128)}', space=vmem, size = 0x12000, scoped, tag = 'internal scratch']
  %s0 = inlined_call_operand.vmem [shape: bf16[128,8], index: 0, kind: input, shape index: {}]
  %s1 = inlined_call_operand.vmem [shape: bf16[512,128], index: 1, kind: input, shape index: {}]
  %s2 = inlined_call_operand.vmem [shape: f32[512,1], index: 2, kind: input, shape index: {}]
  %s3 = inlined_call_operand.vmem [shape: f32[128,8], index: 3, kind: input, shape index: {}]
  %s4 = inlined_call_operand.vmem [shape: bf16[8,32], index: 4, kind: input, shape index: {}]
  %s5 = inlined_call_operand.vmem [shape: bf16[480,32], index: 5, kind: input, shape index: {}]
  %s6 = inlined_call_operand.vmem [shape: bf16[32,1], index: 6, kind: input, shape index: {}]
  %s7 = inlined_call_operand.vmem [shape: f32[13,32], index: 7, kind: input, shape index: {}]
  %s8 = inlined_call_operand.vmem [shape: bf16[128,32], index: 8, kind: output, shape index: {0}]
  %s9 = inlined_call_operand.hbm [shape: bf16[8,32], index: 9, kind: output, shape index: {1}]
  %10 = xla_tuple %s8, %s9
  %s11 = sld [smem:[#allocation0]]
  $region50: #{tpu_custom_call.1} parent=0
    _
  %s13 = ssub.s32 1, %s11
  %s14 = scalar_select 0, %s13, %s11
  $region1: #{tpu_custom_call.1} parent=0
    #allocation2 [shape = 'u8[2048]{0}', space=vmem, size = 0x800, scoped, tag = 'output window, operand 1, single buffered']
    #allocation3 [shape = 's32[1]{0}', space=sflag, size = 0x4, scoped, tag = 'scoped memory for tpu_custom_call.1']
    %15 = vsyncpa [#allocation3], 0
    // Predicated region
    $region2: #{tpu_custom_call.1} parent=1 // pred_check
      _
    $region3: #{tpu_custom_call.1} parent=1 // pred_check_branch
      %17 = sbr.rel (0) target = $region5
    $region4: #{tpu_custom_call.1} parent=1 // pred_region
      _
    $region5: #{tpu_custom_call.1} parent=1 // pred_fallthru
      _
    // Predicated region
    $region6: #{tpu_custom_call.1} parent=1 // pred_check
      _
    $region7: #{tpu_custom_call.1} parent=1 // pred_check_branch
      %19 = sbr.rel (0) target = $region9
    $region8: #{tpu_custom_call.1} parent=1 // pred_region
      _
    $region9: #{tpu_custom_call.1} parent=1 // pred_fallthru
      _
    // Predicated region
    $region10: #{tpu_custom_call.1} parent=1 // pred_check
      _
    $region11: #{tpu_custom_call.1} parent=1 // pred_check_branch
      %21 = sbr.rel (0) target = $region13
    $region12: #{tpu_custom_call.1} parent=1 // pred_region
      _
    $region13: #{tpu_custom_call.1} parent=1 // pred_fallthru
      _
    // Predicated region
    $region14: #{tpu_custom_call.1} parent=1 // pred_check
      _
    $region15: #{tpu_custom_call.1} parent=1 // pred_check_branch
      %23 = sbr.rel (0) target = $region17
    $region16: #{tpu_custom_call.1} parent=1 // pred_region
      _
    $region17: #{tpu_custom_call.1} parent=1 // pred_fallthru
      _
    // Predicated region
    $region18: #{tpu_custom_call.1} parent=1 // pred_check
      _
    $region19: #{tpu_custom_call.1} parent=1 // pred_check_branch
      %25 = sbr.rel (0) target = $region21
    $region20: #{tpu_custom_call.1} parent=1 // pred_region
      _
    $region21: #{tpu_custom_call.1} parent=1 // pred_fallthru
      _
    // Predicated region
    $region22: #{tpu_custom_call.1} parent=1 // pred_check
      _
    $region23: #{tpu_custom_call.1} parent=1 // pred_check_branch
      %27 = sbr.rel (0) target = $region25
    $region24: #{tpu_custom_call.1} parent=1 // pred_region
      _
    $region25: #{tpu_custom_call.1} parent=1 // pred_fallthru
      _
    // Predicated region
    $region26: #{tpu_custom_call.1} parent=1 // pred_check
      _
    $region27: #{tpu_custom_call.1} parent=1 // pred_check_branch
      %29 = sbr.rel (0) target = $region29
    $region28: #{tpu_custom_call.1} parent=1 // pred_region
      _
    $region29: #{tpu_custom_call.1} parent=1 // pred_fallthru
      _
    // Predicated region
    $region30: #{tpu_custom_call.1} parent=1 // pred_check
      _
    $region31: #{tpu_custom_call.1} parent=1 // pred_check_branch
      %31 = sbr.rel (0) target = $region33
    $region32: #{tpu_custom_call.1} parent=1 // pred_region
      _
    $region33: #{tpu_custom_call.1} parent=1 // pred_fallthru
      _
    %v33 = vld [vmem:[%s7] sm:$0xff]
    %v34 = vld [vmem:[%s7 + $0x8] sm:$0x1f]
    %v35 = vld [vmem:[%s0] sm:$0xf]
    %v36 = vld [vmem:[%s0 + $0x4] sm:$0xf]
    %v37 = vld [vmem:[%s0 + $0x8] sm:$0xf]
    %v38 = vld [vmem:[%s0 + $0xc] sm:$0xf]
    %v39 = vld [vmem:[%s0 + $0x10] sm:$0xf]
    %v40 = vld [vmem:[%s0 + $0x14] sm:$0xf]
    %v41 = vld [vmem:[%s0 + $0x18] sm:$0xf]
    %v42 = vld [vmem:[%s0 + $0x1c] sm:$0xf]
    %v43 = vld [vmem:[%s0 + $0x20] sm:$0xf]
    %v44 = vld [vmem:[%s0 + $0x24] sm:$0xf]
    %v45 = vld [vmem:[%s0 + $0x28] sm:$0xf]
    %v46 = vld [vmem:[%s0 + $0x2c] sm:$0xf]
    %v47 = vld [vmem:[%s0 + $0x30] sm:$0xf]
    %v48 = vld [vmem:[%s0 + $0x34] sm:$0xf]
    %v49 = vld [vmem:[%s0 + $0x38] sm:$0xf]
    %v50 = vld [vmem:[%s0 + $0x3c] sm:$0xf]
    %v51 = vld [vmem:[%s4] sm:$0xf]
    %v52 = vlaneseq
    %v53 = vshrl.u32 %v52, 7
    %v54 = vsub.s32 0, %v53
    %v55 = vrot.slane %v33, %v54
    %v72 = vunpack.c.l.b16 %v35
    %v73 = vunpack.c.l.b16 %v36
    %v74 = vunpack.c.l.b16 %v37
    %v75 = vunpack.c.l.b16 %v38
    %v76 = vunpack.c.l.b16 %v39
    %v77 = vunpack.c.l.b16 %v40
    %v78 = vunpack.c.l.b16 %v41
    %v79 = vunpack.c.l.b16 %v42
    %v80 = vunpack.c.l.b16 %v43
    %v81 = vunpack.c.l.b16 %v44
    %v82 = vunpack.c.l.b16 %v45
    %v83 = vunpack.c.l.b16 %v46
    %v84 = vunpack.c.l.b16 %v47
    %v85 = vunpack.c.l.b16 %v48
    %v86 = vunpack.c.l.b16 %v49
    %v87 = vunpack.c.l.b16 %v50
    %v88 = vpack.c.b16 %v73, %v72
    %v89 = vpack.c.b16 %v75, %v74
    %v90 = vpack.c.b16 %v77, %v76
    %v91 = vpack.c.b16 %v79, %v78
    %v92 = vpack.c.b16 %v81, %v80
    %v93 = vpack.c.b16 %v83, %v82
    %v94 = vpack.c.b16 %v85, %v84
    %v95 = vpack.c.b16 %v87, %v86
    %vm96 = vcmask 64512
    %v98 = vsel %vm96, %v88, 0
    %v101 = vsel %vm96, %v89, 0
    %v104 = vsel %vm96, %v90, 0
    %v107 = vsel %vm96, %v91, 0
    %v110 = vsel %vm96, %v92, 0
    %v113 = vsel %vm96, %v93, 0
    %v116 = vsel %vm96, %v94, 0
    %v119 = vsel %vm96, %v95, 0
    %vm121 = vcmask 1043456
    %v123 = vsel %vm121, %v51, 0
    %125 = vmatprep.subr.bf16.mxu0 0
    %126 = vmatpush1.bf16.msra.mxu0 %v123
    %127 = vmatprep.subr.bf16.mxu0 0
    %128 = vmatpush1.bf16.msra.mxu0 0
    %129 = vmatprep.subr.bf16.mxu0 0
    %130 = vmatpush1.bf16.msra.mxu0 0
    %131 = vmatprep.subr.bf16.mxu0 0
    %132 = vmatpush1.bf16.msra.mxu0 0
    %133 = vmatprep.subr.bf16.mxu0 0
    %134 = vmatpush1.bf16.msra.mxu0 0
    %135 = vmatprep.subr.bf16.mxu0 0
    %136 = vmatpush1.bf16.msra.mxu0 0
    %137 = vmatprep.subr.bf16.mxu0 0
    %138 = vmatpush1.bf16.msra.mxu0 0
    %139 = vmatprep.subr.bf16.mxu0 0
    %140 = vmatpush1.bf16.msra.mxu0 0
    %141 = vmatprep.subr.bf16.mxu0 0
    %142 = vmatpush1.bf16.msra.mxu0 0
    %143 = vmatprep.subr.bf16.mxu0 0
    %144 = vmatpush1.bf16.msra.mxu0 0
    %145 = vmatprep.subr.bf16.mxu0 0
    %146 = vmatpush1.bf16.msra.mxu0 0
    %147 = vmatprep.subr.bf16.mxu0 0
    %148 = vmatpush1.bf16.msra.mxu0 0
    %149 = vmatprep.subr.bf16.mxu0 0
    %150 = vmatpush1.bf16.msra.mxu0 0
    %151 = vmatprep.subr.bf16.mxu0 0
    %152 = vmatpush1.bf16.msra.mxu0 0
    %153 = vmatprep.subr.bf16.mxu0 0
    %154 = vmatpush1.bf16.msra.mxu0 0
    %155 = vmatprep.subr.bf16.mxu0 0
    %156 = vmatpush1.bf16.msra.mxu0 0
    %157 = vmatprep.mubr.bf16.mxu0 0
    %158 = vmatmul.mubr.bf16.gmra.mrb[0].mxu0 %v98
    %v159 = vpop.f32.mrb[0].mxu0
    %v160 = vadd.f32 %v55, %v159
    %v161 = vpop.f32.mrb[0].mxu0
    %v162 = vpop.f32.mrb[0].mxu0
    %v163 = vadd.f32 %v55, %v162
    %v164 = vpop.f32.mrb[0].mxu0
    %165 = vmatprep.mubr.bf16.mxu0 0
    %166 = vmatmul.mubr.bf16.gmra.mrb[0].mxu0 %v101
    %v167 = vpop.f32.mrb[0].mxu0
    %v168 = vadd.f32 %v55, %v167
    %v169 = vpop.f32.mrb[0].mxu0
    %v170 = vpop.f32.mrb[0].mxu0
    %v171 = vadd.f32 %v55, %v170
    %v172 = vpop.f32.mrb[0].mxu0
    %173 = vmatprep.mubr.bf16.mxu0 0
    %174 = vmatmul.mubr.bf16.gmra.mrb[0].mxu0 %v104
    %v175 = vpop.f32.mrb[0].mxu0
    %v176 = vadd.f32 %v55, %v175
    %v177 = vpop.f32.mrb[0].mxu0
    %v178 = vpop.f32.mrb[0].mxu0
    %v179 = vadd.f32 %v55, %v178
    %v180 = vpop.f32.mrb[0].mxu0
    %181 = vmatprep.mubr.bf16.mxu0 0
    %182 = vmatmul.mubr.bf16.gmra.mrb[0].mxu0 %v107
    %v183 = vpop.f32.mrb[0].mxu0
    %v184 = vadd.f32 %v55, %v183
    %v185 = vpop.f32.mrb[0].mxu0
    %v186 = vpop.f32.mrb[0].mxu0
    %v187 = vadd.f32 %v55, %v186
    %v188 = vpop.f32.mrb[0].mxu0
    %189 = vmatprep.mubr.bf16.mxu0 0
    %190 = vmatmul.mubr.bf16.gmra.mrb[0].mxu0 %v110
    %v191 = vpop.f32.mrb[0].mxu0
    %v192 = vadd.f32 %v55, %v191
    %v193 = vpop.f32.mrb[0].mxu0
    %v194 = vpop.f32.mrb[0].mxu0
    %v195 = vadd.f32 %v55, %v194
    %v196 = vpop.f32.mrb[0].mxu0
    %197 = vmatprep.mubr.bf16.mxu0 0
    %198 = vmatmul.mubr.bf16.gmra.mrb[0].mxu0 %v113
    %v199 = vpop.f32.mrb[0].mxu0
    %v200 = vadd.f32 %v55, %v199
    %v201 = vpop.f32.mrb[0].mxu0
    %v202 = vpop.f32.mrb[0].mxu0
    %v203 = vadd.f32 %v55, %v202
    %v204 = vpop.f32.mrb[0].mxu0
    %205 = vmatprep.mubr.bf16.mxu0 0
    %206 = vmatmul.mubr.bf16.gmra.mrb[0].mxu0 %v116
    %v207 = vpop.f32.mrb[0].mxu0
    %v208 = vadd.f32 %v55, %v207
    %v209 = vpop.f32.mrb[0].mxu0
    %v210 = vpop.f32.mrb[0].mxu0
    %v211 = vadd.f32 %v55, %v210
    %v212 = vpop.f32.mrb[0].mxu0
    %213 = vmatprep.mubr.bf16.mxu0 0
    %214 = vmatmul.mubr.bf16.gmra.mrb[0].mxu0 %v119
    %v215 = vpop.f32.mrb[0].mxu0
    %v216 = vadd.f32 %v55, %v215
    %v217 = vpop.f32.mrb[0].mxu0
    %v218 = vpop.f32.mrb[0].mxu0
    %v219 = vadd.f32 %v55, %v218
    %v220 = vpop.f32.mrb[0].mxu0
    %221 = vdwg.mxu0
    %v222 = vmax.f32 %v160, 0.0
    %v223 = vmax.f32 %v163, 0.0
    %v224 = vmax.f32 %v168, 0.0
    %v225 = vmax.f32 %v171, 0.0
    %v226 = vmax.f32 %v176, 0.0
    %v227 = vmax.f32 %v179, 0.0
    %v228 = vmax.f32 %v184, 0.0
    %v229 = vmax.f32 %v187, 0.0
    %v230 = vmax.f32 %v192, 0.0
    %v231 = vmax.f32 %v195, 0.0
    %v232 = vmax.f32 %v200, 0.0
    %v233 = vmax.f32 %v203, 0.0
    %v234 = vmax.f32 %v208, 0.0
    %v235 = vmax.f32 %v211, 0.0
    %v236 = vmax.f32 %v216, 0.0
    %v237 = vmax.f32 %v219, 0.0
    %vm238 = vcmask 261120
    %v239 = vsel %vm238, %v222, 0.0
    %240 = vadd.xlane.f32.xlu0 %v239
    %v241 = vpop.xlane.xlu0 %240
    %v242 = vsel %vm238, %v223, 0.0
    %243 = vadd.xlane.f32.xlu0 %v242
    %v244 = vpop.xlane.xlu0 %243
    %v245 = vsel %vm238, %v224, 0.0
    %246 = vadd.xlane.f32.xlu0 %v245
    %v247 = vpop.xlane.xlu0 %246
    %v248 = vsel %vm238, %v225, 0.0
    %249 = vadd.xlane.f32.xlu0 %v248
    %v250 = vpop.xlane.xlu0 %249
    %v251 = vsel %vm238, %v226, 0.0
    %252 = vadd.xlane.f32.xlu0 %v251
    %v253 = vpop.xlane.xlu0 %252
    %v254 = vsel %vm238, %v227, 0.0
    %255 = vadd.xlane.f32.xlu0 %v254
    %v256 = vpop.xlane.xlu0 %255
    %v257 = vsel %vm238, %v228, 0.0
    %258 = vadd.xlane.f32.xlu0 %v257
    %v259 = vpop.xlane.xlu0 %258
    %v260 = vsel %vm238, %v229, 0.0
    %261 = vadd.xlane.f32.xlu0 %v260
    %v262 = vpop.xlane.xlu0 %261
    %v263 = vsel %vm238, %v230, 0.0
    %264 = vadd.xlane.f32.xlu0 %v263
    %v265 = vpop.xlane.xlu0 %264
    %v266 = vsel %vm238, %v231, 0.0
    %267 = vadd.xlane.f32.xlu0 %v266
    %v268 = vpop.xlane.xlu0 %267
    %v269 = vsel %vm238, %v232, 0.0
    %270 = vadd.xlane.f32.xlu0 %v269
    %v271 = vpop.xlane.xlu0 %270
    %v272 = vsel %vm238, %v233, 0.0
    %273 = vadd.xlane.f32.xlu0 %v272
    %v274 = vpop.xlane.xlu0 %273
    %v275 = vsel %vm238, %v234, 0.0
    %276 = vadd.xlane.f32.xlu0 %v275
    %v277 = vpop.xlane.xlu0 %276
    %v278 = vsel %vm238, %v235, 0.0
    %279 = vadd.xlane.f32.xlu0 %v278
    %v280 = vpop.xlane.xlu0 %279
    %v281 = vsel %vm238, %v236, 0.0
    %282 = vadd.xlane.f32.xlu0 %v281
    %v283 = vpop.xlane.xlu0 %282
    %v284 = vsel %vm238, %v237, 0.0
    %285 = vadd.xlane.f32.xlu0 %v284
    %v286 = vpop.xlane.xlu0 %285
    %v287 = vrcp.pop 32.0
    %v288 = vmul.f32 %v241, %v287
    %v289 = vmul.f32 %v244, %v287
    %v290 = vmul.f32 %v247, %v287
    %v291 = vmul.f32 %v250, %v287
    %v292 = vmul.f32 %v253, %v287
    %v293 = vmul.f32 %v256, %v287
    %v294 = vmul.f32 %v259, %v287
    %v295 = vmul.f32 %v262, %v287
    %v296 = vmul.f32 %v265, %v287
    %v297 = vmul.f32 %v268, %v287
    %v298 = vmul.f32 %v271, %v287
    %v299 = vmul.f32 %v274, %v287
    %v300 = vmul.f32 %v277, %v287
    %v301 = vmul.f32 %v280, %v287
    %v302 = vmul.f32 %v283, %v287
    %v303 = vmul.f32 %v286, %v287
    %v304 = vsub.f32 %v222, %v288
    %v305 = vsub.f32 %v223, %v289
    %v306 = vsub.f32 %v224, %v290
    %v307 = vsub.f32 %v225, %v291
    %v308 = vsub.f32 %v226, %v292
    %v309 = vsub.f32 %v227, %v293
    %v310 = vsub.f32 %v228, %v294
    %v311 = vsub.f32 %v229, %v295
    %v312 = vsub.f32 %v230, %v296
    %v313 = vsub.f32 %v231, %v297
    %v314 = vsub.f32 %v232, %v298
    %v315 = vsub.f32 %v233, %v299
    %v316 = vsub.f32 %v234, %v300
    %v317 = vsub.f32 %v235, %v301
    %v318 = vsub.f32 %v236, %v302
    %v319 = vsub.f32 %v237, %v303
    %v320 = vmul.f32 %v304, %v304
    %v321 = vmul.f32 %v305, %v305
    %v322 = vmul.f32 %v306, %v306
    %v323 = vmul.f32 %v307, %v307
    %v324 = vmul.f32 %v308, %v308
    %v325 = vmul.f32 %v309, %v309
    %v326 = vmul.f32 %v310, %v310
    %v327 = vmul.f32 %v311, %v311
    %v328 = vmul.f32 %v312, %v312
    %v329 = vmul.f32 %v313, %v313
    %v330 = vmul.f32 %v314, %v314
    %v331 = vmul.f32 %v315, %v315
    %v332 = vmul.f32 %v316, %v316
    %v333 = vmul.f32 %v317, %v317
    %v334 = vmul.f32 %v318, %v318
    %v335 = vmul.f32 %v319, %v319
    %v336 = vsel %vm238, %v320, 0.0
    %337 = vadd.xlane.f32.xlu0 %v336
    %v338 = vpop.xlane.xlu0 %337
    %v339 = vsel %vm238, %v321, 0.0
    %340 = vadd.xlane.f32.xlu0 %v339
    %v341 = vpop.xlane.xlu0 %340
    %v342 = vsel %vm238, %v322, 0.0
    %343 = vadd.xlane.f32.xlu0 %v342
    %v344 = vpop.xlane.xlu0 %343
    %v345 = vsel %vm238, %v323, 0.0
    %346 = vadd.xlane.f32.xlu0 %v345
    %v347 = vpop.xlane.xlu0 %346
    %v348 = vsel %vm238, %v324, 0.0
    %349 = vadd.xlane.f32.xlu0 %v348
    %v350 = vpop.xlane.xlu0 %349
    %v351 = vsel %vm238, %v325, 0.0
    %352 = vadd.xlane.f32.xlu0 %v351
    %v353 = vpop.xlane.xlu0 %352
    %v354 = vsel %vm238, %v326, 0.0
    %355 = vadd.xlane.f32.xlu0 %v354
    %v356 = vpop.xlane.xlu0 %355
    %v357 = vsel %vm238, %v327, 0.0
    %358 = vadd.xlane.f32.xlu0 %v357
    %v359 = vpop.xlane.xlu0 %358
    %v360 = vsel %vm238, %v328, 0.0
    %361 = vadd.xlane.f32.xlu0 %v360
    %v362 = vpop.xlane.xlu0 %361
    %v363 = vsel %vm238, %v329, 0.0
    %364 = vadd.xlane.f32.xlu0 %v363
    %v365 = vpop.xlane.xlu0 %364
    %v366 = vsel %vm238, %v330, 0.0
    %367 = vadd.xlane.f32.xlu0 %v366
    %v368 = vpop.xlane.xlu0 %367
    %v369 = vsel %vm238, %v331, 0.0
    %370 = vadd.xlane.f32.xlu0 %v369
    %v371 = vpop.xlane.xlu0 %370
    %v372 = vsel %vm238, %v332, 0.0
    %373 = vadd.xlane.f32.xlu0 %v372
    %v374 = vpop.xlane.xlu0 %373
    %v375 = vsel %vm238, %v333, 0.0
    %376 = vadd.xlane.f32.xlu0 %v375
    %v377 = vpop.xlane.xlu0 %376
    %v378 = vsel %vm238, %v334, 0.0
    %379 = vadd.xlane.f32.xlu0 %v378
    %v380 = vpop.xlane.xlu0 %379
    %v381 = vsel %vm238, %v335, 0.0
    %382 = vadd.xlane.f32.xlu0 %v381
    %v383 = vpop.xlane.xlu0 %382
    %v384 = vmul.f32 %v338, %v287
    %v385 = vmul.f32 %v341, %v287
    %v386 = vmul.f32 %v344, %v287
    %v387 = vmul.f32 %v347, %v287
    %v388 = vmul.f32 %v350, %v287
    %v389 = vmul.f32 %v353, %v287
    %v390 = vmul.f32 %v356, %v287
    %v391 = vmul.f32 %v359, %v287
    %v392 = vmul.f32 %v362, %v287
    %v393 = vmul.f32 %v365, %v287
    %v394 = vmul.f32 %v368, %v287
    %v395 = vmul.f32 %v371, %v287
    %v396 = vmul.f32 %v374, %v287
    %v397 = vmul.f32 %v377, %v287
    %v398 = vmul.f32 %v380, %v287
    %v399 = vmul.f32 %v383, %v287
    %v400 = vadd.f32 %v384, 1e-05
    %v401 = vadd.f32 %v385, 1e-05
    %v402 = vadd.f32 %v386, 1e-05
    %v403 = vadd.f32 %v387, 1e-05
    %v404 = vadd.f32 %v388, 1e-05
    %v405 = vadd.f32 %v389, 1e-05
    %v406 = vadd.f32 %v390, 1e-05
    %v407 = vadd.f32 %v391, 1e-05
    %v408 = vadd.f32 %v392, 1e-05
    %v409 = vadd.f32 %v393, 1e-05
    %v410 = vadd.f32 %v394, 1e-05
    %v411 = vadd.f32 %v395, 1e-05
    %v412 = vadd.f32 %v396, 1e-05
    %v413 = vadd.f32 %v397, 1e-05
    %v414 = vadd.f32 %v398, 1e-05
    %v415 = vadd.f32 %v399, 1e-05
    %v416 = vrsqrt.pop %v400
    %v417 = vrsqrt.pop %v401
    %v418 = vrsqrt.pop %v402
    %v419 = vrsqrt.pop %v403
    %v420 = vrsqrt.pop %v404
    %v421 = vrsqrt.pop %v405
    %v422 = vrsqrt.pop %v406
    %v423 = vrsqrt.pop %v407
    %v424 = vrsqrt.pop %v408
    %v425 = vrsqrt.pop %v409
    %v426 = vrsqrt.pop %v410
    %v427 = vrsqrt.pop %v411
    %v428 = vrsqrt.pop %v412
    %v429 = vrsqrt.pop %v413
    %v430 = vrsqrt.pop %v414
    %v431 = vrsqrt.pop %v415
    %v432 = vmul.f32 %v304, %v416
    %v433 = vmul.f32 %v305, %v417
    %v434 = vmul.f32 %v306, %v418
    %v435 = vmul.f32 %v307, %v419
    %v436 = vmul.f32 %v308, %v420
    %v437 = vmul.f32 %v309, %v421
    %v438 = vmul.f32 %v310, %v422
    %v439 = vmul.f32 %v311, %v423
    %v440 = vmul.f32 %v312, %v424
    %v441 = vmul.f32 %v313, %v425
    %v442 = vmul.f32 %v314, %v426
    %v443 = vmul.f32 %v315, %v427
    %v444 = vmul.f32 %v316, %v428
    %v445 = vmul.f32 %v317, %v429
    %v446 = vmul.f32 %v318, %v430
    %v447 = vmul.f32 %v319, %v431
    %v448 = vlaneseq
    %v449 = vshrl.u32 %v448, 7
    %v450 = vsub.s32 1, %v449
    %v451 = vrot.slane %v33, %v450
    %v452 = vmul.f32 %v432, %v451
    %v453 = vmul.f32 %v433, %v451
    %v454 = vmul.f32 %v434, %v451
    %v455 = vmul.f32 %v435, %v451
    %v456 = vmul.f32 %v436, %v451
    %v457 = vmul.f32 %v437, %v451
    %v458 = vmul.f32 %v438, %v451
    %v459 = vmul.f32 %v439, %v451
    %v460 = vmul.f32 %v440, %v451
    %v461 = vmul.f32 %v441, %v451
    %v462 = vmul.f32 %v442, %v451
    %v463 = vmul.f32 %v443, %v451
    %v464 = vmul.f32 %v444, %v451
    %v465 = vmul.f32 %v445, %v451
    %v466 = vmul.f32 %v446, %v451
    %v467 = vmul.f32 %v447, %v451
    %v468 = vlaneseq
    %v469 = vshrl.u32 %v468, 7
    %v470 = vsub.s32 2, %v469
    %v471 = vrot.slane %v33, %v470
    %v472 = vadd.f32 %v452, %v471
    %v473 = vadd.f32 %v453, %v471
    %v474 = vadd.f32 %v454, %v471
    %v475 = vadd.f32 %v455, %v471
    %v476 = vadd.f32 %v456, %v471
    %v477 = vadd.f32 %v457, %v471
    %v478 = vadd.f32 %v458, %v471
    %v479 = vadd.f32 %v459, %v471
    %v480 = vadd.f32 %v460, %v471
    %v481 = vadd.f32 %v461, %v471
    %v482 = vadd.f32 %v462, %v471
    %v483 = vadd.f32 %v463, %v471
    %v484 = vadd.f32 %v464, %v471
    %v485 = vadd.f32 %v465, %v471
    %v486 = vadd.f32 %v466, %v471
    %v487 = vadd.f32 %v467, %v471
    %v488 = vpack.c.bf16 %v473, %v472
    %v489 = vpack.c.bf16 %v475, %v474
    %v490 = vpack.c.bf16 %v477, %v476
    %v491 = vpack.c.bf16 %v479, %v478
    %v492 = vpack.c.bf16 %v481, %v480
    %v493 = vpack.c.bf16 %v483, %v482
    %v494 = vpack.c.bf16 %v485, %v484
    %v495 = vpack.c.bf16 %v487, %v486
    %v496 = vld [vmem:[%s1] sm:$0xf]
    %v497 = vld [vmem:[%s1 + $0x4] sm:$0xf]
    %v498 = vld [vmem:[%s1 + $0x8] sm:$0xf]
    %v499 = vld [vmem:[%s1 + $0xc] sm:$0xf]
    %v500 = vld [vmem:[%s1 + $0x10] sm:$0xf]
    %v501 = vld [vmem:[%s1 + $0x14] sm:$0xf]
    %v502 = vld [vmem:[%s1 + $0x18] sm:$0xf]
    %v503 = vld [vmem:[%s1 + $0x1c] sm:$0xf]
    %v504 = vld [vmem:[%s1 + $0x20] sm:$0xf]
    %v505 = vld [vmem:[%s1 + $0x24] sm:$0xf]
    %v506 = vld [vmem:[%s1 + $0x28] sm:$0xf]
    %v507 = vld [vmem:[%s1 + $0x2c] sm:$0xf]
    %v508 = vld [vmem:[%s1 + $0x30] sm:$0xf]
    %v509 = vld [vmem:[%s1 + $0x34] sm:$0xf]
    %v510 = vld [vmem:[%s1 + $0x38] sm:$0xf]
    %v511 = vld [vmem:[%s1 + $0x3c] sm:$0xf]
    %v512 = vld [vmem:[%s1 + $0x40] sm:$0xf]
    %v513 = vld [vmem:[%s1 + $0x44] sm:$0xf]
    %v514 = vld [vmem:[%s1 + $0x48] sm:$0xf]
    %v515 = vld [vmem:[%s1 + $0x4c] sm:$0xf]
    %v516 = vld [vmem:[%s1 + $0x50] sm:$0xf]
    %v517 = vld [vmem:[%s1 + $0x54] sm:$0xf]
    %v518 = vld [vmem:[%s1 + $0x58] sm:$0xf]
    %v519 = vld [vmem:[%s1 + $0x5c] sm:$0xf]
    %v520 = vld [vmem:[%s1 + $0x60] sm:$0xf]
    %v521 = vld [vmem:[%s1 + $0x64] sm:$0xf]
    %v522 = vld [vmem:[%s1 + $0x68] sm:$0xf]
    %v523 = vld [vmem:[%s1 + $0x6c] sm:$0xf]
    %v524 = vld [vmem:[%s1 + $0x70] sm:$0xf]
    %v525 = vld [vmem:[%s1 + $0x74] sm:$0xf]
    %v526 = vld [vmem:[%s1 + $0x78] sm:$0xf]
    %v527 = vld [vmem:[%s1 + $0x7c] sm:$0xf]
    %v528 = vld [vmem:[%s1 + $0x80] sm:$0xf]
    %v529 = vld [vmem:[%s1 + $0x84] sm:$0xf]
    %v530 = vld [vmem:[%s1 + $0x88] sm:$0xf]
    %v531 = vld [vmem:[%s1 + $0x8c] sm:$0xf]
    %v532 = vld [vmem:[%s1 + $0x90] sm:$0xf]
    %v533 = vld [vmem:[%s1 + $0x94] sm:$0xf]
    %v534 = vld [vmem:[%s1 + $0x98] sm:$0xf]
    %v535 = vld [vmem:[%s1 + $0x9c] sm:$0xf]
    %v536 = vld [vmem:[%s1 + $0xa0] sm:$0xf]
    %v537 = vld [vmem:[%s1 + $0xa4] sm:$0xf]
    %v538 = vld [vmem:[%s1 + $0xa8] sm:$0xf]
    %v539 = vld [vmem:[%s1 + $0xac] sm:$0xf]
    %v540 = vld [vmem:[%s1 + $0xb0] sm:$0xf]
    %v541 = vld [vmem:[%s1 + $0xb4] sm:$0xf]
    %v542 = vld [vmem:[%s1 + $0xb8] sm:$0xf]
    %v543 = vld [vmem:[%s1 + $0xbc] sm:$0xf]
    %v544 = vld [vmem:[%s1 + $0xc0] sm:$0xf]
    %v545 = vld [vmem:[%s1 + $0xc4] sm:$0xf]
    %v546 = vld [vmem:[%s1 + $0xc8] sm:$0xf]
    %v547 = vld [vmem:[%s1 + $0xcc] sm:$0xf]
    %v548 = vld [vmem:[%s1 + $0xd0] sm:$0xf]
    %v549 = vld [vmem:[%s1 + $0xd4] sm:$0xf]
    %v550 = vld [vmem:[%s1 + $0xd8] sm:$0xf]
    %v551 = vld [vmem:[%s1 + $0xdc] sm:$0xf]
    %v552 = vld [vmem:[%s1 + $0xe0] sm:$0xf]
    %v553 = vld [vmem:[%s1 + $0xe4] sm:$0xf]
    %v554 = vld [vmem:[%s1 + $0xe8] sm:$0xf]
    %v555 = vld [vmem:[%s1 + $0xec] sm:$0xf]
    %v556 = vld [vmem:[%s1 + $0xf0] sm:$0xf]
    %v557 = vld [vmem:[%s1 + $0xf4] sm:$0xf]
    %v558 = vld [vmem:[%s1 + $0xf8] sm:$0xf]
    %v559 = vld [vmem:[%s1 + $0xfc] sm:$0xf]
    %v624 = vunpack.c.l.b16 %v496
    %v625 = vunpack.c.l.b16 %v497
    %v626 = vunpack.c.l.b16 %v498
    %v627 = vunpack.c.l.b16 %v499
    %v628 = vunpack.c.l.b16 %v500
    %v629 = vunpack.c.l.b16 %v501
    %v630 = vunpack.c.l.b16 %v502
    %v631 = vunpack.c.l.b16 %v503
    %v632 = vunpack.c.l.b16 %v504
    %v633 = vunpack.c.l.b16 %v505
    %v634 = vunpack.c.l.b16 %v506
    %v635 = vunpack.c.l.b16 %v507
    %v636 = vunpack.c.l.b16 %v508
    %v637 = vunpack.c.l.b16 %v509
    %v638 = vunpack.c.l.b16 %v510
    %v639 = vunpack.c.l.b16 %v511
    %v640 = vunpack.c.l.b16 %v512
    %v641 = vunpack.c.l.b16 %v513
    %v642 = vunpack.c.l.b16 %v514
    %v643 = vunpack.c.l.b16 %v515
    %v644 = vunpack.c.l.b16 %v516
    %v645 = vunpack.c.l.b16 %v517
    %v646 = vunpack.c.l.b16 %v518
    %v647 = vunpack.c.l.b16 %v519
    %v648 = vunpack.c.l.b16 %v520
    %v649 = vunpack.c.l.b16 %v521
    %v650 = vunpack.c.l.b16 %v522
    %v651 = vunpack.c.l.b16 %v523
    %v652 = vunpack.c.l.b16 %v524
    %v653 = vunpack.c.l.b16 %v525
    %v654 = vunpack.c.l.b16 %v526
    %v655 = vunpack.c.l.b16 %v527
    %v656 = vunpack.c.l.b16 %v528
    %v657 = vunpack.c.l.b16 %v529
    %v658 = vunpack.c.l.b16 %v530
    %v659 = vunpack.c.l.b16 %v531
    %v660 = vunpack.c.l.b16 %v532
    %v661 = vunpack.c.l.b16 %v533
    %v662 = vunpack.c.l.b16 %v534
    %v663 = vunpack.c.l.b16 %v535
    %v664 = vunpack.c.l.b16 %v536
    %v665 = vunpack.c.l.b16 %v537
    %v666 = vunpack.c.l.b16 %v538
    %v667 = vunpack.c.l.b16 %v539
    %v668 = vunpack.c.l.b16 %v540
    %v669 = vunpack.c.l.b16 %v541
    %v670 = vunpack.c.l.b16 %v542
    %v671 = vunpack.c.l.b16 %v543
    %v672 = vunpack.c.l.b16 %v544
    %v673 = vunpack.c.l.b16 %v545
    %v674 = vunpack.c.l.b16 %v546
    %v675 = vunpack.c.l.b16 %v547
    %v676 = vunpack.c.l.b16 %v548
    %v677 = vunpack.c.l.b16 %v549
    %v678 = vunpack.c.l.b16 %v550
    %v679 = vunpack.c.l.b16 %v551
    %v680 = vunpack.c.l.b16 %v552
    %v681 = vunpack.c.l.b16 %v553
    %v682 = vunpack.c.l.b16 %v554
    %v683 = vunpack.c.l.b16 %v555
    %v684 = vunpack.c.l.b16 %v556
    %v685 = vunpack.c.l.b16 %v557
    %v686 = vunpack.c.l.b16 %v558
    %v687 = vunpack.c.l.b16 %v559
    %v688 = vpack.c.b16 %v625, %v624
    %v689 = vpack.c.b16 %v627, %v626
    %v690 = vpack.c.b16 %v629, %v628
    %v691 = vpack.c.b16 %v631, %v630
    %v692 = vpack.c.b16 %v633, %v632
    %v693 = vpack.c.b16 %v635, %v634
    %v694 = vpack.c.b16 %v637, %v636
    %v695 = vpack.c.b16 %v639, %v638
    %v696 = vpack.c.b16 %v641, %v640
    %v697 = vpack.c.b16 %v643, %v642
    %v698 = vpack.c.b16 %v645, %v644
    %v699 = vpack.c.b16 %v647, %v646
    %v700 = vpack.c.b16 %v649, %v648
    %v701 = vpack.c.b16 %v651, %v650
    %v702 = vpack.c.b16 %v653, %v652
    %v703 = vpack.c.b16 %v655, %v654
    %v704 = vpack.c.b16 %v657, %v656
    %v705 = vpack.c.b16 %v659, %v658
    %v706 = vpack.c.b16 %v661, %v660
    %v707 = vpack.c.b16 %v663, %v662
    %v708 = vpack.c.b16 %v665, %v664
    %v709 = vpack.c.b16 %v667, %v666
    %v710 = vpack.c.b16 %v669, %v668
    %v711 = vpack.c.b16 %v671, %v670
    %v712 = vpack.c.b16 %v673, %v672
    %v713 = vpack.c.b16 %v675, %v674
    %v714 = vpack.c.b16 %v677, %v676
    %v715 = vpack.c.b16 %v679, %v678
    %v716 = vpack.c.b16 %v681, %v680
    %v717 = vpack.c.b16 %v683, %v682
    %v718 = vpack.c.b16 %v685, %v684
    %v719 = vpack.c.b16 %v687, %v686
    %752 = vmatprep.subr.bf16.mxu0 0
    %753 = vmatpush1.bf16.msra.mxu0 %v488
    %754 = vmatprep.subr.bf16.mxu0 0
    %755 = vmatpush1.bf16.msra.mxu0 %v489
    %756 = vmatprep.subr.bf16.mxu0 0
    %757 = vmatpush1.bf16.msra.mxu0 %v490
    %758 = vmatprep.subr.bf16.mxu0 0
    %759 = vmatpush1.bf16.msra.mxu0 %v491
    %760 = vmatprep.subr.bf16.mxu0 0
    %761 = vmatpush1.bf16.msra.mxu0 %v492
    %762 = vmatprep.subr.bf16.mxu0 0
    %763 = vmatpush1.bf16.msra.mxu0 %v493
    %764 = vmatprep.subr.bf16.mxu0 0
    %765 = vmatpush1.bf16.msra.mxu0 %v494
    %766 = vmatprep.subr.bf16.mxu0 0
    %767 = vmatpush1.bf16.msra.mxu0 %v495
    %768 = vmatprep.subr.bf16.mxu0 0
    %769 = vmatpush1.bf16.msra.mxu0 0
    %770 = vmatprep.subr.bf16.mxu0 0
    %771 = vmatpush1.bf16.msra.mxu0 0
    %772 = vmatprep.subr.bf16.mxu0 0
    %773 = vmatpush1.bf16.msra.mxu0 0
    %774 = vmatprep.subr.bf16.mxu0 0
    %775 = vmatpush1.bf16.msra.mxu0 0
    %776 = vmatprep.subr.bf16.mxu0 0
    %777 = vmatpush1.bf16.msra.mxu0 0
    %778 = vmatprep.subr.bf16.mxu0 0
    %779 = vmatpush1.bf16.msra.mxu0 0
    %780 = vmatprep.subr.bf16.mxu0 0
    %781 = vmatpush1.bf16.msra.mxu0 0
    %782 = vmatprep.subr.bf16.mxu0 0
    %783 = vmatpush1.bf16.msra.mxu0 0
    %784 = vmatprep.mubr.bf16.mxu0 0
    %785 = vmatmul.mubr.bf16.gmra.mrb[0].mxu0 %v688
    %v786 = vpop.f32.mrb[0].mxu0
    %v787 = vadd.f32 0.0, %v786
    %v788 = vpop.f32.mrb[0].mxu0
    %v789 = vpop.f32.mrb[0].mxu0
    %v790 = vadd.f32 0.0, %v789
    %v791 = vpop.f32.mrb[0].mxu0
    %792 = vmatprep.mubr.bf16.mxu0 0
    %793 = vmatmul.mubr.bf16.gmra.mrb[0].mxu0 %v689
    %v794 = vpop.f32.mrb[0].mxu0
    %v795 = vadd.f32 0.0, %v794
    %v796 = vpop.f32.mrb[0].mxu0
    %v797 = vpop.f32.mrb[0].mxu0
    %v798 = vadd.f32 0.0, %v797
    %v799 = vpop.f32.mrb[0].mxu0
    %800 = vmatprep.mubr.bf16.mxu0 0
    %801 = vmatmul.mubr.bf16.gmra.mrb[0].mxu0 %v690
    %v802 = vpop.f32.mrb[0].mxu0
    %v803 = vadd.f32 0.0, %v802
    %v804 = vpop.f32.mrb[0].mxu0
    %v805 = vpop.f32.mrb[0].mxu0
    %v806 = vadd.f32 0.0, %v805
    %v807 = vpop.f32.mrb[0].mxu0
    %808 = vmatprep.mubr.bf16.mxu0 0
    %809 = vmatmul.mubr.bf16.gmra.mrb[0].mxu0 %v691
    %v810 = vpop.f32.mrb[0].mxu0
    %v811 = vadd.f32 0.0, %v810
    %v812 = vpop.f32.mrb[0].mxu0
    %v813 = vpop.f32.mrb[0].mxu0
    %v814 = vadd.f32 0.0, %v813
    %v815 = vpop.f32.mrb[0].mxu0
    %816 = vmatprep.mubr.bf16.mxu0 0
    %817 = vmatmul.mubr.bf16.gmra.mrb[0].mxu0 %v692
    %v818 = vpop.f32.mrb[0].mxu0
    %v819 = vadd.f32 0.0, %v818
    %v820 = vpop.f32.mrb[0].mxu0
    %v821 = vpop.f32.mrb[0].mxu0
    %v822 = vadd.f32 0.0, %v821
    %v823 = vpop.f32.mrb[0].mxu0
    %824 = vmatprep.mubr.bf16.mxu0 0
    %825 = vmatmul.mubr.bf16.gmra.mrb[0].mxu0 %v693
    %v826 = vpop.f32.mrb[0].mxu0
    %v827 = vadd.f32 0.0, %v826
    %v828 = vpop.f32.mrb[0].mxu0
    %v829 = vpop.f32.mrb[0].mxu0
    %v830 = vadd.f32 0.0, %v829
    %v831 = vpop.f32.mrb[0].mxu0
    %832 = vmatprep.mubr.bf16.mxu0 0
    %833 = vmatmul.mubr.bf16.gmra.mrb[0].mxu0 %v694
    %v834 = vpop.f32.mrb[0].mxu0
    %v835 = vadd.f32 0.0, %v834
    %v836 = vpop.f32.mrb[0].mxu0
    %v837 = vpop.f32.mrb[0].mxu0
    %v838 = vadd.f32 0.0, %v837
    %v839 = vpop.f32.mrb[0].mxu0
    %840 = vmatprep.mubr.bf16.mxu0 0
    %841 = vmatmul.mubr.bf16.gmra.mrb[0].mxu0 %v695
    %v842 = vpop.f32.mrb[0].mxu0
    %v843 = vadd.f32 0.0, %v842
    %v844 = vpop.f32.mrb[0].mxu0
    %v845 = vpop.f32.mrb[0].mxu0
    %v846 = vadd.f32 0.0, %v845
    %v847 = vpop.f32.mrb[0].mxu0
    %848 = vmatprep.mubr.bf16.mxu0 0
    %849 = vmatmul.mubr.bf16.gmra.mrb[0].mxu0 %v696
    %v850 = vpop.f32.mrb[0].mxu0
    %v851 = vadd.f32 0.0, %v850
    %v852 = vpop.f32.mrb[0].mxu0
    %v853 = vpop.f32.mrb[0].mxu0
    %v854 = vadd.f32 0.0, %v853
    %v855 = vpop.f32.mrb[0].mxu0
    %856 = vmatprep.mubr.bf16.mxu0 0
    %857 = vmatmul.mubr.bf16.gmra.mrb[0].mxu0 %v697
    %v858 = vpop.f32.mrb[0].mxu0
    %v859 = vadd.f32 0.0, %v858
    %v860 = vpop.f32.mrb[0].mxu0
    %v861 = vpop.f32.mrb[0].mxu0
    %v862 = vadd.f32 0.0, %v861
    %v863 = vpop.f32.mrb[0].mxu0
    %864 = vmatprep.mubr.bf16.mxu0 0
    %865 = vmatmul.mubr.bf16.gmra.mrb[0].mxu0 %v698
    %v866 = vpop.f32.mrb[0].mxu0
    %v867 = vadd.f32 0.0, %v866
    %v868 = vpop.f32.mrb[0].mxu0
    %v869 = vpop.f32.mrb[0].mxu0
    %v870 = vadd.f32 0.0, %v869
    %v871 = vpop.f32.mrb[0].mxu0
    %872 = vmatprep.mubr.bf16.mxu0 0
    %873 = vmatmul.mubr.bf16.gmra.mrb[0].mxu0 %v699
    %v874 = vpop.f32.mrb[0].mxu0
    %v875 = vadd.f32 0.0, %v874
    %v876 = vpop.f32.mrb[0].mxu0
    %v877 = vpop.f32.mrb[0].mxu0
    %v878 = vadd.f32 0.0, %v877
    %v879 = vpop.f32.mrb[0].mxu0
    %880 = vmatprep.mubr.bf16.mxu0 0
    %881 = vmatmul.mubr.bf16.gmra.mrb[0].mxu0 %v700
    %v882 = vpop.f32.mrb[0].mxu0
    %v883 = vadd.f32 0.0, %v882
    %v884 = vpop.f32.mrb[0].mxu0
    %v885 = vpop.f32.mrb[0].mxu0
    %v886 = vadd.f32 0.0, %v885
    %v887 = vpop.f32.mrb[0].mxu0
    %888 = vmatprep.mubr.bf16.mxu0 0
    %889 = vmatmul.mubr.bf16.gmra.mrb[0].mxu0 %v701
    %v890 = vpop.f32.mrb[0].mxu0
    %v891 = vadd.f32 0.0, %v890
    %v892 = vpop.f32.mrb[0].mxu0
    %v893 = vpop.f32.mrb[0].mxu0
    %v894 = vadd.f32 0.0, %v893
    %v895 = vpop.f32.mrb[0].mxu0
    %896 = vmatprep.mubr.bf16.mxu0 0
    %897 = vmatmul.mubr.bf16.gmra.mrb[0].mxu0 %v702
    %v898 = vpop.f32.mrb[0].mxu0
    %v899 = vadd.f32 0.0, %v898
    %v900 = vpop.f32.mrb[0].mxu0
    %v901 = vpop.f32.mrb[0].mxu0
    %v902 = vadd.f32 0.0, %v901
    %v903 = vpop.f32.mrb[0].mxu0
    %904 = vmatprep.mubr.bf16.mxu0 0
    %905 = vmatmul.mubr.bf16.gmra.mrb[0].mxu0 %v703
    %v906 = vpop.f32.mrb[0].mxu0
    %v907 = vadd.f32 0.0, %v906
    %v908 = vpop.f32.mrb[0].mxu0
    %v909 = vpop.f32.mrb[0].mxu0
    %v910 = vadd.f32 0.0, %v909
    %v911 = vpop.f32.mrb[0].mxu0
    %912 = vmatprep.mubr.bf16.mxu0 0
    %913 = vmatmul.mubr.bf16.gmra.mrb[0].mxu0 %v704
    %v914 = vpop.f32.mrb[0].mxu0
    %v915 = vadd.f32 0.0, %v914
    %v916 = vpop.f32.mrb[0].mxu0
    %v917 = vpop.f32.mrb[0].mxu0
    %v918 = vadd.f32 0.0, %v917
    %v919 = vpop.f32.mrb[0].mxu0
    %920 = vmatprep.mubr.bf16.mxu0 0
    %921 = vmatmul.mubr.bf16.gmra.mrb[0].mxu0 %v705
    %v922 = vpop.f32.mrb[0].mxu0
    %v923 = vadd.f32 0.0, %v922
    %v924 = vpop.f32.mrb[0].mxu0
    %v925 = vpop.f32.mrb[0].mxu0
    %v926 = vadd.f32 0.0, %v925
    %v927 = vpop.f32.mrb[0].mxu0
    %928 = vmatprep.mubr.bf16.mxu0 0
    %929 = vmatmul.mubr.bf16.gmra.mrb[0].mxu0 %v706
    %v930 = vpop.f32.mrb[0].mxu0
    %v931 = vadd.f32 0.0, %v930
    %v932 = vpop.f32.mrb[0].mxu0
    %v933 = vpop.f32.mrb[0].mxu0
    %v934 = vadd.f32 0.0, %v933
    %v935 = vpop.f32.mrb[0].mxu0
    %936 = vmatprep.mubr.bf16.mxu0 0
    %937 = vmatmul.mubr.bf16.gmra.mrb[0].mxu0 %v707
    %v938 = vpop.f32.mrb[0].mxu0
    %v939 = vadd.f32 0.0, %v938
    %v940 = vpop.f32.mrb[0].mxu0
    %v941 = vpop.f32.mrb[0].mxu0
    %v942 = vadd.f32 0.0, %v941
    %v943 = vpop.f32.mrb[0].mxu0
    %944 = vmatprep.mubr.bf16.mxu0 0
    %945 = vmatmul.mubr.bf16.gmra.mrb[0].mxu0 %v708
    %v946 = vpop.f32.mrb[0].mxu0
    %v947 = vadd.f32 0.0, %v946
    %v948 = vpop.f32.mrb[0].mxu0
    %v949 = vpop.f32.mrb[0].mxu0
    %v950 = vadd.f32 0.0, %v949
    %v951 = vpop.f32.mrb[0].mxu0
    %952 = vmatprep.mubr.bf16.mxu0 0
    %953 = vmatmul.mubr.bf16.gmra.mrb[0].mxu0 %v709
    %v954 = vpop.f32.mrb[0].mxu0
    %v955 = vadd.f32 0.0, %v954
    %v956 = vpop.f32.mrb[0].mxu0
    %v957 = vpop.f32.mrb[0].mxu0
    %v958 = vadd.f32 0.0, %v957
    %v959 = vpop.f32.mrb[0].mxu0
    %960 = vmatprep.mubr.bf16.mxu0 0
    %961 = vmatmul.mubr.bf16.gmra.mrb[0].mxu0 %v710
    %v962 = vpop.f32.mrb[0].mxu0
    %v963 = vadd.f32 0.0, %v962
    %v964 = vpop.f32.mrb[0].mxu0
    %v965 = vpop.f32.mrb[0].mxu0
    %v966 = vadd.f32 0.0, %v965
    %v967 = vpop.f32.mrb[0].mxu0
    %968 = vmatprep.mubr.bf16.mxu0 0
    %969 = vmatmul.mubr.bf16.gmra.mrb[0].mxu0 %v711
    %v970 = vpop.f32.mrb[0].mxu0
    %v971 = vadd.f32 0.0, %v970
    %v972 = vpop.f32.mrb[0].mxu0
    %v973 = vpop.f32.mrb[0].mxu0
    %v974 = vadd.f32 0.0, %v973
    %v975 = vpop.f32.mrb[0].mxu0
    %976 = vmatprep.mubr.bf16.mxu0 0
    %977 = vmatmul.mubr.bf16.gmra.mrb[0].mxu0 %v712
    %v978 = vpop.f32.mrb[0].mxu0
    %v979 = vadd.f32 0.0, %v978
    %v980 = vpop.f32.mrb[0].mxu0
    %v981 = vpop.f32.mrb[0].mxu0
    %v982 = vadd.f32 0.0, %v981
    %v983 = vpop.f32.mrb[0].mxu0
    %984 = vmatprep.mubr.bf16.mxu0 0
    %985 = vmatmul.mubr.bf16.gmra.mrb[0].mxu0 %v713
    %v986 = vpop.f32.mrb[0].mxu0
    %v987 = vadd.f32 0.0, %v986
    %v988 = vpop.f32.mrb[0].mxu0
    %v989 = vpop.f32.mrb[0].mxu0
    %v990 = vadd.f32 0.0, %v989
    %v991 = vpop.f32.mrb[0].mxu0
    %992 = vmatprep.mubr.bf16.mxu0 0
    %993 = vmatmul.mubr.bf16.gmra.mrb[0].mxu0 %v714
    %v994 = vpop.f32.mrb[0].mxu0
    %v995 = vadd.f32 0.0, %v994
    %v996 = vpop.f32.mrb[0].mxu0
    %v997 = vpop.f32.mrb[0].mxu0
    %v998 = vadd.f32 0.0, %v997
    %v999 = vpop.f32.mrb[0].mxu0
    %1000 = vmatprep.mubr.bf16.mxu0 0
    %1001 = vmatmul.mubr.bf16.gmra.mrb[0].mxu0 %v715
    %v1002 = vpop.f32.mrb[0].mxu0
    %v1003 = vadd.f32 0.0, %v1002
    %v1004 = vpop.f32.mrb[0].mxu0
    %v1005 = vpop.f32.mrb[0].mxu0
    %v1006 = vadd.f32 0.0, %v1005
    %v1007 = vpop.f32.mrb[0].mxu0
    %1008 = vmatprep.mubr.bf16.mxu0 0
    %1009 = vmatmul.mubr.bf16.gmra.mrb[0].mxu0 %v716
    %v1010 = vpop.f32.mrb[0].mxu0
    %v1011 = vadd.f32 0.0, %v1010
    %v1012 = vpop.f32.mrb[0].mxu0
    %v1013 = vpop.f32.mrb[0].mxu0
    %v1014 = vadd.f32 0.0, %v1013
    %v1015 = vpop.f32.mrb[0].mxu0
    %1016 = vmatprep.mubr.bf16.mxu0 0
    %1017 = vmatmul.mubr.bf16.gmra.mrb[0].mxu0 %v717
    %v1018 = vpop.f32.mrb[0].mxu0
    %v1019 = vadd.f32 0.0, %v1018
    %v1020 = vpop.f32.mrb[0].mxu0
    %v1021 = vpop.f32.mrb[0].mxu0
    %v1022 = vadd.f32 0.0, %v1021
    %v1023 = vpop.f32.mrb[0].mxu0
    %1024 = vmatprep.mubr.bf16.mxu0 0
    %1025 = vmatmul.mubr.bf16.gmra.mrb[0].mxu0 %v718
    %v1026 = vpop.f32.mrb[0].mxu0
    %v1027 = vadd.f32 0.0, %v1026
    %v1028 = vpop.f32.mrb[0].mxu0
    %v1029 = vpop.f32.mrb[0].mxu0
    %v1030 = vadd.f32 0.0, %v1029
    %v1031 = vpop.f32.mrb[0].mxu0
    %1032 = vmatprep.mubr.bf16.mxu0 0
    %1033 = vmatmul.mubr.bf16.gmra.mrb[0].mxu0 %v719
    %v1034 = vpop.f32.mrb[0].mxu0
    %v1035 = vadd.f32 0.0, %v1034
    %v1036 = vpop.f32.mrb[0].mxu0
    %v1037 = vpop.f32.mrb[0].mxu0
    %v1038 = vadd.f32 0.0, %v1037
    %v1039 = vpop.f32.mrb[0].mxu0
    %1040 = vdwg.mxu0
    %v1041 = vld [vmem:[%s2] sm:$0xff]
    %v1042 = vld [vmem:[%s2 + $0x8] sm:$0xff]
    %v1043 = vld [vmem:[%s2 + $0x10] sm:$0xff]
    %v1044 = vld [vmem:[%s2 + $0x18] sm:$0xff]
    %v1045 = vld [vmem:[%s2 + $0x20] sm:$0xff]
    %v1046 = vld [vmem:[%s2 + $0x28] sm:$0xff]
    %v1047 = vld [vmem:[%s2 + $0x30] sm:$0xff]
    %v1048 = vld [vmem:[%s2 + $0x38] sm:$0xff]
    %v1049 = vld [vmem:[%s2 + $0x40] sm:$0xff]
    %v1050 = vld [vmem:[%s2 + $0x48] sm:$0xff]
    %v1051 = vld [vmem:[%s2 + $0x50] sm:$0xff]
    %v1052 = vld [vmem:[%s2 + $0x58] sm:$0xff]
    %v1053 = vld [vmem:[%s2 + $0x60] sm:$0xff]
    %v1054 = vld [vmem:[%s2 + $0x68] sm:$0xff]
    %v1055 = vld [vmem:[%s2 + $0x70] sm:$0xff]
    %v1056 = vld [vmem:[%s2 + $0x78] sm:$0xff]
    %v1057 = vld [vmem:[%s2 + $0x80] sm:$0xff]
    %v1058 = vld [vmem:[%s2 + $0x88] sm:$0xff]
    %v1059 = vld [vmem:[%s2 + $0x90] sm:$0xff]
    %v1060 = vld [vmem:[%s2 + $0x98] sm:$0xff]
    %v1061 = vld [vmem:[%s2 + $0xa0] sm:$0xff]
    %v1062 = vld [vmem:[%s2 + $0xa8] sm:$0xff]
    %v1063 = vld [vmem:[%s2 + $0xb0] sm:$0xff]
    %v1064 = vld [vmem:[%s2 + $0xb8] sm:$0xff]
    %v1065 = vld [vmem:[%s2 + $0xc0] sm:$0xff]
    %v1066 = vld [vmem:[%s2 + $0xc8] sm:$0xff]
    %v1067 = vld [vmem:[%s2 + $0xd0] sm:$0xff]
    %v1068 = vld [vmem:[%s2 + $0xd8] sm:$0xff]
    %v1069 = vld [vmem:[%s2 + $0xe0] sm:$0xff]
    %v1070 = vld [vmem:[%s2 + $0xe8] sm:$0xff]
    %v1071 = vld [vmem:[%s2 + $0xf0] sm:$0xff]
    %v1072 = vld [vmem:[%s2 + $0xf8] sm:$0xff]
    %v1073 = vld [vmem:[%s2 + $0x100] sm:$0xff]
    %v1074 = vld [vmem:[%s2 + $0x108] sm:$0xff]
    %v1075 = vld [vmem:[%s2 + $0x110] sm:$0xff]
    %v1076 = vld [vmem:[%s2 + $0x118] sm:$0xff]
    %v1077 = vld [vmem:[%s2 + $0x120] sm:$0xff]
    %v1078 = vld [vmem:[%s2 + $0x128] sm:$0xff]
    %v1079 = vld [vmem:[%s2 + $0x130] sm:$0xff]
    %v1080 = vld [vmem:[%s2 + $0x138] sm:$0xff]
    %v1081 = vld [vmem:[%s2 + $0x140] sm:$0xff]
    %v1082 = vld [vmem:[%s2 + $0x148] sm:$0xff]
    %v1083 = vld [vmem:[%s2 + $0x150] sm:$0xff]
    %v1084 = vld [vmem:[%s2 + $0x158] sm:$0xff]
    %v1085 = vld [vmem:[%s2 + $0x160] sm:$0xff]
    %v1086 = vld [vmem:[%s2 + $0x168] sm:$0xff]
    %v1087 = vld [vmem:[%s2 + $0x170] sm:$0xff]
    %v1088 = vld [vmem:[%s2 + $0x178] sm:$0xff]
    %v1089 = vld [vmem:[%s2 + $0x180] sm:$0xff]
    %v1090 = vld [vmem:[%s2 + $0x188] sm:$0xff]
    %v1091 = vld [vmem:[%s2 + $0x190] sm:$0xff]
    %v1092 = vld [vmem:[%s2 + $0x198] sm:$0xff]
    %v1093 = vld [vmem:[%s2 + $0x1a0] sm:$0xff]
    %v1094 = vld [vmem:[%s2 + $0x1a8] sm:$0xff]
    %v1095 = vld [vmem:[%s2 + $0x1b0] sm:$0xff]
    %v1096 = vld [vmem:[%s2 + $0x1b8] sm:$0xff]
    %v1097 = vld [vmem:[%s2 + $0x1c0] sm:$0xff]
    %v1098 = vld [vmem:[%s2 + $0x1c8] sm:$0xff]
    %v1099 = vld [vmem:[%s2 + $0x1d0] sm:$0xff]
    %v1100 = vld [vmem:[%s2 + $0x1d8] sm:$0xff]
    %v1101 = vld [vmem:[%s2 + $0x1e0] sm:$0xff]
    %v1102 = vld [vmem:[%s2 + $0x1e8] sm:$0xff]
    %v1103 = vld [vmem:[%s2 + $0x1f0] sm:$0xff]
    %v1104 = vld [vmem:[%s2 + $0x1f8] sm:$0xff]
    %1106 = vset.pattern.permute.xlu0 0
    %1107 = vperm.xlu0 %1106, %v1041
    %v1108 = vpop.permute.xlu0 %1107
    %1111 = vset.pattern.permute.xlu0 0
    %1112 = vperm.xlu0 %1111, %v1042
    %v1113 = vpop.permute.xlu0 %1112
    %1116 = vset.pattern.permute.xlu0 0
    %1117 = vperm.xlu0 %1116, %v1043
    %v1118 = vpop.permute.xlu0 %1117
    %1121 = vset.pattern.permute.xlu0 0
    %1122 = vperm.xlu0 %1121, %v1044
    %v1123 = vpop.permute.xlu0 %1122
    %1126 = vset.pattern.permute.xlu0 0
    %1127 = vperm.xlu0 %1126, %v1045
    %v1128 = vpop.permute.xlu0 %1127
    %1131 = vset.pattern.permute.xlu0 0
    %1132 = vperm.xlu0 %1131, %v1046
    %v1133 = vpop.permute.xlu0 %1132
    %1136 = vset.pattern.permute.xlu0 0
    %1137 = vperm.xlu0 %1136, %v1047
    %v1138 = vpop.permute.xlu0 %1137
    %1141 = vset.pattern.permute.xlu0 0
    %1142 = vperm.xlu0 %1141, %v1048
    %v1143 = vpop.permute.xlu0 %1142
    %1146 = vset.pattern.permute.xlu0 0
    %1147 = vperm.xlu0 %1146, %v1049
    %v1148 = vpop.permute.xlu0 %1147
    %1151 = vset.pattern.permute.xlu0 0
    %1152 = vperm.xlu0 %1151, %v1050
    %v1153 = vpop.permute.xlu0 %1152
    %1156 = vset.pattern.permute.xlu0 0
    %1157 = vperm.xlu0 %1156, %v1051
    %v1158 = vpop.permute.xlu0 %1157
    %1161 = vset.pattern.permute.xlu0 0
    %1162 = vperm.xlu0 %1161, %v1052
    %v1163 = vpop.permute.xlu0 %1162
    %1166 = vset.pattern.permute.xlu0 0
    %1167 = vperm.xlu0 %1166, %v1053
    %v1168 = vpop.permute.xlu0 %1167
    %1171 = vset.pattern.permute.xlu0 0
    %1172 = vperm.xlu0 %1171, %v1054
    %v1173 = vpop.permute.xlu0 %1172
    %1176 = vset.pattern.permute.xlu0 0
    %1177 = vperm.xlu0 %1176, %v1055
    %v1178 = vpop.permute.xlu0 %1177
    %1181 = vset.pattern.permute.xlu0 0
    %1182 = vperm.xlu0 %1181, %v1056
    %v1183 = vpop.permute.xlu0 %1182
    %1186 = vset.pattern.permute.xlu0 0
    %1187 = vperm.xlu0 %1186, %v1057
    %v1188 = vpop.permute.xlu0 %1187
    %1191 = vset.pattern.permute.xlu0 0
    %1192 = vperm.xlu0 %1191, %v1058
    %v1193 = vpop.permute.xlu0 %1192
    %1196 = vset.pattern.permute.xlu0 0
    %1197 = vperm.xlu0 %1196, %v1059
    %v1198 = vpop.permute.xlu0 %1197
    %1201 = vset.pattern.permute.xlu0 0
    %1202 = vperm.xlu0 %1201, %v1060
    %v1203 = vpop.permute.xlu0 %1202
    %1206 = vset.pattern.permute.xlu0 0
    %1207 = vperm.xlu0 %1206, %v1061
    %v1208 = vpop.permute.xlu0 %1207
    %1211 = vset.pattern.permute.xlu0 0
    %1212 = vperm.xlu0 %1211, %v1062
    %v1213 = vpop.permute.xlu0 %1212
    %1216 = vset.pattern.permute.xlu0 0
    %1217 = vperm.xlu0 %1216, %v1063
    %v1218 = vpop.permute.xlu0 %1217
    %1221 = vset.pattern.permute.xlu0 0
    %1222 = vperm.xlu0 %1221, %v1064
    %v1223 = vpop.permute.xlu0 %1222
    %1226 = vset.pattern.permute.xlu0 0
    %1227 = vperm.xlu0 %1226, %v1065
    %v1228 = vpop.permute.xlu0 %1227
    %1231 = vset.pattern.permute.xlu0 0
    %1232 = vperm.xlu0 %1231, %v1066
    %v1233 = vpop.permute.xlu0 %1232
    %1236 = vset.pattern.permute.xlu0 0
    %1237 = vperm.xlu0 %1236, %v1067
    %v1238 = vpop.permute.xlu0 %1237
    %1241 = vset.pattern.permute.xlu0 0
    %1242 = vperm.xlu0 %1241, %v1068
    %v1243 = vpop.permute.xlu0 %1242
    %1246 = vset.pattern.permute.xlu0 0
    %1247 = vperm.xlu0 %1246, %v1069
    %v1248 = vpop.permute.xlu0 %1247
    %1251 = vset.pattern.permute.xlu0 0
    %1252 = vperm.xlu0 %1251, %v1070
    %v1253 = vpop.permute.xlu0 %1252
    %1256 = vset.pattern.permute.xlu0 0
    %1257 = vperm.xlu0 %1256, %v1071
    %v1258 = vpop.permute.xlu0 %1257
    %1261 = vset.pattern.permute.xlu0 0
    %1262 = vperm.xlu0 %1261, %v1072
    %v1263 = vpop.permute.xlu0 %1262
    %1266 = vset.pattern.permute.xlu0 0
    %1267 = vperm.xlu0 %1266, %v1073
    %v1268 = vpop.permute.xlu0 %1267
    %1271 = vset.pattern.permute.xlu0 0
    %1272 = vperm.xlu0 %1271, %v1074
    %v1273 = vpop.permute.xlu0 %1272
    %1276 = vset.pattern.permute.xlu0 0
    %1277 = vperm.xlu0 %1276, %v1075
    %v1278 = vpop.permute.xlu0 %1277
    %1281 = vset.pattern.permute.xlu0 0
    %1282 = vperm.xlu0 %1281, %v1076
    %v1283 = vpop.permute.xlu0 %1282
    %1286 = vset.pattern.permute.xlu0 0
    %1287 = vperm.xlu0 %1286, %v1077
    %v1288 = vpop.permute.xlu0 %1287
    %1291 = vset.pattern.permute.xlu0 0
    %1292 = vperm.xlu0 %1291, %v1078
    %v1293 = vpop.permute.xlu0 %1292
    %1296 = vset.pattern.permute.xlu0 0
    %1297 = vperm.xlu0 %1296, %v1079
    %v1298 = vpop.permute.xlu0 %1297
    %1301 = vset.pattern.permute.xlu0 0
    %1302 = vperm.xlu0 %1301, %v1080
    %v1303 = vpop.permute.xlu0 %1302
    %1306 = vset.pattern.permute.xlu0 0
    %1307 = vperm.xlu0 %1306, %v1081
    %v1308 = vpop.permute.xlu0 %1307
    %1311 = vset.pattern.permute.xlu0 0
    %1312 = vperm.xlu0 %1311, %v1082
    %v1313 = vpop.permute.xlu0 %1312
    %1316 = vset.pattern.permute.xlu0 0
    %1317 = vperm.xlu0 %1316, %v1083
    %v1318 = vpop.permute.xlu0 %1317
    %1321 = vset.pattern.permute.xlu0 0
    %1322 = vperm.xlu0 %1321, %v1084
    %v1323 = vpop.permute.xlu0 %1322
    %1326 = vset.pattern.permute.xlu0 0
    %1327 = vperm.xlu0 %1326, %v1085
    %v1328 = vpop.permute.xlu0 %1327
    %1331 = vset.pattern.permute.xlu0 0
    %1332 = vperm.xlu0 %1331, %v1086
    %v1333 = vpop.permute.xlu0 %1332
    %1336 = vset.pattern.permute.xlu0 0
    %1337 = vperm.xlu0 %1336, %v1087
    %v1338 = vpop.permute.xlu0 %1337
    %1341 = vset.pattern.permute.xlu0 0
    %1342 = vperm.xlu0 %1341, %v1088
    %v1343 = vpop.permute.xlu0 %1342
    %1346 = vset.pattern.permute.xlu0 0
    %1347 = vperm.xlu0 %1346, %v1089
    %v1348 = vpop.permute.xlu0 %1347
    %1351 = vset.pattern.permute.xlu0 0
    %1352 = vperm.xlu0 %1351, %v1090
    %v1353 = vpop.permute.xlu0 %1352
    %1356 = vset.pattern.permute.xlu0 0
    %1357 = vperm.xlu0 %1356, %v1091
    %v1358 = vpop.permute.xlu0 %1357
    %1361 = vset.pattern.permute.xlu0 0
    %1362 = vperm.xlu0 %1361, %v1092
    %v1363 = vpop.permute.xlu0 %1362
    %1366 = vset.pattern.permute.xlu0 0
    %1367 = vperm.xlu0 %1366, %v1093
    %v1368 = vpop.permute.xlu0 %1367
    %1371 = vset.pattern.permute.xlu0 0
    %1372 = vperm.xlu0 %1371, %v1094
    %v1373 = vpop.permute.xlu0 %1372
    %1376 = vset.pattern.permute.xlu0 0
    %1377 = vperm.xlu0 %1376, %v1095
    %v1378 = vpop.permute.xlu0 %1377
    %1381 = vset.pattern.permute.xlu0 0
    %1382 = vperm.xlu0 %1381, %v1096
    %v1383 = vpop.permute.xlu0 %1382
    %1386 = vset.pattern.permute.xlu0 0
    %1387 = vperm.xlu0 %1386, %v1097
    %v1388 = vpop.permute.xlu0 %1387
    %1391 = vset.pattern.permute.xlu0 0
    %1392 = vperm.xlu0 %1391, %v1098
    %v1393 = vpop.permute.xlu0 %1392
    %1396 = vset.pattern.permute.xlu0 0
    %1397 = vperm.xlu0 %1396, %v1099
    %v1398 = vpop.permute.xlu0 %1397
    %1401 = vset.pattern.permute.xlu0 0
    %1402 = vperm.xlu0 %1401, %v1100
    %v1403 = vpop.permute.xlu0 %1402
    %1406 = vset.pattern.permute.xlu0 0
    %1407 = vperm.xlu0 %1406, %v1101
    %v1408 = vpop.permute.xlu0 %1407
    %1411 = vset.pattern.permute.xlu0 0
    %1412 = vperm.xlu0 %1411, %v1102
    %v1413 = vpop.permute.xlu0 %1412
    %1416 = vset.pattern.permute.xlu0 0
    %1417 = vperm.xlu0 %1416, %v1103
    %v1418 = vpop.permute.xlu0 %1417
    %1421 = vset.pattern.permute.xlu0 0
    %1422 = vperm.xlu0 %1421, %v1104
    %v1423 = vpop.permute.xlu0 %1422
    %v1425 = vmul.f32 %v787, %v1108
    %v1426 = vmul.f32 %v790, %v1113
    %v1427 = vmul.f32 %v795, %v1118
    %v1428 = vmul.f32 %v798, %v1123
    %v1429 = vmul.f32 %v803, %v1128
    %v1430 = vmul.f32 %v806, %v1133
    %v1431 = vmul.f32 %v811, %v1138
    %v1432 = vmul.f32 %v814, %v1143
    %v1433 = vmul.f32 %v819, %v1148
    %v1434 = vmul.f32 %v822, %v1153
    %v1435 = vmul.f32 %v827, %v1158
    %v1436 = vmul.f32 %v830, %v1163
    %v1437 = vmul.f32 %v835, %v1168
    %v1438 = vmul.f32 %v838, %v1173
    %v1439 = vmul.f32 %v843, %v1178
    %v1440 = vmul.f32 %v846, %v1183
    %v1441 = vmul.f32 %v851, %v1188
    %v1442 = vmul.f32 %v854, %v1193
    %v1443 = vmul.f32 %v859, %v1198
    %v1444 = vmul.f32 %v862, %v1203
    %v1445 = vmul.f32 %v867, %v1208
    %v1446 = vmul.f32 %v870, %v1213
    %v1447 = vmul.f32 %v875, %v1218
    %v1448 = vmul.f32 %v878, %v1223
    %v1449 = vmul.f32 %v883, %v1228
    %v1450 = vmul.f32 %v886, %v1233
    %v1451 = vmul.f32 %v891, %v1238
    %v1452 = vmul.f32 %v894, %v1243
    %v1453 = vmul.f32 %v899, %v1248
    %v1454 = vmul.f32 %v902, %v1253
    %v1455 = vmul.f32 %v907, %v1258
    %v1456 = vmul.f32 %v910, %v1263
    %v1457 = vmul.f32 %v915, %v1268
    %v1458 = vmul.f32 %v918, %v1273
    %v1459 = vmul.f32 %v923, %v1278
    %v1460 = vmul.f32 %v926, %v1283
    %v1461 = vmul.f32 %v931, %v1288
    %v1462 = vmul.f32 %v934, %v1293
    %v1463 = vmul.f32 %v939, %v1298
    %v1464 = vmul.f32 %v942, %v1303
    %v1465 = vmul.f32 %v947, %v1308
    %v1466 = vmul.f32 %v950, %v1313
    %v1467 = vmul.f32 %v955, %v1318
    %v1468 = vmul.f32 %v958, %v1323
    %v1469 = vmul.f32 %v963, %v1328
    %v1470 = vmul.f32 %v966, %v1333
    %v1471 = vmul.f32 %v971, %v1338
    %v1472 = vmul.f32 %v974, %v1343
    %v1473 = vmul.f32 %v979, %v1348
    %v1474 = vmul.f32 %v982, %v1353
    %v1475 = vmul.f32 %v987, %v1358
    %v1476 = vmul.f32 %v990, %v1363
    %v1477 = vmul.f32 %v995, %v1368
    %v1478 = vmul.f32 %v998, %v1373
    %v1479 = vmul.f32 %v1003, %v1378
    %v1480 = vmul.f32 %v1006, %v1383
    %v1481 = vmul.f32 %v1011, %v1388
    %v1482 = vmul.f32 %v1014, %v1393
    %v1483 = vmul.f32 %v1019, %v1398
    %v1484 = vmul.f32 %v1022, %v1403
    %v1485 = vmul.f32 %v1027, %v1408
    %v1486 = vmul.f32 %v1030, %v1413
    %v1487 = vmul.f32 %v1035, %v1418
    %v1488 = vmul.f32 %v1038, %v1423
    %v1489 = vpack.c.bf16 %v1426, %v1425
    %v1490 = vpack.c.bf16 %v1428, %v1427
    %v1491 = vpack.c.bf16 %v1430, %v1429
    %v1492 = vpack.c.bf16 %v1432, %v1431
    %v1493 = vpack.c.bf16 %v1434, %v1433
    %v1494 = vpack.c.bf16 %v1436, %v1435
    %v1495 = vpack.c.bf16 %v1438, %v1437
    %v1496 = vpack.c.bf16 %v1440, %v1439
    %v1497 = vpack.c.bf16 %v1442, %v1441
    %v1498 = vpack.c.bf16 %v1444, %v1443
    %v1499 = vpack.c.bf16 %v1446, %v1445
    %v1500 = vpack.c.bf16 %v1448, %v1447
    %v1501 = vpack.c.bf16 %v1450, %v1449
    %v1502 = vpack.c.bf16 %v1452, %v1451
    %v1503 = vpack.c.bf16 %v1454, %v1453
    %v1504 = vpack.c.bf16 %v1456, %v1455
    %v1505 = vpack.c.bf16 %v1458, %v1457
    %v1506 = vpack.c.bf16 %v1460, %v1459
    %v1507 = vpack.c.bf16 %v1462, %v1461
    %v1508 = vpack.c.bf16 %v1464, %v1463
    %v1509 = vpack.c.bf16 %v1466, %v1465
    %v1510 = vpack.c.bf16 %v1468, %v1467
    %v1511 = vpack.c.bf16 %v1470, %v1469
    %v1512 = vpack.c.bf16 %v1472, %v1471
    %v1513 = vpack.c.bf16 %v1474, %v1473
    %v1514 = vpack.c.bf16 %v1476, %v1475
    %v1515 = vpack.c.bf16 %v1478, %v1477
    %v1516 = vpack.c.bf16 %v1480, %v1479
    %v1517 = vpack.c.bf16 %v1482, %v1481
    %v1518 = vpack.c.bf16 %v1484, %v1483
    %v1519 = vpack.c.bf16 %v1486, %v1485
    %v1520 = vpack.c.bf16 %v1488, %v1487
    %1529 = vrot.lane.b32.xlu0 %v1489, 32
    %v1530 = vpop.permute.xlu0 %1529
    %1531 = vrot.lane.b32.xlu0 %v1490, 32
    %v1532 = vpop.permute.xlu0 %1531
    %1533 = vrot.lane.b32.xlu0 %v1491, 32
    %v1534 = vpop.permute.xlu0 %1533
    %1535 = vrot.lane.b32.xlu0 %v1492, 32
    %v1536 = vpop.permute.xlu0 %1535
    %1537 = vrot.lane.b32.xlu0 %v1493, 32
    %v1538 = vpop.permute.xlu0 %1537
    %1539 = vrot.lane.b32.xlu0 %v1494, 32
    %v1540 = vpop.permute.xlu0 %1539
    %1541 = vrot.lane.b32.xlu0 %v1495, 32
    %v1542 = vpop.permute.xlu0 %1541
    %1543 = vrot.lane.b32.xlu0 %v1496, 32
    %v1544 = vpop.permute.xlu0 %1543
    %1553 = vrot.lane.b32.xlu0 %v1497, 64
    %v1554 = vpop.permute.xlu0 %1553
    %1555 = vrot.lane.b32.xlu0 %v1498, 64
    %v1556 = vpop.permute.xlu0 %1555
    %1557 = vrot.lane.b32.xlu0 %v1499, 64
    %v1558 = vpop.permute.xlu0 %1557
    %1559 = vrot.lane.b32.xlu0 %v1500, 64
    %v1560 = vpop.permute.xlu0 %1559
    %1561 = vrot.lane.b32.xlu0 %v1501, 64
    %v1562 = vpop.permute.xlu0 %1561
    %1563 = vrot.lane.b32.xlu0 %v1502, 64
    %v1564 = vpop.permute.xlu0 %1563
    %1565 = vrot.lane.b32.xlu0 %v1503, 64
    %v1566 = vpop.permute.xlu0 %1565
    %1567 = vrot.lane.b32.xlu0 %v1504, 64
    %v1568 = vpop.permute.xlu0 %1567
    %1577 = vrot.lane.b32.xlu0 %v1505, 96
    %v1578 = vpop.permute.xlu0 %1577
    %1579 = vrot.lane.b32.xlu0 %v1506, 96
    %v1580 = vpop.permute.xlu0 %1579
    %1581 = vrot.lane.b32.xlu0 %v1507, 96
    %v1582 = vpop.permute.xlu0 %1581
    %1583 = vrot.lane.b32.xlu0 %v1508, 96
    %v1584 = vpop.permute.xlu0 %1583
    %1585 = vrot.lane.b32.xlu0 %v1509, 96
    %v1586 = vpop.permute.xlu0 %1585
    %1587 = vrot.lane.b32.xlu0 %v1510, 96
    %v1588 = vpop.permute.xlu0 %1587
    %1589 = vrot.lane.b32.xlu0 %v1511, 96
    %v1590 = vpop.permute.xlu0 %1589
    %1591 = vrot.lane.b32.xlu0 %v1512, 96
    %v1592 = vpop.permute.xlu0 %1591
    %v1595 = vsel %vm238, %v488, %v1530
    %v1598 = vsel %vm238, %v489, %v1532
    %v1601 = vsel %vm238, %v490, %v1534
    %v1604 = vsel %vm238, %v491, %v1536
    %v1607 = vsel %vm238, %v492, %v1538
    %v1610 = vsel %vm238, %v493, %v1540
    %v1613 = vsel %vm238, %v494, %v1542
    %v1616 = vsel %vm238, %v495, %v1544
    %vm1617 = vcmask 523264
    %v1619 = vsel %vm1617, %v1595, %v1554
    %v1621 = vsel %vm1617, %v1598, %v1556
    %v1623 = vsel %vm1617, %v1601, %v1558
    %v1625 = vsel %vm1617, %v1604, %v1560
    %v1627 = vsel %vm1617, %v1607, %v1562
    %v1629 = vsel %vm1617, %v1610, %v1564
    %v1631 = vsel %vm1617, %v1613, %v1566
    %v1633 = vsel %vm1617, %v1616, %v1568
    %vm1634 = vcmask 785408
    %v1636 = vsel %vm1634, %v1619, %v1578
    %v1639 = vsel %vm1634, %v1621, %v1580
    %v1642 = vsel %vm1634, %v1623, %v1582
    %v1645 = vsel %vm1634, %v1625, %v1584
    %v1648 = vsel %vm1634, %v1627, %v1586
    %v1651 = vsel %vm1634, %v1629, %v1588
    %v1654 = vsel %vm1634, %v1631, %v1590
    %v1657 = vsel %vm1634, %v1633, %v1592
    %v1659 = vld [vmem:[%s5] sm:$0xf]
    %v1660 = vld [vmem:[%s5 + $0x4] sm:$0xf]
    %v1661 = vld [vmem:[%s5 + $0x8] sm:$0xf]
    %v1662 = vld [vmem:[%s5 + $0xc] sm:$0xf]
    %v1663 = vld [vmem:[%s5 + $0x10] sm:$0xf]
    %v1664 = vld [vmem:[%s5 + $0x14] sm:$0xf]
    %v1665 = vld [vmem:[%s5 + $0x18] sm:$0xf]
    %v1666 = vld [vmem:[%s5 + $0x1c] sm:$0xf]
    %v1667 = vld [vmem:[%s5 + $0x20] sm:$0xf]
    %v1668 = vld [vmem:[%s5 + $0x24] sm:$0xf]
    %v1669 = vld [vmem:[%s5 + $0x28] sm:$0xf]
    %v1670 = vld [vmem:[%s5 + $0x2c] sm:$0xf]
    %v1671 = vld [vmem:[%s5 + $0x30] sm:$0xf]
    %v1672 = vld [vmem:[%s5 + $0x34] sm:$0xf]
    %v1673 = vld [vmem:[%s5 + $0x38] sm:$0xf]
    %v1674 = vld [vmem:[%s5 + $0x3c] sm:$0xf]
    %v1675 = vld [vmem:[%s5 + $0x40] sm:$0xf]
    %v1676 = vld [vmem:[%s5 + $0x44] sm:$0xf]
    %v1677 = vld [vmem:[%s5 + $0x48] sm:$0xf]
    %v1678 = vld [vmem:[%s5 + $0x4c] sm:$0xf]
    %v1679 = vlaneseq
    %v1680 = vshrl.u32 %v1679, 7
    %v1681 = vsub.s32 3, %v1680
    %v1682 = vrot.slane %v33, %v1681
    %v1703 = vunpack.c.l.b16 %v1659
    %v1704 = vunpack.c.l.b16 %v1660
    %v1705 = vunpack.c.l.b16 %v1661
    %v1706 = vunpack.c.l.b16 %v1662
    %v1707 = vunpack.c.l.b16 %v1663
    %v1708 = vunpack.c.l.b16 %v1664
    %v1709 = vunpack.c.l.b16 %v1665
    %v1710 = vunpack.c.l.b16 %v1666
    %v1711 = vunpack.c.l.b16 %v1667
    %v1712 = vunpack.c.l.b16 %v1668
    %v1713 = vunpack.c.l.b16 %v1669
    %v1714 = vunpack.c.l.b16 %v1670
    %v1715 = vunpack.c.l.b16 %v1671
    %v1716 = vunpack.c.l.b16 %v1672
    %v1717 = vunpack.c.l.b16 %v1673
    %v1718 = vunpack.c.l.b16 %v1674
    %v1719 = vunpack.c.l.b16 %v1675
    %v1720 = vunpack.c.l.b16 %v1676
    %v1721 = vunpack.c.l.b16 %v1677
    %v1722 = vunpack.c.l.b16 %v1678
    %v1723 = vpack.c.b16 %v1704, %v1703
    %v1724 = vpack.c.b16 %v1706, %v1705
    %v1725 = vpack.c.b16 %v1708, %v1707
    %v1726 = vpack.c.b16 %v1710, %v1709
    %v1727 = vpack.c.b16 %v1712, %v1711
    %v1728 = vpack.c.b16 %v1714, %v1713
    %v1729 = vpack.c.b16 %v1716, %v1715
    %v1730 = vpack.c.b16 %v1718, %v1717
    %v1731 = vpack.c.b16 %v1720, %v1719
    %v1732 = vpack.c.b16 %v1722, %v1721
    %v1744 = vsel %vm238, %v1513, 0
    %v1747 = vsel %vm238, %v1514, 0
    %v1750 = vsel %vm238, %v1515, 0
    %v1753 = vsel %vm238, %v1516, 0
    %v1756 = vsel %vm238, %v1517, 0
    %v1759 = vsel %vm238, %v1518, 0
    %v1762 = vsel %vm238, %v1519, 0
    %v1765 = vsel %vm238, %v1520, 0
    %1767 = vmatprep.subr.bf16.mxu0 0
    %1768 = vmatpush1.bf16.msra.mxu0 %v1723
    %1769 = vmatprep.subr.bf16.mxu0 0
    %1770 = vmatpush1.bf16.msra.mxu0 %v1724
    %1771 = vmatprep.subr.bf16.mxu0 0
    %1772 = vmatpush1.bf16.msra.mxu0 %v1725
    %1773 = vmatprep.subr.bf16.mxu0 0
    %1774 = vmatpush1.bf16.msra.mxu0 %v1726
    %1775 = vmatprep.subr.bf16.mxu0 0
    %1776 = vmatpush1.bf16.msra.mxu0 %v1727
    %1777 = vmatprep.subr.bf16.mxu0 0
    %1778 = vmatpush1.bf16.msra.mxu0 %v1728
    %1779 = vmatprep.subr.bf16.mxu0 0
    %1780 = vmatpush1.bf16.msra.mxu0 %v1729
    %1781 = vmatprep.subr.bf16.mxu0 0
    %1782 = vmatpush1.bf16.msra.mxu0 %v1730
    %1783 = vmatprep.subr.bf16.mxu0 0
    %1784 = vmatpush1.bf16.msra.mxu0 %v1731
    %1785 = vmatprep.subr.bf16.mxu0 0
    %1786 = vmatpush1.bf16.msra.mxu0 %v1732
    %1787 = vmatprep.subr.bf16.mxu0 0
    %1788 = vmatpush1.bf16.msra.mxu0 0
    %1789 = vmatprep.subr.bf16.mxu0 0
    %1790 = vmatpush1.bf16.msra.mxu0 0
    %1791 = vmatprep.subr.bf16.mxu0 0
    %1792 = vmatpush1.bf16.msra.mxu0 0
    %1793 = vmatprep.subr.bf16.mxu0 0
    %1794 = vmatpush1.bf16.msra.mxu0 0
    %1795 = vmatprep.subr.bf16.mxu0 0
    %1796 = vmatpush1.bf16.msra.mxu0 0
    %1797 = vmatprep.subr.bf16.mxu0 0
    %1798 = vmatpush1.bf16.msra.mxu0 0
    %1799 = vmatprep.mubr.bf16.mxu0 %v1744
    %1800 = vmatmul.mubr.bf16.gmra.mrb[0].mxu0 %v1636
    %v1801 = vpop.f32.mrb[0].mxu0
    %v1802 = vadd.f32 %v1682, %v1801
    %v1803 = vpop.f32.mrb[0].mxu0
    %v1804 = vpop.f32.mrb[0].mxu0
    %v1805 = vadd.f32 %v1682, %v1804
    %v1806 = vpop.f32.mrb[0].mxu0
    %1807 = vmatprep.mubr.bf16.mxu0 %v1747
    %1808 = vmatmul.mubr.bf16.gmra.mrb[0].mxu0 %v1639
    %v1809 = vpop.f32.mrb[0].mxu0
    %v1810 = vadd.f32 %v1682, %v1809
    %v1811 = vpop.f32.mrb[0].mxu0
    %v1812 = vpop.f32.mrb[0].mxu0
    %v1813 = vadd.f32 %v1682, %v1812
    %v1814 = vpop.f32.mrb[0].mxu0
    %1815 = vmatprep.mubr.bf16.mxu0 %v1750
    %1816 = vmatmul.mubr.bf16.gmra.mrb[0].mxu0 %v1642
    %v1817 = vpop.f32.mrb[0].mxu0
    %v1818 = vadd.f32 %v1682, %v1817
    %v1819 = vpop.f32.mrb[0].mxu0
    %v1820 = vpop.f32.mrb[0].mxu0
    %v1821 = vadd.f32 %v1682, %v1820
    %v1822 = vpop.f32.mrb[0].mxu0
    %1823 = vmatprep.mubr.bf16.mxu0 %v1753
    %1824 = vmatmul.mubr.bf16.gmra.mrb[0].mxu0 %v1645
    %v1825 = vpop.f32.mrb[0].mxu0
    %v1826 = vadd.f32 %v1682, %v1825
    %v1827 = vpop.f32.mrb[0].mxu0
    %v1828 = vpop.f32.mrb[0].mxu0
    %v1829 = vadd.f32 %v1682, %v1828
    %v1830 = vpop.f32.mrb[0].mxu0
    %1831 = vmatprep.mubr.bf16.mxu0 %v1756
    %1832 = vmatmul.mubr.bf16.gmra.mrb[0].mxu0 %v1648
    %v1833 = vpop.f32.mrb[0].mxu0
    %v1834 = vadd.f32 %v1682, %v1833
    %v1835 = vpop.f32.mrb[0].mxu0
    %v1836 = vpop.f32.mrb[0].mxu0
    %v1837 = vadd.f32 %v1682, %v1836
    %v1838 = vpop.f32.mrb[0].mxu0
    %1839 = vmatprep.mubr.bf16.mxu0 %v1759
    %1840 = vmatmul.mubr.bf16.gmra.mrb[0].mxu0 %v1651
    %v1841 = vpop.f32.mrb[0].mxu0
    %v1842 = vadd.f32 %v1682, %v1841
    %v1843 = vpop.f32.mrb[0].mxu0
    %v1844 = vpop.f32.mrb[0].mxu0
    %v1845 = vadd.f32 %v1682, %v1844
    %v1846 = vpop.f32.mrb[0].mxu0
    %1847 = vmatprep.mubr.bf16.mxu0 %v1762
    %1848 = vmatmul.mubr.bf16.gmra.mrb[0].mxu0 %v1654
    %v1849 = vpop.f32.mrb[0].mxu0
    %v1850 = vadd.f32 %v1682, %v1849
    %v1851 = vpop.f32.mrb[0].mxu0
    %v1852 = vpop.f32.mrb[0].mxu0
    %v1853 = vadd.f32 %v1682, %v1852
    %v1854 = vpop.f32.mrb[0].mxu0
    %1855 = vmatprep.mubr.bf16.mxu0 %v1765
    %1856 = vmatmul.mubr.bf16.gmra.mrb[0].mxu0 %v1657
    %v1857 = vpop.f32.mrb[0].mxu0
    %v1858 = vadd.f32 %v1682, %v1857
    %v1859 = vpop.f32.mrb[0].mxu0
    %v1860 = vpop.f32.mrb[0].mxu0
    %v1861 = vadd.f32 %v1682, %v1860
    %v1862 = vpop.f32.mrb[0].mxu0
    %1863 = vdwg.mxu0
    %v1864 = vsel %vm238, %v1802, 0.0
    %1865 = vadd.xlane.f32.xlu0 %v1864
    %v1866 = vpop.xlane.xlu0 %1865
    %v1867 = vsel %vm238, %v1805, 0.0
    %1868 = vadd.xlane.f32.xlu0 %v1867
    %v1869 = vpop.xlane.xlu0 %1868
    %v1870 = vsel %vm238, %v1810, 0.0
    %1871 = vadd.xlane.f32.xlu0 %v1870
    %v1872 = vpop.xlane.xlu0 %1871
    %v1873 = vsel %vm238, %v1813, 0.0
    %1874 = vadd.xlane.f32.xlu0 %v1873
    %v1875 = vpop.xlane.xlu0 %1874
    %v1876 = vsel %vm238, %v1818, 0.0
    %1877 = vadd.xlane.f32.xlu0 %v1876
    %v1878 = vpop.xlane.xlu0 %1877
    %v1879 = vsel %vm238, %v1821, 0.0
    %1880 = vadd.xlane.f32.xlu0 %v1879
    %v1881 = vpop.xlane.xlu0 %1880
    %v1882 = vsel %vm238, %v1826, 0.0
    %1883 = vadd.xlane.f32.xlu0 %v1882
    %v1884 = vpop.xlane.xlu0 %1883
    %v1885 = vsel %vm238, %v1829, 0.0
    %1886 = vadd.xlane.f32.xlu0 %v1885
    %v1887 = vpop.xlane.xlu0 %1886
    %v1888 = vsel %vm238, %v1834, 0.0
    %1889 = vadd.xlane.f32.xlu0 %v1888
    %v1890 = vpop.xlane.xlu0 %1889
    %v1891 = vsel %vm238, %v1837, 0.0
    %1892 = vadd.xlane.f32.xlu0 %v1891
    %v1893 = vpop.xlane.xlu0 %1892
    %v1894 = vsel %vm238, %v1842, 0.0
    %1895 = vadd.xlane.f32.xlu0 %v1894
    %v1896 = vpop.xlane.xlu0 %1895
    %v1897 = vsel %vm238, %v1845, 0.0
    %1898 = vadd.xlane.f32.xlu0 %v1897
    %v1899 = vpop.xlane.xlu0 %1898
    %v1900 = vsel %vm238, %v1850, 0.0
    %1901 = vadd.xlane.f32.xlu0 %v1900
    %v1902 = vpop.xlane.xlu0 %1901
    %v1903 = vsel %vm238, %v1853, 0.0
    %1904 = vadd.xlane.f32.xlu0 %v1903
    %v1905 = vpop.xlane.xlu0 %1904
    %v1906 = vsel %vm238, %v1858, 0.0
    %1907 = vadd.xlane.f32.xlu0 %v1906
    %v1908 = vpop.xlane.xlu0 %1907
    %v1909 = vsel %vm238, %v1861, 0.0
    %1910 = vadd.xlane.f32.xlu0 %v1909
    %v1911 = vpop.xlane.xlu0 %1910
    %v1912 = vmul.f32 %v1866, %v287
    %v1913 = vmul.f32 %v1869, %v287
    %v1914 = vmul.f32 %v1872, %v287
    %v1915 = vmul.f32 %v1875, %v287
    %v1916 = vmul.f32 %v1878, %v287
    %v1917 = vmul.f32 %v1881, %v287
    %v1918 = vmul.f32 %v1884, %v287
    %v1919 = vmul.f32 %v1887, %v287
    %v1920 = vmul.f32 %v1890, %v287
    %v1921 = vmul.f32 %v1893, %v287
    %v1922 = vmul.f32 %v1896, %v287
    %v1923 = vmul.f32 %v1899, %v287
    %v1924 = vmul.f32 %v1902, %v287
    %v1925 = vmul.f32 %v1905, %v287
    %v1926 = vmul.f32 %v1908, %v287
    %v1927 = vmul.f32 %v1911, %v287
    %v1928 = vsub.f32 %v1802, %v1912
    %v1929 = vsub.f32 %v1805, %v1913
    %v1930 = vsub.f32 %v1810, %v1914
    %v1931 = vsub.f32 %v1813, %v1915
    %v1932 = vsub.f32 %v1818, %v1916
    %v1933 = vsub.f32 %v1821, %v1917
    %v1934 = vsub.f32 %v1826, %v1918
    %v1935 = vsub.f32 %v1829, %v1919
    %v1936 = vsub.f32 %v1834, %v1920
    %v1937 = vsub.f32 %v1837, %v1921
    %v1938 = vsub.f32 %v1842, %v1922
    %v1939 = vsub.f32 %v1845, %v1923
    %v1940 = vsub.f32 %v1850, %v1924
    %v1941 = vsub.f32 %v1853, %v1925
    %v1942 = vsub.f32 %v1858, %v1926
    %v1943 = vsub.f32 %v1861, %v1927
    %v1944 = vmul.f32 %v1928, %v1928
    %v1945 = vmul.f32 %v1929, %v1929
    %v1946 = vmul.f32 %v1930, %v1930
    %v1947 = vmul.f32 %v1931, %v1931
    %v1948 = vmul.f32 %v1932, %v1932
    %v1949 = vmul.f32 %v1933, %v1933
    %v1950 = vmul.f32 %v1934, %v1934
    %v1951 = vmul.f32 %v1935, %v1935
    %v1952 = vmul.f32 %v1936, %v1936
    %v1953 = vmul.f32 %v1937, %v1937
    %v1954 = vmul.f32 %v1938, %v1938
    %v1955 = vmul.f32 %v1939, %v1939
    %v1956 = vmul.f32 %v1940, %v1940
    %v1957 = vmul.f32 %v1941, %v1941
    %v1958 = vmul.f32 %v1942, %v1942
    %v1959 = vmul.f32 %v1943, %v1943
    %v1960 = vsel %vm238, %v1944, 0.0
    %1961 = vadd.xlane.f32.xlu0 %v1960
    %v1962 = vpop.xlane.xlu0 %1961
    %v1963 = vsel %vm238, %v1945, 0.0
    %1964 = vadd.xlane.f32.xlu0 %v1963
    %v1965 = vpop.xlane.xlu0 %1964
    %v1966 = vsel %vm238, %v1946, 0.0
    %1967 = vadd.xlane.f32.xlu0 %v1966
    %v1968 = vpop.xlane.xlu0 %1967
    %v1969 = vsel %vm238, %v1947, 0.0
    %1970 = vadd.xlane.f32.xlu0 %v1969
    %v1971 = vpop.xlane.xlu0 %1970
    %v1972 = vsel %vm238, %v1948, 0.0
    %1973 = vadd.xlane.f32.xlu0 %v1972
    %v1974 = vpop.xlane.xlu0 %1973
    %v1975 = vsel %vm238, %v1949, 0.0
    %1976 = vadd.xlane.f32.xlu0 %v1975
    %v1977 = vpop.xlane.xlu0 %1976
    %v1978 = vsel %vm238, %v1950, 0.0
    %1979 = vadd.xlane.f32.xlu0 %v1978
    %v1980 = vpop.xlane.xlu0 %1979
    %v1981 = vsel %vm238, %v1951, 0.0
    %1982 = vadd.xlane.f32.xlu0 %v1981
    %v1983 = vpop.xlane.xlu0 %1982
    %v1984 = vsel %vm238, %v1952, 0.0
    %1985 = vadd.xlane.f32.xlu0 %v1984
    %v1986 = vpop.xlane.xlu0 %1985
    %v1987 = vsel %vm238, %v1953, 0.0
    %1988 = vadd.xlane.f32.xlu0 %v1987
    %v1989 = vpop.xlane.xlu0 %1988
    %v1990 = vsel %vm238, %v1954, 0.0
    %1991 = vadd.xlane.f32.xlu0 %v1990
    %v1992 = vpop.xlane.xlu0 %1991
    %v1993 = vsel %vm238, %v1955, 0.0
    %1994 = vadd.xlane.f32.xlu0 %v1993
    %v1995 = vpop.xlane.xlu0 %1994
    %v1996 = vsel %vm238, %v1956, 0.0
    %1997 = vadd.xlane.f32.xlu0 %v1996
    %v1998 = vpop.xlane.xlu0 %1997
    %v1999 = vsel %vm238, %v1957, 0.0
    %2000 = vadd.xlane.f32.xlu0 %v1999
    %v2001 = vpop.xlane.xlu0 %2000
    %v2002 = vsel %vm238, %v1958, 0.0
    %2003 = vadd.xlane.f32.xlu0 %v2002
    %v2004 = vpop.xlane.xlu0 %2003
    %v2005 = vsel %vm238, %v1959, 0.0
    %2006 = vadd.xlane.f32.xlu0 %v2005
    %v2007 = vpop.xlane.xlu0 %2006
    %v2008 = vmul.f32 %v1962, %v287
    %v2009 = vmul.f32 %v1965, %v287
    %v2010 = vmul.f32 %v1968, %v287
    %v2011 = vmul.f32 %v1971, %v287
    %v2012 = vmul.f32 %v1974, %v287
    %v2013 = vmul.f32 %v1977, %v287
    %v2014 = vmul.f32 %v1980, %v287
    %v2015 = vmul.f32 %v1983, %v287
    %v2016 = vmul.f32 %v1986, %v287
    %v2017 = vmul.f32 %v1989, %v287
    %v2018 = vmul.f32 %v1992, %v287
    %v2019 = vmul.f32 %v1995, %v287
    %v2020 = vmul.f32 %v1998, %v287
    %v2021 = vmul.f32 %v2001, %v287
    %v2022 = vmul.f32 %v2004, %v287
    %v2023 = vmul.f32 %v2007, %v287
    %v2024 = vadd.f32 %v2008, 1e-05
    %v2025 = vadd.f32 %v2009, 1e-05
    %v2026 = vadd.f32 %v2010, 1e-05
    %v2027 = vadd.f32 %v2011, 1e-05
    %v2028 = vadd.f32 %v2012, 1e-05
    %v2029 = vadd.f32 %v2013, 1e-05
    %v2030 = vadd.f32 %v2014, 1e-05
    %v2031 = vadd.f32 %v2015, 1e-05
    %v2032 = vadd.f32 %v2016, 1e-05
    %v2033 = vadd.f32 %v2017, 1e-05
    %v2034 = vadd.f32 %v2018, 1e-05
    %v2035 = vadd.f32 %v2019, 1e-05
    %v2036 = vadd.f32 %v2020, 1e-05
    %v2037 = vadd.f32 %v2021, 1e-05
    %v2038 = vadd.f32 %v2022, 1e-05
    %v2039 = vadd.f32 %v2023, 1e-05
    %v2040 = vrsqrt.pop %v2024
    %v2041 = vrsqrt.pop %v2025
    %v2042 = vrsqrt.pop %v2026
    %v2043 = vrsqrt.pop %v2027
    %v2044 = vrsqrt.pop %v2028
    %v2045 = vrsqrt.pop %v2029
    %v2046 = vrsqrt.pop %v2030
    %v2047 = vrsqrt.pop %v2031
    %v2048 = vrsqrt.pop %v2032
    %v2049 = vrsqrt.pop %v2033
    %v2050 = vrsqrt.pop %v2034
    %v2051 = vrsqrt.pop %v2035
    %v2052 = vrsqrt.pop %v2036
    %v2053 = vrsqrt.pop %v2037
    %v2054 = vrsqrt.pop %v2038
    %v2055 = vrsqrt.pop %v2039
    %v2056 = vmul.f32 %v1928, %v2040
    %v2057 = vmul.f32 %v1929, %v2041
    %v2058 = vmul.f32 %v1930, %v2042
    %v2059 = vmul.f32 %v1931, %v2043
    %v2060 = vmul.f32 %v1932, %v2044
    %v2061 = vmul.f32 %v1933, %v2045
    %v2062 = vmul.f32 %v1934, %v2046
    %v2063 = vmul.f32 %v1935, %v2047
    %v2064 = vmul.f32 %v1936, %v2048
    %v2065 = vmul.f32 %v1937, %v2049
    %v2066 = vmul.f32 %v1938, %v2050
    %v2067 = vmul.f32 %v1939, %v2051
    %v2068 = vmul.f32 %v1940, %v2052
    %v2069 = vmul.f32 %v1941, %v2053
    %v2070 = vmul.f32 %v1942, %v2054
    %v2071 = vmul.f32 %v1943, %v2055
    %v2072 = vlaneseq
    %v2073 = vshrl.u32 %v2072, 7
    %v2074 = vsub.s32 4, %v2073
    %v2075 = vrot.slane %v33, %v2074
    %v2076 = vmul.f32 %v2056, %v2075
    %v2077 = vmul.f32 %v2057, %v2075
    %v2078 = vmul.f32 %v2058, %v2075
    %v2079 = vmul.f32 %v2059, %v2075
    %v2080 = vmul.f32 %v2060, %v2075
    %v2081 = vmul.f32 %v2061, %v2075
    %v2082 = vmul.f32 %v2062, %v2075
    %v2083 = vmul.f32 %v2063, %v2075
    %v2084 = vmul.f32 %v2064, %v2075
    %v2085 = vmul.f32 %v2065, %v2075
    %v2086 = vmul.f32 %v2066, %v2075
    %v2087 = vmul.f32 %v2067, %v2075
    %v2088 = vmul.f32 %v2068, %v2075
    %v2089 = vmul.f32 %v2069, %v2075
    %v2090 = vmul.f32 %v2070, %v2075
    %v2091 = vmul.f32 %v2071, %v2075
    %v2092 = vlaneseq
    %v2093 = vshrl.u32 %v2092, 7
    %v2094 = vsub.s32 5, %v2093
    %v2095 = vrot.slane %v33, %v2094
    %v2096 = vadd.f32 %v2076, %v2095
    %v2097 = vadd.f32 %v2077, %v2095
    %v2098 = vadd.f32 %v2078, %v2095
    %v2099 = vadd.f32 %v2079, %v2095
    %v2100 = vadd.f32 %v2080, %v2095
    %v2101 = vadd.f32 %v2081, %v2095
    %v2102 = vadd.f32 %v2082, %v2095
    %v2103 = vadd.f32 %v2083, %v2095
    %v2104 = vadd.f32 %v2084, %v2095
    %v2105 = vadd.f32 %v2085, %v2095
    %v2106 = vadd.f32 %v2086, %v2095
    %v2107 = vadd.f32 %v2087, %v2095
    %v2108 = vadd.f32 %v2088, %v2095
    %v2109 = vadd.f32 %v2089, %v2095
    %v2110 = vadd.f32 %v2090, %v2095
    %v2111 = vadd.f32 %v2091, %v2095
    %v2112 = vmax.f32 %v2096, 0.0
    %v2113 = vmax.f32 %v2097, 0.0
    %v2114 = vmax.f32 %v2098, 0.0
    %v2115 = vmax.f32 %v2099, 0.0
    %v2116 = vmax.f32 %v2100, 0.0
    %v2117 = vmax.f32 %v2101, 0.0
    %v2118 = vmax.f32 %v2102, 0.0
    %v2119 = vmax.f32 %v2103, 0.0
    %v2120 = vmax.f32 %v2104, 0.0
    %v2121 = vmax.f32 %v2105, 0.0
    %v2122 = vmax.f32 %v2106, 0.0
    %v2123 = vmax.f32 %v2107, 0.0
    %v2124 = vmax.f32 %v2108, 0.0
    %v2125 = vmax.f32 %v2109, 0.0
    %v2126 = vmax.f32 %v2110, 0.0
    %v2127 = vmax.f32 %v2111, 0.0
    %v2128 = vadd.f32 %v472, %v2112
    %v2129 = vadd.f32 %v473, %v2113
    %v2130 = vadd.f32 %v474, %v2114
    %v2131 = vadd.f32 %v475, %v2115
    %v2132 = vadd.f32 %v476, %v2116
    %v2133 = vadd.f32 %v477, %v2117
    %v2134 = vadd.f32 %v478, %v2118
    %v2135 = vadd.f32 %v479, %v2119
    %v2136 = vadd.f32 %v480, %v2120
    %v2137 = vadd.f32 %v481, %v2121
    %v2138 = vadd.f32 %v482, %v2122
    %v2139 = vadd.f32 %v483, %v2123
    %v2140 = vadd.f32 %v484, %v2124
    %v2141 = vadd.f32 %v485, %v2125
    %v2142 = vadd.f32 %v486, %v2126
    %v2143 = vadd.f32 %v487, %v2127
    %v2144 = vpack.c.bf16 %v2129, %v2128
    %v2145 = vpack.c.bf16 %v2131, %v2130
    %v2146 = vpack.c.bf16 %v2133, %v2132
    %v2147 = vpack.c.bf16 %v2135, %v2134
    %v2148 = vpack.c.bf16 %v2137, %v2136
    %v2149 = vpack.c.bf16 %v2139, %v2138
    %v2150 = vpack.c.bf16 %v2141, %v2140
    %v2151 = vpack.c.bf16 %v2143, %v2142
    %2152 = vmatprep.subr.bf16.mxu0 0
    %2153 = vmatpush1.bf16.msra.mxu0 %v2144
    %2154 = vmatprep.subr.bf16.mxu0 0
    %2155 = vmatpush1.bf16.msra.mxu0 %v2145
    %2156 = vmatprep.subr.bf16.mxu0 0
    %2157 = vmatpush1.bf16.msra.mxu0 %v2146
    %2158 = vmatprep.subr.bf16.mxu0 0
    %2159 = vmatpush1.bf16.msra.mxu0 %v2147
    %2160 = vmatprep.subr.bf16.mxu0 0
    %2161 = vmatpush1.bf16.msra.mxu0 %v2148
    %2162 = vmatprep.subr.bf16.mxu0 0
    %2163 = vmatpush1.bf16.msra.mxu0 %v2149
    %2164 = vmatprep.subr.bf16.mxu0 0
    %2165 = vmatpush1.bf16.msra.mxu0 %v2150
    %2166 = vmatprep.subr.bf16.mxu0 0
    %2167 = vmatpush1.bf16.msra.mxu0 %v2151
    %2168 = vmatprep.subr.bf16.mxu0 0
    %2169 = vmatpush1.bf16.msra.mxu0 0
    %2170 = vmatprep.subr.bf16.mxu0 0
    %2171 = vmatpush1.bf16.msra.mxu0 0
    %2172 = vmatprep.subr.bf16.mxu0 0
    %2173 = vmatpush1.bf16.msra.mxu0 0
    %2174 = vmatprep.subr.bf16.mxu0 0
    %2175 = vmatpush1.bf16.msra.mxu0 0
    %2176 = vmatprep.subr.bf16.mxu0 0
    %2177 = vmatpush1.bf16.msra.mxu0 0
    %2178 = vmatprep.subr.bf16.mxu0 0
    %2179 = vmatpush1.bf16.msra.mxu0 0
    %2180 = vmatprep.subr.bf16.mxu0 0
    %2181 = vmatpush1.bf16.msra.mxu0 0
    %2182 = vmatprep.subr.bf16.mxu0 0
    %2183 = vmatpush1.bf16.msra.mxu0 0
    %2184 = vmatprep.mubr.bf16.mxu0 0
    %2185 = vmatmul.mubr.bf16.gmra.mrb[0].mxu0 %v688
    %v2186 = vpop.f32.mrb[0].mxu0
    %v2187 = vadd.f32 0.0, %v2186
    %v2188 = vpop.f32.mrb[0].mxu0
    %v2189 = vpop.f32.mrb[0].mxu0
    %v2190 = vadd.f32 0.0, %v2189
    %v2191 = vpop.f32.mrb[0].mxu0
    %2192 = vmatprep.mubr.bf16.mxu0 0
    %2193 = vmatmul.mubr.bf16.gmra.mrb[0].mxu0 %v689
    %v2194 = vpop.f32.mrb[0].mxu0
    %v2195 = vadd.f32 0.0, %v2194
    %v2196 = vpop.f32.mrb[0].mxu0
    %v2197 = vpop.f32.mrb[0].mxu0
    %v2198 = vadd.f32 0.0, %v2197
    %v2199 = vpop.f32.mrb[0].mxu0
    %2200 = vmatprep.mubr.bf16.mxu0 0
    %2201 = vmatmul.mubr.bf16.gmra.mrb[0].mxu0 %v690
    %v2202 = vpop.f32.mrb[0].mxu0
    %v2203 = vadd.f32 0.0, %v2202
    %v2204 = vpop.f32.mrb[0].mxu0
    %v2205 = vpop.f32.mrb[0].mxu0
    %v2206 = vadd.f32 0.0, %v2205
    %v2207 = vpop.f32.mrb[0].mxu0
    %2208 = vmatprep.mubr.bf16.mxu0 0
    %2209 = vmatmul.mubr.bf16.gmra.mrb[0].mxu0 %v691
    %v2210 = vpop.f32.mrb[0].mxu0
    %v2211 = vadd.f32 0.0, %v2210
    %v2212 = vpop.f32.mrb[0].mxu0
    %v2213 = vpop.f32.mrb[0].mxu0
    %v2214 = vadd.f32 0.0, %v2213
    %v2215 = vpop.f32.mrb[0].mxu0
    %2216 = vmatprep.mubr.bf16.mxu0 0
    %2217 = vmatmul.mubr.bf16.gmra.mrb[0].mxu0 %v692
    %v2218 = vpop.f32.mrb[0].mxu0
    %v2219 = vadd.f32 0.0, %v2218
    %v2220 = vpop.f32.mrb[0].mxu0
    %v2221 = vpop.f32.mrb[0].mxu0
    %v2222 = vadd.f32 0.0, %v2221
    %v2223 = vpop.f32.mrb[0].mxu0
    %2224 = vmatprep.mubr.bf16.mxu0 0
    %2225 = vmatmul.mubr.bf16.gmra.mrb[0].mxu0 %v693
    %v2226 = vpop.f32.mrb[0].mxu0
    %v2227 = vadd.f32 0.0, %v2226
    %v2228 = vpop.f32.mrb[0].mxu0
    %v2229 = vpop.f32.mrb[0].mxu0
    %v2230 = vadd.f32 0.0, %v2229
    %v2231 = vpop.f32.mrb[0].mxu0
    %2232 = vmatprep.mubr.bf16.mxu0 0
    %2233 = vmatmul.mubr.bf16.gmra.mrb[0].mxu0 %v694
    %v2234 = vpop.f32.mrb[0].mxu0
    %v2235 = vadd.f32 0.0, %v2234
    %v2236 = vpop.f32.mrb[0].mxu0
    %v2237 = vpop.f32.mrb[0].mxu0
    %v2238 = vadd.f32 0.0, %v2237
    %v2239 = vpop.f32.mrb[0].mxu0
    %2240 = vmatprep.mubr.bf16.mxu0 0
    %2241 = vmatmul.mubr.bf16.gmra.mrb[0].mxu0 %v695
    %v2242 = vpop.f32.mrb[0].mxu0
    %v2243 = vadd.f32 0.0, %v2242
    %v2244 = vpop.f32.mrb[0].mxu0
    %v2245 = vpop.f32.mrb[0].mxu0
    %v2246 = vadd.f32 0.0, %v2245
    %v2247 = vpop.f32.mrb[0].mxu0
    %2248 = vmatprep.mubr.bf16.mxu0 0
    %2249 = vmatmul.mubr.bf16.gmra.mrb[0].mxu0 %v696
    %v2250 = vpop.f32.mrb[0].mxu0
    %v2251 = vadd.f32 0.0, %v2250
    %v2252 = vpop.f32.mrb[0].mxu0
    %v2253 = vpop.f32.mrb[0].mxu0
    %v2254 = vadd.f32 0.0, %v2253
    %v2255 = vpop.f32.mrb[0].mxu0
    %2256 = vmatprep.mubr.bf16.mxu0 0
    %2257 = vmatmul.mubr.bf16.gmra.mrb[0].mxu0 %v697
    %v2258 = vpop.f32.mrb[0].mxu0
    %v2259 = vadd.f32 0.0, %v2258
    %v2260 = vpop.f32.mrb[0].mxu0
    %v2261 = vpop.f32.mrb[0].mxu0
    %v2262 = vadd.f32 0.0, %v2261
    %v2263 = vpop.f32.mrb[0].mxu0
    %2264 = vmatprep.mubr.bf16.mxu0 0
    %2265 = vmatmul.mubr.bf16.gmra.mrb[0].mxu0 %v698
    %v2266 = vpop.f32.mrb[0].mxu0
    %v2267 = vadd.f32 0.0, %v2266
    %v2268 = vpop.f32.mrb[0].mxu0
    %v2269 = vpop.f32.mrb[0].mxu0
    %v2270 = vadd.f32 0.0, %v2269
    %v2271 = vpop.f32.mrb[0].mxu0
    %2272 = vmatprep.mubr.bf16.mxu0 0
    %2273 = vmatmul.mubr.bf16.gmra.mrb[0].mxu0 %v699
    %v2274 = vpop.f32.mrb[0].mxu0
    %v2275 = vadd.f32 0.0, %v2274
    %v2276 = vpop.f32.mrb[0].mxu0
    %v2277 = vpop.f32.mrb[0].mxu0
    %v2278 = vadd.f32 0.0, %v2277
    %v2279 = vpop.f32.mrb[0].mxu0
    %2280 = vmatprep.mubr.bf16.mxu0 0
    %2281 = vmatmul.mubr.bf16.gmra.mrb[0].mxu0 %v700
    %v2282 = vpop.f32.mrb[0].mxu0
    %v2283 = vadd.f32 0.0, %v2282
    %v2284 = vpop.f32.mrb[0].mxu0
    %v2285 = vpop.f32.mrb[0].mxu0
    %v2286 = vadd.f32 0.0, %v2285
    %v2287 = vpop.f32.mrb[0].mxu0
    %2288 = vmatprep.mubr.bf16.mxu0 0
    %2289 = vmatmul.mubr.bf16.gmra.mrb[0].mxu0 %v701
    %v2290 = vpop.f32.mrb[0].mxu0
    %v2291 = vadd.f32 0.0, %v2290
    %v2292 = vpop.f32.mrb[0].mxu0
    %v2293 = vpop.f32.mrb[0].mxu0
    %v2294 = vadd.f32 0.0, %v2293
    %v2295 = vpop.f32.mrb[0].mxu0
    %2296 = vmatprep.mubr.bf16.mxu0 0
    %2297 = vmatmul.mubr.bf16.gmra.mrb[0].mxu0 %v702
    %v2298 = vpop.f32.mrb[0].mxu0
    %v2299 = vadd.f32 0.0, %v2298
    %v2300 = vpop.f32.mrb[0].mxu0
    %v2301 = vpop.f32.mrb[0].mxu0
    %v2302 = vadd.f32 0.0, %v2301
    %v2303 = vpop.f32.mrb[0].mxu0
    %2304 = vmatprep.mubr.bf16.mxu0 0
    %2305 = vmatmul.mubr.bf16.gmra.mrb[0].mxu0 %v703
    %v2306 = vpop.f32.mrb[0].mxu0
    %v2307 = vadd.f32 0.0, %v2306
    %v2308 = vpop.f32.mrb[0].mxu0
    %v2309 = vpop.f32.mrb[0].mxu0
    %v2310 = vadd.f32 0.0, %v2309
    %v2311 = vpop.f32.mrb[0].mxu0
    %2312 = vmatprep.mubr.bf16.mxu0 0
    %2313 = vmatmul.mubr.bf16.gmra.mrb[0].mxu0 %v704
    %v2314 = vpop.f32.mrb[0].mxu0
    %v2315 = vadd.f32 0.0, %v2314
    %v2316 = vpop.f32.mrb[0].mxu0
    %v2317 = vpop.f32.mrb[0].mxu0
    %v2318 = vadd.f32 0.0, %v2317
    %v2319 = vpop.f32.mrb[0].mxu0
    %2320 = vmatprep.mubr.bf16.mxu0 0
    %2321 = vmatmul.mubr.bf16.gmra.mrb[0].mxu0 %v705
    %v2322 = vpop.f32.mrb[0].mxu0
    %v2323 = vadd.f32 0.0, %v2322
    %v2324 = vpop.f32.mrb[0].mxu0
    %v2325 = vpop.f32.mrb[0].mxu0
    %v2326 = vadd.f32 0.0, %v2325
    %v2327 = vpop.f32.mrb[0].mxu0
    %2328 = vmatprep.mubr.bf16.mxu0 0
    %2329 = vmatmul.mubr.bf16.gmra.mrb[0].mxu0 %v706
    %v2330 = vpop.f32.mrb[0].mxu0
    %v2331 = vadd.f32 0.0, %v2330
    %v2332 = vpop.f32.mrb[0].mxu0
    %v2333 = vpop.f32.mrb[0].mxu0
    %v2334 = vadd.f32 0.0, %v2333
    %v2335 = vpop.f32.mrb[0].mxu0
    %2336 = vmatprep.mubr.bf16.mxu0 0
    %2337 = vmatmul.mubr.bf16.gmra.mrb[0].mxu0 %v707
    %v2338 = vpop.f32.mrb[0].mxu0
    %v2339 = vadd.f32 0.0, %v2338
    %v2340 = vpop.f32.mrb[0].mxu0
    %v2341 = vpop.f32.mrb[0].mxu0
    %v2342 = vadd.f32 0.0, %v2341
    %v2343 = vpop.f32.mrb[0].mxu0
    %2344 = vmatprep.mubr.bf16.mxu0 0
    %2345 = vmatmul.mubr.bf16.gmra.mrb[0].mxu0 %v708
    %v2346 = vpop.f32.mrb[0].mxu0
    %v2347 = vadd.f32 0.0, %v2346
    %v2348 = vpop.f32.mrb[0].mxu0
    %v2349 = vpop.f32.mrb[0].mxu0
    %v2350 = vadd.f32 0.0, %v2349
    %v2351 = vpop.f32.mrb[0].mxu0
    %2352 = vmatprep.mubr.bf16.mxu0 0
    %2353 = vmatmul.mubr.bf16.gmra.mrb[0].mxu0 %v709
    %v2354 = vpop.f32.mrb[0].mxu0
    %v2355 = vadd.f32 0.0, %v2354
    %v2356 = vpop.f32.mrb[0].mxu0
    %v2357 = vpop.f32.mrb[0].mxu0
    %v2358 = vadd.f32 0.0, %v2357
    %v2359 = vpop.f32.mrb[0].mxu0
    %2360 = vmatprep.mubr.bf16.mxu0 0
    %2361 = vmatmul.mubr.bf16.gmra.mrb[0].mxu0 %v710
    %v2362 = vpop.f32.mrb[0].mxu0
    %v2363 = vadd.f32 0.0, %v2362
    %v2364 = vpop.f32.mrb[0].mxu0
    %v2365 = vpop.f32.mrb[0].mxu0
    %v2366 = vadd.f32 0.0, %v2365
    %v2367 = vpop.f32.mrb[0].mxu0
    %2368 = vmatprep.mubr.bf16.mxu0 0
    %2369 = vmatmul.mubr.bf16.gmra.mrb[0].mxu0 %v711
    %v2370 = vpop.f32.mrb[0].mxu0
    %v2371 = vadd.f32 0.0, %v2370
    %v2372 = vpop.f32.mrb[0].mxu0
    %v2373 = vpop.f32.mrb[0].mxu0
    %v2374 = vadd.f32 0.0, %v2373
    %v2375 = vpop.f32.mrb[0].mxu0
    %2376 = vmatprep.mubr.bf16.mxu0 0
    %2377 = vmatmul.mubr.bf16.gmra.mrb[0].mxu0 %v712
    %v2378 = vpop.f32.mrb[0].mxu0
    %v2379 = vadd.f32 0.0, %v2378
    %v2380 = vpop.f32.mrb[0].mxu0
    %v2381 = vpop.f32.mrb[0].mxu0
    %v2382 = vadd.f32 0.0, %v2381
    %v2383 = vpop.f32.mrb[0].mxu0
    %2384 = vmatprep.mubr.bf16.mxu0 0
    %2385 = vmatmul.mubr.bf16.gmra.mrb[0].mxu0 %v713
    %v2386 = vpop.f32.mrb[0].mxu0
    %v2387 = vadd.f32 0.0, %v2386
    %v2388 = vpop.f32.mrb[0].mxu0
    %v2389 = vpop.f32.mrb[0].mxu0
    %v2390 = vadd.f32 0.0, %v2389
    %v2391 = vpop.f32.mrb[0].mxu0
    %2392 = vmatprep.mubr.bf16.mxu0 0
    %2393 = vmatmul.mubr.bf16.gmra.mrb[0].mxu0 %v714
    %v2394 = vpop.f32.mrb[0].mxu0
    %v2395 = vadd.f32 0.0, %v2394
    %v2396 = vpop.f32.mrb[0].mxu0
    %v2397 = vpop.f32.mrb[0].mxu0
    %v2398 = vadd.f32 0.0, %v2397
    %v2399 = vpop.f32.mrb[0].mxu0
    %2400 = vmatprep.mubr.bf16.mxu0 0
    %2401 = vmatmul.mubr.bf16.gmra.mrb[0].mxu0 %v715
    %v2402 = vpop.f32.mrb[0].mxu0
    %v2403 = vadd.f32 0.0, %v2402
    %v2404 = vpop.f32.mrb[0].mxu0
    %v2405 = vpop.f32.mrb[0].mxu0
    %v2406 = vadd.f32 0.0, %v2405
    %v2407 = vpop.f32.mrb[0].mxu0
    %2408 = vmatprep.mubr.bf16.mxu0 0
    %2409 = vmatmul.mubr.bf16.gmra.mrb[0].mxu0 %v716
    %v2410 = vpop.f32.mrb[0].mxu0
    %v2411 = vadd.f32 0.0, %v2410
    %v2412 = vpop.f32.mrb[0].mxu0
    %v2413 = vpop.f32.mrb[0].mxu0
    %v2414 = vadd.f32 0.0, %v2413
    %v2415 = vpop.f32.mrb[0].mxu0
    %2416 = vmatprep.mubr.bf16.mxu0 0
    %2417 = vmatmul.mubr.bf16.gmra.mrb[0].mxu0 %v717
    %v2418 = vpop.f32.mrb[0].mxu0
    %v2419 = vadd.f32 0.0, %v2418
    %v2420 = vpop.f32.mrb[0].mxu0
    %v2421 = vpop.f32.mrb[0].mxu0
    %v2422 = vadd.f32 0.0, %v2421
    %v2423 = vpop.f32.mrb[0].mxu0
    %2424 = vmatprep.mubr.bf16.mxu0 0
    %2425 = vmatmul.mubr.bf16.gmra.mrb[0].mxu0 %v718
    %v2426 = vpop.f32.mrb[0].mxu0
    %v2427 = vadd.f32 0.0, %v2426
    %v2428 = vpop.f32.mrb[0].mxu0
    %v2429 = vpop.f32.mrb[0].mxu0
    %v2430 = vadd.f32 0.0, %v2429
    %v2431 = vpop.f32.mrb[0].mxu0
    %2432 = vmatprep.mubr.bf16.mxu0 0
    %2433 = vmatmul.mubr.bf16.gmra.mrb[0].mxu0 %v719
    %v2434 = vpop.f32.mrb[0].mxu0
    %v2435 = vadd.f32 0.0, %v2434
    %v2436 = vpop.f32.mrb[0].mxu0
    %v2437 = vpop.f32.mrb[0].mxu0
    %v2438 = vadd.f32 0.0, %v2437
    %v2439 = vpop.f32.mrb[0].mxu0
    %2440 = vdwg.mxu0
    %v2441 = vmul.f32 %v2187, %v1108
    %v2442 = vmul.f32 %v2190, %v1113
    %v2443 = vmul.f32 %v2195, %v1118
    %v2444 = vmul.f32 %v2198, %v1123
    %v2445 = vmul.f32 %v2203, %v1128
    %v2446 = vmul.f32 %v2206, %v1133
    %v2447 = vmul.f32 %v2211, %v1138
    %v2448 = vmul.f32 %v2214, %v1143
    %v2449 = vmul.f32 %v2219, %v1148
    %v2450 = vmul.f32 %v2222, %v1153
    %v2451 = vmul.f32 %v2227, %v1158
    %v2452 = vmul.f32 %v2230, %v1163
    %v2453 = vmul.f32 %v2235, %v1168
    %v2454 = vmul.f32 %v2238, %v1173
    %v2455 = vmul.f32 %v2243, %v1178
    %v2456 = vmul.f32 %v2246, %v1183
    %v2457 = vmul.f32 %v2251, %v1188
    %v2458 = vmul.f32 %v2254, %v1193
    %v2459 = vmul.f32 %v2259, %v1198
    %v2460 = vmul.f32 %v2262, %v1203
    %v2461 = vmul.f32 %v2267, %v1208
    %v2462 = vmul.f32 %v2270, %v1213
    %v2463 = vmul.f32 %v2275, %v1218
    %v2464 = vmul.f32 %v2278, %v1223
    %v2465 = vmul.f32 %v2283, %v1228
    %v2466 = vmul.f32 %v2286, %v1233
    %v2467 = vmul.f32 %v2291, %v1238
    %v2468 = vmul.f32 %v2294, %v1243
    %v2469 = vmul.f32 %v2299, %v1248
    %v2470 = vmul.f32 %v2302, %v1253
    %v2471 = vmul.f32 %v2307, %v1258
    %v2472 = vmul.f32 %v2310, %v1263
    %v2473 = vmul.f32 %v2315, %v1268
    %v2474 = vmul.f32 %v2318, %v1273
    %v2475 = vmul.f32 %v2323, %v1278
    %v2476 = vmul.f32 %v2326, %v1283
    %v2477 = vmul.f32 %v2331, %v1288
    %v2478 = vmul.f32 %v2334, %v1293
    %v2479 = vmul.f32 %v2339, %v1298
    %v2480 = vmul.f32 %v2342, %v1303
    %v2481 = vmul.f32 %v2347, %v1308
    %v2482 = vmul.f32 %v2350, %v1313
    %v2483 = vmul.f32 %v2355, %v1318
    %v2484 = vmul.f32 %v2358, %v1323
    %v2485 = vmul.f32 %v2363, %v1328
    %v2486 = vmul.f32 %v2366, %v1333
    %v2487 = vmul.f32 %v2371, %v1338
    %v2488 = vmul.f32 %v2374, %v1343
    %v2489 = vmul.f32 %v2379, %v1348
    %v2490 = vmul.f32 %v2382, %v1353
    %v2491 = vmul.f32 %v2387, %v1358
    %v2492 = vmul.f32 %v2390, %v1363
    %v2493 = vmul.f32 %v2395, %v1368
    %v2494 = vmul.f32 %v2398, %v1373
    %v2495 = vmul.f32 %v2403, %v1378
    %v2496 = vmul.f32 %v2406, %v1383
    %v2497 = vmul.f32 %v2411, %v1388
    %v2498 = vmul.f32 %v2414, %v1393
    %v2499 = vmul.f32 %v2419, %v1398
    %v2500 = vmul.f32 %v2422, %v1403
    %v2501 = vmul.f32 %v2427, %v1408
    %v2502 = vmul.f32 %v2430, %v1413
    %v2503 = vmul.f32 %v2435, %v1418
    %v2504 = vmul.f32 %v2438, %v1423
    %v2505 = vpack.c.bf16 %v2442, %v2441
    %v2506 = vpack.c.bf16 %v2444, %v2443
    %v2507 = vpack.c.bf16 %v2446, %v2445
    %v2508 = vpack.c.bf16 %v2448, %v2447
    %v2509 = vpack.c.bf16 %v2450, %v2449
    %v2510 = vpack.c.bf16 %v2452, %v2451
    %v2511 = vpack.c.bf16 %v2454, %v2453
    %v2512 = vpack.c.bf16 %v2456, %v2455
    %v2513 = vpack.c.bf16 %v2458, %v2457
    %v2514 = vpack.c.bf16 %v2460, %v2459
    %v2515 = vpack.c.bf16 %v2462, %v2461
    %v2516 = vpack.c.bf16 %v2464, %v2463
    %v2517 = vpack.c.bf16 %v2466, %v2465
    %v2518 = vpack.c.bf16 %v2468, %v2467
    %v2519 = vpack.c.bf16 %v2470, %v2469
    %v2520 = vpack.c.bf16 %v2472, %v2471
    %v2521 = vpack.c.bf16 %v2474, %v2473
    %v2522 = vpack.c.bf16 %v2476, %v2475
    %v2523 = vpack.c.bf16 %v2478, %v2477
    %v2524 = vpack.c.bf16 %v2480, %v2479
    %v2525 = vpack.c.bf16 %v2482, %v2481
    %v2526 = vpack.c.bf16 %v2484, %v2483
    %v2527 = vpack.c.bf16 %v2486, %v2485
    %v2528 = vpack.c.bf16 %v2488, %v2487
    %v2529 = vpack.c.bf16 %v2490, %v2489
    %v2530 = vpack.c.bf16 %v2492, %v2491
    %v2531 = vpack.c.bf16 %v2494, %v2493
    %v2532 = vpack.c.bf16 %v2496, %v2495
    %v2533 = vpack.c.bf16 %v2498, %v2497
    %v2534 = vpack.c.bf16 %v2500, %v2499
    %v2535 = vpack.c.bf16 %v2502, %v2501
    %v2536 = vpack.c.bf16 %v2504, %v2503
    %2545 = vrot.lane.b32.xlu0 %v2505, 32
    %v2546 = vpop.permute.xlu0 %2545
    %2547 = vrot.lane.b32.xlu0 %v2506, 32
    %v2548 = vpop.permute.xlu0 %2547
    %2549 = vrot.lane.b32.xlu0 %v2507, 32
    %v2550 = vpop.permute.xlu0 %2549
    %2551 = vrot.lane.b32.xlu0 %v2508, 32
    %v2552 = vpop.permute.xlu0 %2551
    %2553 = vrot.lane.b32.xlu0 %v2509, 32
    %v2554 = vpop.permute.xlu0 %2553
    %2555 = vrot.lane.b32.xlu0 %v2510, 32
    %v2556 = vpop.permute.xlu0 %2555
    %2557 = vrot.lane.b32.xlu0 %v2511, 32
    %v2558 = vpop.permute.xlu0 %2557
    %2559 = vrot.lane.b32.xlu0 %v2512, 32
    %v2560 = vpop.permute.xlu0 %2559
    %2569 = vrot.lane.b32.xlu0 %v2513, 64
    %v2570 = vpop.permute.xlu0 %2569
    %2571 = vrot.lane.b32.xlu0 %v2514, 64
    %v2572 = vpop.permute.xlu0 %2571
    %2573 = vrot.lane.b32.xlu0 %v2515, 64
    %v2574 = vpop.permute.xlu0 %2573
    %2575 = vrot.lane.b32.xlu0 %v2516, 64
    %v2576 = vpop.permute.xlu0 %2575
    %2577 = vrot.lane.b32.xlu0 %v2517, 64
    %v2578 = vpop.permute.xlu0 %2577
    %2579 = vrot.lane.b32.xlu0 %v2518, 64
    %v2580 = vpop.permute.xlu0 %2579
    %2581 = vrot.lane.b32.xlu0 %v2519, 64
    %v2582 = vpop.permute.xlu0 %2581
    %2583 = vrot.lane.b32.xlu0 %v2520, 64
    %v2584 = vpop.permute.xlu0 %2583
    %2593 = vrot.lane.b32.xlu0 %v2521, 96
    %v2594 = vpop.permute.xlu0 %2593
    %2595 = vrot.lane.b32.xlu0 %v2522, 96
    %v2596 = vpop.permute.xlu0 %2595
    %2597 = vrot.lane.b32.xlu0 %v2523, 96
    %v2598 = vpop.permute.xlu0 %2597
    %2599 = vrot.lane.b32.xlu0 %v2524, 96
    %v2600 = vpop.permute.xlu0 %2599
    %2601 = vrot.lane.b32.xlu0 %v2525, 96
    %v2602 = vpop.permute.xlu0 %2601
    %2603 = vrot.lane.b32.xlu0 %v2526, 96
    %v2604 = vpop.permute.xlu0 %2603
    %2605 = vrot.lane.b32.xlu0 %v2527, 96
    %v2606 = vpop.permute.xlu0 %2605
    %2607 = vrot.lane.b32.xlu0 %v2528, 96
    %v2608 = vpop.permute.xlu0 %2607
    %v2611 = vsel %vm238, %v2144, %v2546
    %v2614 = vsel %vm238, %v2145, %v2548
    %v2617 = vsel %vm238, %v2146, %v2550
    %v2620 = vsel %vm238, %v2147, %v2552
    %v2623 = vsel %vm238, %v2148, %v2554
    %v2626 = vsel %vm238, %v2149, %v2556
    %v2629 = vsel %vm238, %v2150, %v2558
    %v2632 = vsel %vm238, %v2151, %v2560
    %v2634 = vsel %vm1617, %v2611, %v2570
    %v2636 = vsel %vm1617, %v2614, %v2572
    %v2638 = vsel %vm1617, %v2617, %v2574
    %v2640 = vsel %vm1617, %v2620, %v2576
    %v2642 = vsel %vm1617, %v2623, %v2578
    %v2644 = vsel %vm1617, %v2626, %v2580
    %v2646 = vsel %vm1617, %v2629, %v2582
    %v2648 = vsel %vm1617, %v2632, %v2584
    %v2650 = vsel %vm1634, %v2634, %v2594
    %v2653 = vsel %vm1634, %v2636, %v2596
    %v2656 = vsel %vm1634, %v2638, %v2598
    %v2659 = vsel %vm1634, %v2640, %v2600
    %v2662 = vsel %vm1634, %v2642, %v2602
    %v2665 = vsel %vm1634, %v2644, %v2604
    %v2668 = vsel %vm1634, %v2646, %v2606
    %v2671 = vsel %vm1634, %v2648, %v2608
    %v2673 = vld [vmem:[%s5 + $0x50] sm:$0xf]
    %v2674 = vld [vmem:[%s5 + $0x54] sm:$0xf]
    %v2675 = vld [vmem:[%s5 + $0x58] sm:$0xf]
    %v2676 = vld [vmem:[%s5 + $0x5c] sm:$0xf]
    %v2677 = vld [vmem:[%s5 + $0x60] sm:$0xf]
    %v2678 = vld [vmem:[%s5 + $0x64] sm:$0xf]
    %v2679 = vld [vmem:[%s5 + $0x68] sm:$0xf]
    %v2680 = vld [vmem:[%s5 + $0x6c] sm:$0xf]
    %v2681 = vld [vmem:[%s5 + $0x70] sm:$0xf]
    %v2682 = vld [vmem:[%s5 + $0x74] sm:$0xf]
    %v2683 = vld [vmem:[%s5 + $0x78] sm:$0xf]
    %v2684 = vld [vmem:[%s5 + $0x7c] sm:$0xf]
    %v2685 = vld [vmem:[%s5 + $0x80] sm:$0xf]
    %v2686 = vld [vmem:[%s5 + $0x84] sm:$0xf]
    %v2687 = vld [vmem:[%s5 + $0x88] sm:$0xf]
    %v2688 = vld [vmem:[%s5 + $0x8c] sm:$0xf]
    %v2689 = vld [vmem:[%s5 + $0x90] sm:$0xf]
    %v2690 = vld [vmem:[%s5 + $0x94] sm:$0xf]
    %v2691 = vld [vmem:[%s5 + $0x98] sm:$0xf]
    %v2692 = vld [vmem:[%s5 + $0x9c] sm:$0xf]
    %v2693 = vlaneseq
    %v2694 = vshrl.u32 %v2693, 7
    %v2695 = vsub.s32 6, %v2694
    %v2696 = vrot.slane %v33, %v2695
    %v2717 = vunpack.c.l.b16 %v2673
    %v2718 = vunpack.c.l.b16 %v2674
    %v2719 = vunpack.c.l.b16 %v2675
    %v2720 = vunpack.c.l.b16 %v2676
    %v2721 = vunpack.c.l.b16 %v2677
    %v2722 = vunpack.c.l.b16 %v2678
    %v2723 = vunpack.c.l.b16 %v2679
    %v2724 = vunpack.c.l.b16 %v2680
    %v2725 = vunpack.c.l.b16 %v2681
    %v2726 = vunpack.c.l.b16 %v2682
    %v2727 = vunpack.c.l.b16 %v2683
    %v2728 = vunpack.c.l.b16 %v2684
    %v2729 = vunpack.c.l.b16 %v2685
    %v2730 = vunpack.c.l.b16 %v2686
    %v2731 = vunpack.c.l.b16 %v2687
    %v2732 = vunpack.c.l.b16 %v2688
    %v2733 = vunpack.c.l.b16 %v2689
    %v2734 = vunpack.c.l.b16 %v2690
    %v2735 = vunpack.c.l.b16 %v2691
    %v2736 = vunpack.c.l.b16 %v2692
    %v2737 = vpack.c.b16 %v2718, %v2717
    %v2738 = vpack.c.b16 %v2720, %v2719
    %v2739 = vpack.c.b16 %v2722, %v2721
    %v2740 = vpack.c.b16 %v2724, %v2723
    %v2741 = vpack.c.b16 %v2726, %v2725
    %v2742 = vpack.c.b16 %v2728, %v2727
    %v2743 = vpack.c.b16 %v2730, %v2729
    %v2744 = vpack.c.b16 %v2732, %v2731
    %v2745 = vpack.c.b16 %v2734, %v2733
    %v2746 = vpack.c.b16 %v2736, %v2735
    %v2758 = vsel %vm238, %v2529, 0
    %v2761 = vsel %vm238, %v2530, 0
    %v2764 = vsel %vm238, %v2531, 0
    %v2767 = vsel %vm238, %v2532, 0
    %v2770 = vsel %vm238, %v2533, 0
    %v2773 = vsel %vm238, %v2534, 0
    %v2776 = vsel %vm238, %v2535, 0
    %v2779 = vsel %vm238, %v2536, 0
    %2781 = vmatprep.subr.bf16.mxu0 0
    %2782 = vmatpush1.bf16.msra.mxu0 %v2737
    %2783 = vmatprep.subr.bf16.mxu0 0
    %2784 = vmatpush1.bf16.msra.mxu0 %v2738
    %2785 = vmatprep.subr.bf16.mxu0 0
    %2786 = vmatpush1.bf16.msra.mxu0 %v2739
    %2787 = vmatprep.subr.bf16.mxu0 0
    %2788 = vmatpush1.bf16.msra.mxu0 %v2740
    %2789 = vmatprep.subr.bf16.mxu0 0
    %2790 = vmatpush1.bf16.msra.mxu0 %v2741
    %2791 = vmatprep.subr.bf16.mxu0 0
    %2792 = vmatpush1.bf16.msra.mxu0 %v2742
    %2793 = vmatprep.subr.bf16.mxu0 0
    %2794 = vmatpush1.bf16.msra.mxu0 %v2743
    %2795 = vmatprep.subr.bf16.mxu0 0
    %2796 = vmatpush1.bf16.msra.mxu0 %v2744
    %2797 = vmatprep.subr.bf16.mxu0 0
    %2798 = vmatpush1.bf16.msra.mxu0 %v2745
    %2799 = vmatprep.subr.bf16.mxu0 0
    %2800 = vmatpush1.bf16.msra.mxu0 %v2746
    %2801 = vmatprep.subr.bf16.mxu0 0
    %2802 = vmatpush1.bf16.msra.mxu0 0
    %2803 = vmatprep.subr.bf16.mxu0 0
    %2804 = vmatpush1.bf16.msra.mxu0 0
    %2805 = vmatprep.subr.bf16.mxu0 0
    %2806 = vmatpush1.bf16.msra.mxu0 0
    %2807 = vmatprep.subr.bf16.mxu0 0
    %2808 = vmatpush1.bf16.msra.mxu0 0
    %2809 = vmatprep.subr.bf16.mxu0 0
    %2810 = vmatpush1.bf16.msra.mxu0 0
    %2811 = vmatprep.subr.bf16.mxu0 0
    %2812 = vmatpush1.bf16.msra.mxu0 0
    %2813 = vmatprep.mubr.bf16.mxu0 %v2758
    %2814 = vmatmul.mubr.bf16.gmra.mrb[0].mxu0 %v2650
    %v2815 = vpop.f32.mrb[0].mxu0
    %v2816 = vadd.f32 %v2696, %v2815
    %v2817 = vpop.f32.mrb[0].mxu0
    %v2818 = vpop.f32.mrb[0].mxu0
    %v2819 = vadd.f32 %v2696, %v2818
    %v2820 = vpop.f32.mrb[0].mxu0
    %2821 = vmatprep.mubr.bf16.mxu0 %v2761
    %2822 = vmatmul.mubr.bf16.gmra.mrb[0].mxu0 %v2653
    %v2823 = vpop.f32.mrb[0].mxu0
    %v2824 = vadd.f32 %v2696, %v2823
    %v2825 = vpop.f32.mrb[0].mxu0
    %v2826 = vpop.f32.mrb[0].mxu0
    %v2827 = vadd.f32 %v2696, %v2826
    %v2828 = vpop.f32.mrb[0].mxu0
    %2829 = vmatprep.mubr.bf16.mxu0 %v2764
    %2830 = vmatmul.mubr.bf16.gmra.mrb[0].mxu0 %v2656
    %v2831 = vpop.f32.mrb[0].mxu0
    %v2832 = vadd.f32 %v2696, %v2831
    %v2833 = vpop.f32.mrb[0].mxu0
    %v2834 = vpop.f32.mrb[0].mxu0
    %v2835 = vadd.f32 %v2696, %v2834
    %v2836 = vpop.f32.mrb[0].mxu0
    %2837 = vmatprep.mubr.bf16.mxu0 %v2767
    %2838 = vmatmul.mubr.bf16.gmra.mrb[0].mxu0 %v2659
    %v2839 = vpop.f32.mrb[0].mxu0
    %v2840 = vadd.f32 %v2696, %v2839
    %v2841 = vpop.f32.mrb[0].mxu0
    %v2842 = vpop.f32.mrb[0].mxu0
    %v2843 = vadd.f32 %v2696, %v2842
    %v2844 = vpop.f32.mrb[0].mxu0
    %2845 = vmatprep.mubr.bf16.mxu0 %v2770
    %2846 = vmatmul.mubr.bf16.gmra.mrb[0].mxu0 %v2662
    %v2847 = vpop.f32.mrb[0].mxu0
    %v2848 = vadd.f32 %v2696, %v2847
    %v2849 = vpop.f32.mrb[0].mxu0
    %v2850 = vpop.f32.mrb[0].mxu0
    %v2851 = vadd.f32 %v2696, %v2850
    %v2852 = vpop.f32.mrb[0].mxu0
    %2853 = vmatprep.mubr.bf16.mxu0 %v2773
    %2854 = vmatmul.mubr.bf16.gmra.mrb[0].mxu0 %v2665
    %v2855 = vpop.f32.mrb[0].mxu0
    %v2856 = vadd.f32 %v2696, %v2855
    %v2857 = vpop.f32.mrb[0].mxu0
    %v2858 = vpop.f32.mrb[0].mxu0
    %v2859 = vadd.f32 %v2696, %v2858
    %v2860 = vpop.f32.mrb[0].mxu0
    %2861 = vmatprep.mubr.bf16.mxu0 %v2776
    %2862 = vmatmul.mubr.bf16.gmra.mrb[0].mxu0 %v2668
    %v2863 = vpop.f32.mrb[0].mxu0
    %v2864 = vadd.f32 %v2696, %v2863
    %v2865 = vpop.f32.mrb[0].mxu0
    %v2866 = vpop.f32.mrb[0].mxu0
    %v2867 = vadd.f32 %v2696, %v2866
    %v2868 = vpop.f32.mrb[0].mxu0
    %2869 = vmatprep.mubr.bf16.mxu0 %v2779
    %2870 = vmatmul.mubr.bf16.gmra.mrb[0].mxu0 %v2671
    %v2871 = vpop.f32.mrb[0].mxu0
    %v2872 = vadd.f32 %v2696, %v2871
    %v2873 = vpop.f32.mrb[0].mxu0
    %v2874 = vpop.f32.mrb[0].mxu0
    %v2875 = vadd.f32 %v2696, %v2874
    %v2876 = vpop.f32.mrb[0].mxu0
    %2877 = vdwg.mxu0
    %v2878 = vsel %vm238, %v2816, 0.0
    %2879 = vadd.xlane.f32.xlu0 %v2878
    %v2880 = vpop.xlane.xlu0 %2879
    %v2881 = vsel %vm238, %v2819, 0.0
    %2882 = vadd.xlane.f32.xlu0 %v2881
    %v2883 = vpop.xlane.xlu0 %2882
    %v2884 = vsel %vm238, %v2824, 0.0
    %2885 = vadd.xlane.f32.xlu0 %v2884
    %v2886 = vpop.xlane.xlu0 %2885
    %v2887 = vsel %vm238, %v2827, 0.0
    %2888 = vadd.xlane.f32.xlu0 %v2887
    %v2889 = vpop.xlane.xlu0 %2888
    %v2890 = vsel %vm238, %v2832, 0.0
    %2891 = vadd.xlane.f32.xlu0 %v2890
    %v2892 = vpop.xlane.xlu0 %2891
    %v2893 = vsel %vm238, %v2835, 0.0
    %2894 = vadd.xlane.f32.xlu0 %v2893
    %v2895 = vpop.xlane.xlu0 %2894
    %v2896 = vsel %vm238, %v2840, 0.0
    %2897 = vadd.xlane.f32.xlu0 %v2896
    %v2898 = vpop.xlane.xlu0 %2897
    %v2899 = vsel %vm238, %v2843, 0.0
    %2900 = vadd.xlane.f32.xlu0 %v2899
    %v2901 = vpop.xlane.xlu0 %2900
    %v2902 = vsel %vm238, %v2848, 0.0
    %2903 = vadd.xlane.f32.xlu0 %v2902
    %v2904 = vpop.xlane.xlu0 %2903
    %v2905 = vsel %vm238, %v2851, 0.0
    %2906 = vadd.xlane.f32.xlu0 %v2905
    %v2907 = vpop.xlane.xlu0 %2906
    %v2908 = vsel %vm238, %v2856, 0.0
    %2909 = vadd.xlane.f32.xlu0 %v2908
    %v2910 = vpop.xlane.xlu0 %2909
    %v2911 = vsel %vm238, %v2859, 0.0
    %2912 = vadd.xlane.f32.xlu0 %v2911
    %v2913 = vpop.xlane.xlu0 %2912
    %v2914 = vsel %vm238, %v2864, 0.0
    %2915 = vadd.xlane.f32.xlu0 %v2914
    %v2916 = vpop.xlane.xlu0 %2915
    %v2917 = vsel %vm238, %v2867, 0.0
    %2918 = vadd.xlane.f32.xlu0 %v2917
    %v2919 = vpop.xlane.xlu0 %2918
    %v2920 = vsel %vm238, %v2872, 0.0
    %2921 = vadd.xlane.f32.xlu0 %v2920
    %v2922 = vpop.xlane.xlu0 %2921
    %v2923 = vsel %vm238, %v2875, 0.0
    %2924 = vadd.xlane.f32.xlu0 %v2923
    %v2925 = vpop.xlane.xlu0 %2924
    %v2926 = vmul.f32 %v2880, %v287
    %v2927 = vmul.f32 %v2883, %v287
    %v2928 = vmul.f32 %v2886, %v287
    %v2929 = vmul.f32 %v2889, %v287
    %v2930 = vmul.f32 %v2892, %v287
    %v2931 = vmul.f32 %v2895, %v287
    %v2932 = vmul.f32 %v2898, %v287
    %v2933 = vmul.f32 %v2901, %v287
    %v2934 = vmul.f32 %v2904, %v287
    %v2935 = vmul.f32 %v2907, %v287
    %v2936 = vmul.f32 %v2910, %v287
    %v2937 = vmul.f32 %v2913, %v287
    %v2938 = vmul.f32 %v2916, %v287
    %v2939 = vmul.f32 %v2919, %v287
    %v2940 = vmul.f32 %v2922, %v287
    %v2941 = vmul.f32 %v2925, %v287
    %v2942 = vsub.f32 %v2816, %v2926
    %v2943 = vsub.f32 %v2819, %v2927
    %v2944 = vsub.f32 %v2824, %v2928
    %v2945 = vsub.f32 %v2827, %v2929
    %v2946 = vsub.f32 %v2832, %v2930
    %v2947 = vsub.f32 %v2835, %v2931
    %v2948 = vsub.f32 %v2840, %v2932
    %v2949 = vsub.f32 %v2843, %v2933
    %v2950 = vsub.f32 %v2848, %v2934
    %v2951 = vsub.f32 %v2851, %v2935
    %v2952 = vsub.f32 %v2856, %v2936
    %v2953 = vsub.f32 %v2859, %v2937
    %v2954 = vsub.f32 %v2864, %v2938
    %v2955 = vsub.f32 %v2867, %v2939
    %v2956 = vsub.f32 %v2872, %v2940
    %v2957 = vsub.f32 %v2875, %v2941
    %v2958 = vmul.f32 %v2942, %v2942
    %v2959 = vmul.f32 %v2943, %v2943
    %v2960 = vmul.f32 %v2944, %v2944
    %v2961 = vmul.f32 %v2945, %v2945
    %v2962 = vmul.f32 %v2946, %v2946
    %v2963 = vmul.f32 %v2947, %v2947
    %v2964 = vmul.f32 %v2948, %v2948
    %v2965 = vmul.f32 %v2949, %v2949
    %v2966 = vmul.f32 %v2950, %v2950
    %v2967 = vmul.f32 %v2951, %v2951
    %v2968 = vmul.f32 %v2952, %v2952
    %v2969 = vmul.f32 %v2953, %v2953
    %v2970 = vmul.f32 %v2954, %v2954
    %v2971 = vmul.f32 %v2955, %v2955
    %v2972 = vmul.f32 %v2956, %v2956
    %v2973 = vmul.f32 %v2957, %v2957
    %v2974 = vsel %vm238, %v2958, 0.0
    %2975 = vadd.xlane.f32.xlu0 %v2974
    %v2976 = vpop.xlane.xlu0 %2975
    %v2977 = vsel %vm238, %v2959, 0.0
    %2978 = vadd.xlane.f32.xlu0 %v2977
    %v2979 = vpop.xlane.xlu0 %2978
    %v2980 = vsel %vm238, %v2960, 0.0
    %2981 = vadd.xlane.f32.xlu0 %v2980
    %v2982 = vpop.xlane.xlu0 %2981
    %v2983 = vsel %vm238, %v2961, 0.0
    %2984 = vadd.xlane.f32.xlu0 %v2983
    %v2985 = vpop.xlane.xlu0 %2984
    %v2986 = vsel %vm238, %v2962, 0.0
    %2987 = vadd.xlane.f32.xlu0 %v2986
    %v2988 = vpop.xlane.xlu0 %2987
    %v2989 = vsel %vm238, %v2963, 0.0
    %2990 = vadd.xlane.f32.xlu0 %v2989
    %v2991 = vpop.xlane.xlu0 %2990
    %v2992 = vsel %vm238, %v2964, 0.0
    %2993 = vadd.xlane.f32.xlu0 %v2992
    %v2994 = vpop.xlane.xlu0 %2993
    %v2995 = vsel %vm238, %v2965, 0.0
    %2996 = vadd.xlane.f32.xlu0 %v2995
    %v2997 = vpop.xlane.xlu0 %2996
    %v2998 = vsel %vm238, %v2966, 0.0
    %2999 = vadd.xlane.f32.xlu0 %v2998
    %v3000 = vpop.xlane.xlu0 %2999
    %v3001 = vsel %vm238, %v2967, 0.0
    %3002 = vadd.xlane.f32.xlu0 %v3001
    %v3003 = vpop.xlane.xlu0 %3002
    %v3004 = vsel %vm238, %v2968, 0.0
    %3005 = vadd.xlane.f32.xlu0 %v3004
    %v3006 = vpop.xlane.xlu0 %3005
    %v3007 = vsel %vm238, %v2969, 0.0
    %3008 = vadd.xlane.f32.xlu0 %v3007
    %v3009 = vpop.xlane.xlu0 %3008
    %v3010 = vsel %vm238, %v2970, 0.0
    %3011 = vadd.xlane.f32.xlu0 %v3010
    %v3012 = vpop.xlane.xlu0 %3011
    %v3013 = vsel %vm238, %v2971, 0.0
    %3014 = vadd.xlane.f32.xlu0 %v3013
    %v3015 = vpop.xlane.xlu0 %3014
    %v3016 = vsel %vm238, %v2972, 0.0
    %3017 = vadd.xlane.f32.xlu0 %v3016
    %v3018 = vpop.xlane.xlu0 %3017
    %v3019 = vsel %vm238, %v2973, 0.0
    %3020 = vadd.xlane.f32.xlu0 %v3019
    %v3021 = vpop.xlane.xlu0 %3020
    %v3022 = vmul.f32 %v2976, %v287
    %v3023 = vmul.f32 %v2979, %v287
    %v3024 = vmul.f32 %v2982, %v287
    %v3025 = vmul.f32 %v2985, %v287
    %v3026 = vmul.f32 %v2988, %v287
    %v3027 = vmul.f32 %v2991, %v287
    %v3028 = vmul.f32 %v2994, %v287
    %v3029 = vmul.f32 %v2997, %v287
    %v3030 = vmul.f32 %v3000, %v287
    %v3031 = vmul.f32 %v3003, %v287
    %v3032 = vmul.f32 %v3006, %v287
    %v3033 = vmul.f32 %v3009, %v287
    %v3034 = vmul.f32 %v3012, %v287
    %v3035 = vmul.f32 %v3015, %v287
    %v3036 = vmul.f32 %v3018, %v287
    %v3037 = vmul.f32 %v3021, %v287
    %v3038 = vadd.f32 %v3022, 1e-05
    %v3039 = vadd.f32 %v3023, 1e-05
    %v3040 = vadd.f32 %v3024, 1e-05
    %v3041 = vadd.f32 %v3025, 1e-05
    %v3042 = vadd.f32 %v3026, 1e-05
    %v3043 = vadd.f32 %v3027, 1e-05
    %v3044 = vadd.f32 %v3028, 1e-05
    %v3045 = vadd.f32 %v3029, 1e-05
    %v3046 = vadd.f32 %v3030, 1e-05
    %v3047 = vadd.f32 %v3031, 1e-05
    %v3048 = vadd.f32 %v3032, 1e-05
    %v3049 = vadd.f32 %v3033, 1e-05
    %v3050 = vadd.f32 %v3034, 1e-05
    %v3051 = vadd.f32 %v3035, 1e-05
    %v3052 = vadd.f32 %v3036, 1e-05
    %v3053 = vadd.f32 %v3037, 1e-05
    %v3054 = vrsqrt.pop %v3038
    %v3055 = vrsqrt.pop %v3039
    %v3056 = vrsqrt.pop %v3040
    %v3057 = vrsqrt.pop %v3041
    %v3058 = vrsqrt.pop %v3042
    %v3059 = vrsqrt.pop %v3043
    %v3060 = vrsqrt.pop %v3044
    %v3061 = vrsqrt.pop %v3045
    %v3062 = vrsqrt.pop %v3046
    %v3063 = vrsqrt.pop %v3047
    %v3064 = vrsqrt.pop %v3048
    %v3065 = vrsqrt.pop %v3049
    %v3066 = vrsqrt.pop %v3050
    %v3067 = vrsqrt.pop %v3051
    %v3068 = vrsqrt.pop %v3052
    %v3069 = vrsqrt.pop %v3053
    %v3070 = vmul.f32 %v2942, %v3054
    %v3071 = vmul.f32 %v2943, %v3055
    %v3072 = vmul.f32 %v2944, %v3056
    %v3073 = vmul.f32 %v2945, %v3057
    %v3074 = vmul.f32 %v2946, %v3058
    %v3075 = vmul.f32 %v2947, %v3059
    %v3076 = vmul.f32 %v2948, %v3060
    %v3077 = vmul.f32 %v2949, %v3061
    %v3078 = vmul.f32 %v2950, %v3062
    %v3079 = vmul.f32 %v2951, %v3063
    %v3080 = vmul.f32 %v2952, %v3064
    %v3081 = vmul.f32 %v2953, %v3065
    %v3082 = vmul.f32 %v2954, %v3066
    %v3083 = vmul.f32 %v2955, %v3067
    %v3084 = vmul.f32 %v2956, %v3068
    %v3085 = vmul.f32 %v2957, %v3069
    %v3086 = vlaneseq
    %v3087 = vshrl.u32 %v3086, 7
    %v3088 = vsub.s32 7, %v3087
    %v3089 = vrot.slane %v33, %v3088
    %v3090 = vmul.f32 %v3070, %v3089
    %v3091 = vmul.f32 %v3071, %v3089
    %v3092 = vmul.f32 %v3072, %v3089
    %v3093 = vmul.f32 %v3073, %v3089
    %v3094 = vmul.f32 %v3074, %v3089
    %v3095 = vmul.f32 %v3075, %v3089
    %v3096 = vmul.f32 %v3076, %v3089
    %v3097 = vmul.f32 %v3077, %v3089
    %v3098 = vmul.f32 %v3078, %v3089
    %v3099 = vmul.f32 %v3079, %v3089
    %v3100 = vmul.f32 %v3080, %v3089
    %v3101 = vmul.f32 %v3081, %v3089
    %v3102 = vmul.f32 %v3082, %v3089
    %v3103 = vmul.f32 %v3083, %v3089
    %v3104 = vmul.f32 %v3084, %v3089
    %v3105 = vmul.f32 %v3085, %v3089
    %v3106 = vlaneseq
    %v3107 = vshrl.u32 %v3106, 7
    %v3108 = vsub.s32 0, %v3107
    %v3109 = vrot.slane %v34, %v3108
    %v3110 = vadd.f32 %v3090, %v3109
    %v3111 = vadd.f32 %v3091, %v3109
    %v3112 = vadd.f32 %v3092, %v3109
    %v3113 = vadd.f32 %v3093, %v3109
    %v3114 = vadd.f32 %v3094, %v3109
    %v3115 = vadd.f32 %v3095, %v3109
    %v3116 = vadd.f32 %v3096, %v3109
    %v3117 = vadd.f32 %v3097, %v3109
    %v3118 = vadd.f32 %v3098, %v3109
    %v3119 = vadd.f32 %v3099, %v3109
    %v3120 = vadd.f32 %v3100, %v3109
    %v3121 = vadd.f32 %v3101, %v3109
    %v3122 = vadd.f32 %v3102, %v3109
    %v3123 = vadd.f32 %v3103, %v3109
    %v3124 = vadd.f32 %v3104, %v3109
    %v3125 = vadd.f32 %v3105, %v3109
    %v3126 = vmax.f32 %v3110, 0.0
    %v3127 = vmax.f32 %v3111, 0.0
    %v3128 = vmax.f32 %v3112, 0.0
    %v3129 = vmax.f32 %v3113, 0.0
    %v3130 = vmax.f32 %v3114, 0.0
    %v3131 = vmax.f32 %v3115, 0.0
    %v3132 = vmax.f32 %v3116, 0.0
    %v3133 = vmax.f32 %v3117, 0.0
    %v3134 = vmax.f32 %v3118, 0.0
    %v3135 = vmax.f32 %v3119, 0.0
    %v3136 = vmax.f32 %v3120, 0.0
    %v3137 = vmax.f32 %v3121, 0.0
    %v3138 = vmax.f32 %v3122, 0.0
    %v3139 = vmax.f32 %v3123, 0.0
    %v3140 = vmax.f32 %v3124, 0.0
    %v3141 = vmax.f32 %v3125, 0.0
    %v3142 = vadd.f32 %v2128, %v3126
    %v3143 = vadd.f32 %v2129, %v3127
    %v3144 = vadd.f32 %v2130, %v3128
    %v3145 = vadd.f32 %v2131, %v3129
    %v3146 = vadd.f32 %v2132, %v3130
    %v3147 = vadd.f32 %v2133, %v3131
    %v3148 = vadd.f32 %v2134, %v3132
    %v3149 = vadd.f32 %v2135, %v3133
    %v3150 = vadd.f32 %v2136, %v3134
    %v3151 = vadd.f32 %v2137, %v3135
    %v3152 = vadd.f32 %v2138, %v3136
    %v3153 = vadd.f32 %v2139, %v3137
    %v3154 = vadd.f32 %v2140, %v3138
    %v3155 = vadd.f32 %v2141, %v3139
    %v3156 = vadd.f32 %v2142, %v3140
    %v3157 = vadd.f32 %v2143, %v3141
    %v3158 = vpack.c.bf16 %v3143, %v3142
    %v3159 = vpack.c.bf16 %v3145, %v3144
    %v3160 = vpack.c.bf16 %v3147, %v3146
    %v3161 = vpack.c.bf16 %v3149, %v3148
    %v3162 = vpack.c.bf16 %v3151, %v3150
    %v3163 = vpack.c.bf16 %v3153, %v3152
    %v3164 = vpack.c.bf16 %v3155, %v3154
    %v3165 = vpack.c.bf16 %v3157, %v3156
    %3166 = vmatprep.subr.bf16.mxu0 0
    %3167 = vmatpush1.bf16.msra.mxu0 %v3158
    %3168 = vmatprep.subr.bf16.mxu0 0
    %3169 = vmatpush1.bf16.msra.mxu0 %v3159
    %3170 = vmatprep.subr.bf16.mxu0 0
    %3171 = vmatpush1.bf16.msra.mxu0 %v3160
    %3172 = vmatprep.subr.bf16.mxu0 0
    %3173 = vmatpush1.bf16.msra.mxu0 %v3161
    %3174 = vmatprep.subr.bf16.mxu0 0
    %3175 = vmatpush1.bf16.msra.mxu0 %v3162
    %3176 = vmatprep.subr.bf16.mxu0 0
    %3177 = vmatpush1.bf16.msra.mxu0 %v3163
    %3178 = vmatprep.subr.bf16.mxu0 0
    %3179 = vmatpush1.bf16.msra.mxu0 %v3164
    %3180 = vmatprep.subr.bf16.mxu0 0
    %3181 = vmatpush1.bf16.msra.mxu0 %v3165
    %3182 = vmatprep.subr.bf16.mxu0 0
    %3183 = vmatpush1.bf16.msra.mxu0 0
    %3184 = vmatprep.subr.bf16.mxu0 0
    %3185 = vmatpush1.bf16.msra.mxu0 0
    %3186 = vmatprep.subr.bf16.mxu0 0
    %3187 = vmatpush1.bf16.msra.mxu0 0
    %3188 = vmatprep.subr.bf16.mxu0 0
    %3189 = vmatpush1.bf16.msra.mxu0 0
    %3190 = vmatprep.subr.bf16.mxu0 0
    %3191 = vmatpush1.bf16.msra.mxu0 0
    %3192 = vmatprep.subr.bf16.mxu0 0
    %3193 = vmatpush1.bf16.msra.mxu0 0
    %3194 = vmatprep.subr.bf16.mxu0 0
    %3195 = vmatpush1.bf16.msra.mxu0 0
    %3196 = vmatprep.subr.bf16.mxu0 0
    %3197 = vmatpush1.bf16.msra.mxu0 0
    %3198 = vmatprep.mubr.bf16.mxu0 0
    %3199 = vmatmul.mubr.bf16.gmra.mrb[0].mxu0 %v688
    %v3200 = vpop.f32.mrb[0].mxu0
    %v3201 = vadd.f32 0.0, %v3200
    %v3202 = vpop.f32.mrb[0].mxu0
    %v3203 = vpop.f32.mrb[0].mxu0
    %v3204 = vadd.f32 0.0, %v3203
    %v3205 = vpop.f32.mrb[0].mxu0
    %3206 = vmatprep.mubr.bf16.mxu0 0
    %3207 = vmatmul.mubr.bf16.gmra.mrb[0].mxu0 %v689
    %v3208 = vpop.f32.mrb[0].mxu0
    %v3209 = vadd.f32 0.0, %v3208
    %v3210 = vpop.f32.mrb[0].mxu0
    %v3211 = vpop.f32.mrb[0].mxu0
    %v3212 = vadd.f32 0.0, %v3211
    %v3213 = vpop.f32.mrb[0].mxu0
    %3214 = vmatprep.mubr.bf16.mxu0 0
    %3215 = vmatmul.mubr.bf16.gmra.mrb[0].mxu0 %v690
    %v3216 = vpop.f32.mrb[0].mxu0
    %v3217 = vadd.f32 0.0, %v3216
    %v3218 = vpop.f32.mrb[0].mxu0
    %v3219 = vpop.f32.mrb[0].mxu0
    %v3220 = vadd.f32 0.0, %v3219
    %v3221 = vpop.f32.mrb[0].mxu0
    %3222 = vmatprep.mubr.bf16.mxu0 0
    %3223 = vmatmul.mubr.bf16.gmra.mrb[0].mxu0 %v691
    %v3224 = vpop.f32.mrb[0].mxu0
    %v3225 = vadd.f32 0.0, %v3224
    %v3226 = vpop.f32.mrb[0].mxu0
    %v3227 = vpop.f32.mrb[0].mxu0
    %v3228 = vadd.f32 0.0, %v3227
    %v3229 = vpop.f32.mrb[0].mxu0
    %3230 = vmatprep.mubr.bf16.mxu0 0
    %3231 = vmatmul.mubr.bf16.gmra.mrb[0].mxu0 %v692
    %v3232 = vpop.f32.mrb[0].mxu0
    %v3233 = vadd.f32 0.0, %v3232
    %v3234 = vpop.f32.mrb[0].mxu0
    %v3235 = vpop.f32.mrb[0].mxu0
    %v3236 = vadd.f32 0.0, %v3235
    %v3237 = vpop.f32.mrb[0].mxu0
    %3238 = vmatprep.mubr.bf16.mxu0 0
    %3239 = vmatmul.mubr.bf16.gmra.mrb[0].mxu0 %v693
    %v3240 = vpop.f32.mrb[0].mxu0
    %v3241 = vadd.f32 0.0, %v3240
    %v3242 = vpop.f32.mrb[0].mxu0
    %v3243 = vpop.f32.mrb[0].mxu0
    %v3244 = vadd.f32 0.0, %v3243
    %v3245 = vpop.f32.mrb[0].mxu0
    %3246 = vmatprep.mubr.bf16.mxu0 0
    %3247 = vmatmul.mubr.bf16.gmra.mrb[0].mxu0 %v694
    %v3248 = vpop.f32.mrb[0].mxu0
    %v3249 = vadd.f32 0.0, %v3248
    %v3250 = vpop.f32.mrb[0].mxu0
    %v3251 = vpop.f32.mrb[0].mxu0
    %v3252 = vadd.f32 0.0, %v3251
    %v3253 = vpop.f32.mrb[0].mxu0
    %3254 = vmatprep.mubr.bf16.mxu0 0
    %3255 = vmatmul.mubr.bf16.gmra.mrb[0].mxu0 %v695
    %v3256 = vpop.f32.mrb[0].mxu0
    %v3257 = vadd.f32 0.0, %v3256
    %v3258 = vpop.f32.mrb[0].mxu0
    %v3259 = vpop.f32.mrb[0].mxu0
    %v3260 = vadd.f32 0.0, %v3259
    %v3261 = vpop.f32.mrb[0].mxu0
    %3262 = vmatprep.mubr.bf16.mxu0 0
    %3263 = vmatmul.mubr.bf16.gmra.mrb[0].mxu0 %v696
    %v3264 = vpop.f32.mrb[0].mxu0
    %v3265 = vadd.f32 0.0, %v3264
    %v3266 = vpop.f32.mrb[0].mxu0
    %v3267 = vpop.f32.mrb[0].mxu0
    %v3268 = vadd.f32 0.0, %v3267
    %v3269 = vpop.f32.mrb[0].mxu0
    %3270 = vmatprep.mubr.bf16.mxu0 0
    %3271 = vmatmul.mubr.bf16.gmra.mrb[0].mxu0 %v697
    %v3272 = vpop.f32.mrb[0].mxu0
    %v3273 = vadd.f32 0.0, %v3272
    %v3274 = vpop.f32.mrb[0].mxu0
    %v3275 = vpop.f32.mrb[0].mxu0
    %v3276 = vadd.f32 0.0, %v3275
    %v3277 = vpop.f32.mrb[0].mxu0
    %3278 = vmatprep.mubr.bf16.mxu0 0
    %3279 = vmatmul.mubr.bf16.gmra.mrb[0].mxu0 %v698
    %v3280 = vpop.f32.mrb[0].mxu0
    %v3281 = vadd.f32 0.0, %v3280
    %v3282 = vpop.f32.mrb[0].mxu0
    %v3283 = vpop.f32.mrb[0].mxu0
    %v3284 = vadd.f32 0.0, %v3283
    %v3285 = vpop.f32.mrb[0].mxu0
    %3286 = vmatprep.mubr.bf16.mxu0 0
    %3287 = vmatmul.mubr.bf16.gmra.mrb[0].mxu0 %v699
    %v3288 = vpop.f32.mrb[0].mxu0
    %v3289 = vadd.f32 0.0, %v3288
    %v3290 = vpop.f32.mrb[0].mxu0
    %v3291 = vpop.f32.mrb[0].mxu0
    %v3292 = vadd.f32 0.0, %v3291
    %v3293 = vpop.f32.mrb[0].mxu0
    %3294 = vmatprep.mubr.bf16.mxu0 0
    %3295 = vmatmul.mubr.bf16.gmra.mrb[0].mxu0 %v700
    %v3296 = vpop.f32.mrb[0].mxu0
    %v3297 = vadd.f32 0.0, %v3296
    %v3298 = vpop.f32.mrb[0].mxu0
    %v3299 = vpop.f32.mrb[0].mxu0
    %v3300 = vadd.f32 0.0, %v3299
    %v3301 = vpop.f32.mrb[0].mxu0
    %3302 = vmatprep.mubr.bf16.mxu0 0
    %3303 = vmatmul.mubr.bf16.gmra.mrb[0].mxu0 %v701
    %v3304 = vpop.f32.mrb[0].mxu0
    %v3305 = vadd.f32 0.0, %v3304
    %v3306 = vpop.f32.mrb[0].mxu0
    %v3307 = vpop.f32.mrb[0].mxu0
    %v3308 = vadd.f32 0.0, %v3307
    %v3309 = vpop.f32.mrb[0].mxu0
    %3310 = vmatprep.mubr.bf16.mxu0 0
    %3311 = vmatmul.mubr.bf16.gmra.mrb[0].mxu0 %v702
    %v3312 = vpop.f32.mrb[0].mxu0
    %v3313 = vadd.f32 0.0, %v3312
    %v3314 = vpop.f32.mrb[0].mxu0
    %v3315 = vpop.f32.mrb[0].mxu0
    %v3316 = vadd.f32 0.0, %v3315
    %v3317 = vpop.f32.mrb[0].mxu0
    %3318 = vmatprep.mubr.bf16.mxu0 0
    %3319 = vmatmul.mubr.bf16.gmra.mrb[0].mxu0 %v703
    %v3320 = vpop.f32.mrb[0].mxu0
    %v3321 = vadd.f32 0.0, %v3320
    %v3322 = vpop.f32.mrb[0].mxu0
    %v3323 = vpop.f32.mrb[0].mxu0
    %v3324 = vadd.f32 0.0, %v3323
    %v3325 = vpop.f32.mrb[0].mxu0
    %3326 = vmatprep.mubr.bf16.mxu0 0
    %3327 = vmatmul.mubr.bf16.gmra.mrb[0].mxu0 %v704
    %v3328 = vpop.f32.mrb[0].mxu0
    %v3329 = vadd.f32 0.0, %v3328
    %v3330 = vpop.f32.mrb[0].mxu0
    %v3331 = vpop.f32.mrb[0].mxu0
    %v3332 = vadd.f32 0.0, %v3331
    %v3333 = vpop.f32.mrb[0].mxu0
    %3334 = vmatprep.mubr.bf16.mxu0 0
    %3335 = vmatmul.mubr.bf16.gmra.mrb[0].mxu0 %v705
    %v3336 = vpop.f32.mrb[0].mxu0
    %v3337 = vadd.f32 0.0, %v3336
    %v3338 = vpop.f32.mrb[0].mxu0
    %v3339 = vpop.f32.mrb[0].mxu0
    %v3340 = vadd.f32 0.0, %v3339
    %v3341 = vpop.f32.mrb[0].mxu0
    %3342 = vmatprep.mubr.bf16.mxu0 0
    %3343 = vmatmul.mubr.bf16.gmra.mrb[0].mxu0 %v706
    %v3344 = vpop.f32.mrb[0].mxu0
    %v3345 = vadd.f32 0.0, %v3344
    %v3346 = vpop.f32.mrb[0].mxu0
    %v3347 = vpop.f32.mrb[0].mxu0
    %v3348 = vadd.f32 0.0, %v3347
    %v3349 = vpop.f32.mrb[0].mxu0
    %3350 = vmatprep.mubr.bf16.mxu0 0
    %3351 = vmatmul.mubr.bf16.gmra.mrb[0].mxu0 %v707
    %v3352 = vpop.f32.mrb[0].mxu0
    %v3353 = vadd.f32 0.0, %v3352
    %v3354 = vpop.f32.mrb[0].mxu0
    %v3355 = vpop.f32.mrb[0].mxu0
    %v3356 = vadd.f32 0.0, %v3355
    %v3357 = vpop.f32.mrb[0].mxu0
    %3358 = vmatprep.mubr.bf16.mxu0 0
    %3359 = vmatmul.mubr.bf16.gmra.mrb[0].mxu0 %v708
    %v3360 = vpop.f32.mrb[0].mxu0
    %v3361 = vadd.f32 0.0, %v3360
    %v3362 = vpop.f32.mrb[0].mxu0
    %v3363 = vpop.f32.mrb[0].mxu0
    %v3364 = vadd.f32 0.0, %v3363
    %v3365 = vpop.f32.mrb[0].mxu0
    %3366 = vmatprep.mubr.bf16.mxu0 0
    %3367 = vmatmul.mubr.bf16.gmra.mrb[0].mxu0 %v709
    %v3368 = vpop.f32.mrb[0].mxu0
    %v3369 = vadd.f32 0.0, %v3368
    %v3370 = vpop.f32.mrb[0].mxu0
    %v3371 = vpop.f32.mrb[0].mxu0
    %v3372 = vadd.f32 0.0, %v3371
    %v3373 = vpop.f32.mrb[0].mxu0
    %3374 = vmatprep.mubr.bf16.mxu0 0
    %3375 = vmatmul.mubr.bf16.gmra.mrb[0].mxu0 %v710
    %v3376 = vpop.f32.mrb[0].mxu0
    %v3377 = vadd.f32 0.0, %v3376
    %v3378 = vpop.f32.mrb[0].mxu0
    %v3379 = vpop.f32.mrb[0].mxu0
    %v3380 = vadd.f32 0.0, %v3379
    %v3381 = vpop.f32.mrb[0].mxu0
    %3382 = vmatprep.mubr.bf16.mxu0 0
    %3383 = vmatmul.mubr.bf16.gmra.mrb[0].mxu0 %v711
    %v3384 = vpop.f32.mrb[0].mxu0
    %v3385 = vadd.f32 0.0, %v3384
    %v3386 = vpop.f32.mrb[0].mxu0
    %v3387 = vpop.f32.mrb[0].mxu0
    %v3388 = vadd.f32 0.0, %v3387
    %v3389 = vpop.f32.mrb[0].mxu0
    %3390 = vmatprep.mubr.bf16.mxu0 0
    %3391 = vmatmul.mubr.bf16.gmra.mrb[0].mxu0 %v712
    %v3392 = vpop.f32.mrb[0].mxu0
    %v3393 = vadd.f32 0.0, %v3392
    %v3394 = vpop.f32.mrb[0].mxu0
    %v3395 = vpop.f32.mrb[0].mxu0
    %v3396 = vadd.f32 0.0, %v3395
    %v3397 = vpop.f32.mrb[0].mxu0
    %3398 = vmatprep.mubr.bf16.mxu0 0
    %3399 = vmatmul.mubr.bf16.gmra.mrb[0].mxu0 %v713
    %v3400 = vpop.f32.mrb[0].mxu0
    %v3401 = vadd.f32 0.0, %v3400
    %v3402 = vpop.f32.mrb[0].mxu0
    %v3403 = vpop.f32.mrb[0].mxu0
    %v3404 = vadd.f32 0.0, %v3403
    %v3405 = vpop.f32.mrb[0].mxu0
    %3406 = vmatprep.mubr.bf16.mxu0 0
    %3407 = vmatmul.mubr.bf16.gmra.mrb[0].mxu0 %v714
    %v3408 = vpop.f32.mrb[0].mxu0
    %v3409 = vadd.f32 0.0, %v3408
    %v3410 = vpop.f32.mrb[0].mxu0
    %v3411 = vpop.f32.mrb[0].mxu0
    %v3412 = vadd.f32 0.0, %v3411
    %v3413 = vpop.f32.mrb[0].mxu0
    %3414 = vmatprep.mubr.bf16.mxu0 0
    %3415 = vmatmul.mubr.bf16.gmra.mrb[0].mxu0 %v715
    %v3416 = vpop.f32.mrb[0].mxu0
    %v3417 = vadd.f32 0.0, %v3416
    %v3418 = vpop.f32.mrb[0].mxu0
    %v3419 = vpop.f32.mrb[0].mxu0
    %v3420 = vadd.f32 0.0, %v3419
    %v3421 = vpop.f32.mrb[0].mxu0
    %3422 = vmatprep.mubr.bf16.mxu0 0
    %3423 = vmatmul.mubr.bf16.gmra.mrb[0].mxu0 %v716
    %v3424 = vpop.f32.mrb[0].mxu0
    %v3425 = vadd.f32 0.0, %v3424
    %v3426 = vpop.f32.mrb[0].mxu0
    %v3427 = vpop.f32.mrb[0].mxu0
    %v3428 = vadd.f32 0.0, %v3427
    %v3429 = vpop.f32.mrb[0].mxu0
    %3430 = vmatprep.mubr.bf16.mxu0 0
    %3431 = vmatmul.mubr.bf16.gmra.mrb[0].mxu0 %v717
    %v3432 = vpop.f32.mrb[0].mxu0
    %v3433 = vadd.f32 0.0, %v3432
    %v3434 = vpop.f32.mrb[0].mxu0
    %v3435 = vpop.f32.mrb[0].mxu0
    %v3436 = vadd.f32 0.0, %v3435
    %v3437 = vpop.f32.mrb[0].mxu0
    %3438 = vmatprep.mubr.bf16.mxu0 0
    %3439 = vmatmul.mubr.bf16.gmra.mrb[0].mxu0 %v718
    %v3440 = vpop.f32.mrb[0].mxu0
    %v3441 = vadd.f32 0.0, %v3440
    %v3442 = vpop.f32.mrb[0].mxu0
    %v3443 = vpop.f32.mrb[0].mxu0
    %v3444 = vadd.f32 0.0, %v3443
    %v3445 = vpop.f32.mrb[0].mxu0
    %3446 = vmatprep.mubr.bf16.mxu0 0
    %3447 = vmatmul.mubr.bf16.gmra.mrb[0].mxu0 %v719
    %v3448 = vpop.f32.mrb[0].mxu0
    %v3449 = vadd.f32 0.0, %v3448
    %v3450 = vpop.f32.mrb[0].mxu0
    %v3451 = vpop.f32.mrb[0].mxu0
    %v3452 = vadd.f32 0.0, %v3451
    %v3453 = vpop.f32.mrb[0].mxu0
    %3454 = vdwg.mxu0
    %v3455 = vmul.f32 %v3201, %v1108
    %v3456 = vmul.f32 %v3204, %v1113
    %v3457 = vmul.f32 %v3209, %v1118
    %v3458 = vmul.f32 %v3212, %v1123
    %v3459 = vmul.f32 %v3217, %v1128
    %v3460 = vmul.f32 %v3220, %v1133
    %v3461 = vmul.f32 %v3225, %v1138
    %v3462 = vmul.f32 %v3228, %v1143
    %v3463 = vmul.f32 %v3233, %v1148
    %v3464 = vmul.f32 %v3236, %v1153
    %v3465 = vmul.f32 %v3241, %v1158
    %v3466 = vmul.f32 %v3244, %v1163
    %v3467 = vmul.f32 %v3249, %v1168
    %v3468 = vmul.f32 %v3252, %v1173
    %v3469 = vmul.f32 %v3257, %v1178
    %v3470 = vmul.f32 %v3260, %v1183
    %v3471 = vmul.f32 %v3265, %v1188
    %v3472 = vmul.f32 %v3268, %v1193
    %v3473 = vmul.f32 %v3273, %v1198
    %v3474 = vmul.f32 %v3276, %v1203
    %v3475 = vmul.f32 %v3281, %v1208
    %v3476 = vmul.f32 %v3284, %v1213
    %v3477 = vmul.f32 %v3289, %v1218
    %v3478 = vmul.f32 %v3292, %v1223
    %v3479 = vmul.f32 %v3297, %v1228
    %v3480 = vmul.f32 %v3300, %v1233
    %v3481 = vmul.f32 %v3305, %v1238
    %v3482 = vmul.f32 %v3308, %v1243
    %v3483 = vmul.f32 %v3313, %v1248
    %v3484 = vmul.f32 %v3316, %v1253
    %v3485 = vmul.f32 %v3321, %v1258
    %v3486 = vmul.f32 %v3324, %v1263
    %v3487 = vmul.f32 %v3329, %v1268
    %v3488 = vmul.f32 %v3332, %v1273
    %v3489 = vmul.f32 %v3337, %v1278
    %v3490 = vmul.f32 %v3340, %v1283
    %v3491 = vmul.f32 %v3345, %v1288
    %v3492 = vmul.f32 %v3348, %v1293
    %v3493 = vmul.f32 %v3353, %v1298
    %v3494 = vmul.f32 %v3356, %v1303
    %v3495 = vmul.f32 %v3361, %v1308
    %v3496 = vmul.f32 %v3364, %v1313
    %v3497 = vmul.f32 %v3369, %v1318
    %v3498 = vmul.f32 %v3372, %v1323
    %v3499 = vmul.f32 %v3377, %v1328
    %v3500 = vmul.f32 %v3380, %v1333
    %v3501 = vmul.f32 %v3385, %v1338
    %v3502 = vmul.f32 %v3388, %v1343
    %v3503 = vmul.f32 %v3393, %v1348
    %v3504 = vmul.f32 %v3396, %v1353
    %v3505 = vmul.f32 %v3401, %v1358
    %v3506 = vmul.f32 %v3404, %v1363
    %v3507 = vmul.f32 %v3409, %v1368
    %v3508 = vmul.f32 %v3412, %v1373
    %v3509 = vmul.f32 %v3417, %v1378
    %v3510 = vmul.f32 %v3420, %v1383
    %v3511 = vmul.f32 %v3425, %v1388
    %v3512 = vmul.f32 %v3428, %v1393
    %v3513 = vmul.f32 %v3433, %v1398
    %v3514 = vmul.f32 %v3436, %v1403
    %v3515 = vmul.f32 %v3441, %v1408
    %v3516 = vmul.f32 %v3444, %v1413
    %v3517 = vmul.f32 %v3449, %v1418
    %v3518 = vmul.f32 %v3452, %v1423
    %v3519 = vpack.c.bf16 %v3456, %v3455
    %v3520 = vpack.c.bf16 %v3458, %v3457
    %v3521 = vpack.c.bf16 %v3460, %v3459
    %v3522 = vpack.c.bf16 %v3462, %v3461
    %v3523 = vpack.c.bf16 %v3464, %v3463
    %v3524 = vpack.c.bf16 %v3466, %v3465
    %v3525 = vpack.c.bf16 %v3468, %v3467
    %v3526 = vpack.c.bf16 %v3470, %v3469
    %v3527 = vpack.c.bf16 %v3472, %v3471
    %v3528 = vpack.c.bf16 %v3474, %v3473
    %v3529 = vpack.c.bf16 %v3476, %v3475
    %v3530 = vpack.c.bf16 %v3478, %v3477
    %v3531 = vpack.c.bf16 %v3480, %v3479
    %v3532 = vpack.c.bf16 %v3482, %v3481
    %v3533 = vpack.c.bf16 %v3484, %v3483
    %v3534 = vpack.c.bf16 %v3486, %v3485
    %v3535 = vpack.c.bf16 %v3488, %v3487
    %v3536 = vpack.c.bf16 %v3490, %v3489
    %v3537 = vpack.c.bf16 %v3492, %v3491
    %v3538 = vpack.c.bf16 %v3494, %v3493
    %v3539 = vpack.c.bf16 %v3496, %v3495
    %v3540 = vpack.c.bf16 %v3498, %v3497
    %v3541 = vpack.c.bf16 %v3500, %v3499
    %v3542 = vpack.c.bf16 %v3502, %v3501
    %v3543 = vpack.c.bf16 %v3504, %v3503
    %v3544 = vpack.c.bf16 %v3506, %v3505
    %v3545 = vpack.c.bf16 %v3508, %v3507
    %v3546 = vpack.c.bf16 %v3510, %v3509
    %v3547 = vpack.c.bf16 %v3512, %v3511
    %v3548 = vpack.c.bf16 %v3514, %v3513
    %v3549 = vpack.c.bf16 %v3516, %v3515
    %v3550 = vpack.c.bf16 %v3518, %v3517
    %3559 = vrot.lane.b32.xlu0 %v3519, 32
    %v3560 = vpop.permute.xlu0 %3559
    %3561 = vrot.lane.b32.xlu0 %v3520, 32
    %v3562 = vpop.permute.xlu0 %3561
    %3563 = vrot.lane.b32.xlu0 %v3521, 32
    %v3564 = vpop.permute.xlu0 %3563
    %3565 = vrot.lane.b32.xlu0 %v3522, 32
    %v3566 = vpop.permute.xlu0 %3565
    %3567 = vrot.lane.b32.xlu0 %v3523, 32
    %v3568 = vpop.permute.xlu0 %3567
    %3569 = vrot.lane.b32.xlu0 %v3524, 32
    %v3570 = vpop.permute.xlu0 %3569
    %3571 = vrot.lane.b32.xlu0 %v3525, 32
    %v3572 = vpop.permute.xlu0 %3571
    %3573 = vrot.lane.b32.xlu0 %v3526, 32
    %v3574 = vpop.permute.xlu0 %3573
    %3583 = vrot.lane.b32.xlu0 %v3527, 64
    %v3584 = vpop.permute.xlu0 %3583
    %3585 = vrot.lane.b32.xlu0 %v3528, 64
    %v3586 = vpop.permute.xlu0 %3585
    %3587 = vrot.lane.b32.xlu0 %v3529, 64
    %v3588 = vpop.permute.xlu0 %3587
    %3589 = vrot.lane.b32.xlu0 %v3530, 64
    %v3590 = vpop.permute.xlu0 %3589
    %3591 = vrot.lane.b32.xlu0 %v3531, 64
    %v3592 = vpop.permute.xlu0 %3591
    %3593 = vrot.lane.b32.xlu0 %v3532, 64
    %v3594 = vpop.permute.xlu0 %3593
    %3595 = vrot.lane.b32.xlu0 %v3533, 64
    %v3596 = vpop.permute.xlu0 %3595
    %3597 = vrot.lane.b32.xlu0 %v3534, 64
    %v3598 = vpop.permute.xlu0 %3597
    %3607 = vrot.lane.b32.xlu0 %v3535, 96
    %v3608 = vpop.permute.xlu0 %3607
    %3609 = vrot.lane.b32.xlu0 %v3536, 96
    %v3610 = vpop.permute.xlu0 %3609
    %3611 = vrot.lane.b32.xlu0 %v3537, 96
    %v3612 = vpop.permute.xlu0 %3611
    %3613 = vrot.lane.b32.xlu0 %v3538, 96
    %v3614 = vpop.permute.xlu0 %3613
    %3615 = vrot.lane.b32.xlu0 %v3539, 96
    %v3616 = vpop.permute.xlu0 %3615
    %3617 = vrot.lane.b32.xlu0 %v3540, 96
    %v3618 = vpop.permute.xlu0 %3617
    %3619 = vrot.lane.b32.xlu0 %v3541, 96
    %v3620 = vpop.permute.xlu0 %3619
    %3621 = vrot.lane.b32.xlu0 %v3542, 96
    %v3622 = vpop.permute.xlu0 %3621
    %v3625 = vsel %vm238, %v3158, %v3560
    %v3628 = vsel %vm238, %v3159, %v3562
    %v3631 = vsel %vm238, %v3160, %v3564
    %v3634 = vsel %vm238, %v3161, %v3566
    %v3637 = vsel %vm238, %v3162, %v3568
    %v3640 = vsel %vm238, %v3163, %v3570
    %v3643 = vsel %vm238, %v3164, %v3572
    %v3646 = vsel %vm238, %v3165, %v3574
    %v3648 = vsel %vm1617, %v3625, %v3584
    %v3650 = vsel %vm1617, %v3628, %v3586
    %v3652 = vsel %vm1617, %v3631, %v3588
    %v3654 = vsel %vm1617, %v3634, %v3590
    %v3656 = vsel %vm1617, %v3637, %v3592
    %v3658 = vsel %vm1617, %v3640, %v3594
    %v3660 = vsel %vm1617, %v3643, %v3596
    %v3662 = vsel %vm1617, %v3646, %v3598
    %v3664 = vsel %vm1634, %v3648, %v3608
    %v3667 = vsel %vm1634, %v3650, %v3610
    %v3670 = vsel %vm1634, %v3652, %v3612
    %v3673 = vsel %vm1634, %v3654, %v3614
    %v3676 = vsel %vm1634, %v3656, %v3616
    %v3679 = vsel %vm1634, %v3658, %v3618
    %v3682 = vsel %vm1634, %v3660, %v3620
    %v3685 = vsel %vm1634, %v3662, %v3622
    %v3687 = vld [vmem:[%s5 + $0xa0] sm:$0xf]
    %v3688 = vld [vmem:[%s5 + $0xa4] sm:$0xf]
    %v3689 = vld [vmem:[%s5 + $0xa8] sm:$0xf]
    %v3690 = vld [vmem:[%s5 + $0xac] sm:$0xf]
    %v3691 = vld [vmem:[%s5 + $0xb0] sm:$0xf]
    %v3692 = vld [vmem:[%s5 + $0xb4] sm:$0xf]
    %v3693 = vld [vmem:[%s5 + $0xb8] sm:$0xf]
    %v3694 = vld [vmem:[%s5 + $0xbc] sm:$0xf]
    %v3695 = vld [vmem:[%s5 + $0xc0] sm:$0xf]
    %v3696 = vld [vmem:[%s5 + $0xc4] sm:$0xf]
    %v3697 = vld [vmem:[%s5 + $0xc8] sm:$0xf]
    %v3698 = vld [vmem:[%s5 + $0xcc] sm:$0xf]
    %v3699 = vld [vmem:[%s5 + $0xd0] sm:$0xf]
    %v3700 = vld [vmem:[%s5 + $0xd4] sm:$0xf]
    %v3701 = vld [vmem:[%s5 + $0xd8] sm:$0xf]
    %v3702 = vld [vmem:[%s5 + $0xdc] sm:$0xf]
    %v3703 = vld [vmem:[%s5 + $0xe0] sm:$0xf]
    %v3704 = vld [vmem:[%s5 + $0xe4] sm:$0xf]
    %v3705 = vld [vmem:[%s5 + $0xe8] sm:$0xf]
    %v3706 = vld [vmem:[%s5 + $0xec] sm:$0xf]
    %v3707 = vlaneseq
    %v3708 = vshrl.u32 %v3707, 7
    %v3709 = vsub.s32 1, %v3708
    %v3710 = vrot.slane %v34, %v3709
    %v3731 = vunpack.c.l.b16 %v3687
    %v3732 = vunpack.c.l.b16 %v3688
    %v3733 = vunpack.c.l.b16 %v3689
    %v3734 = vunpack.c.l.b16 %v3690
    %v3735 = vunpack.c.l.b16 %v3691
    %v3736 = vunpack.c.l.b16 %v3692
    %v3737 = vunpack.c.l.b16 %v3693
    %v3738 = vunpack.c.l.b16 %v3694
    %v3739 = vunpack.c.l.b16 %v3695
    %v3740 = vunpack.c.l.b16 %v3696
    %v3741 = vunpack.c.l.b16 %v3697
    %v3742 = vunpack.c.l.b16 %v3698
    %v3743 = vunpack.c.l.b16 %v3699
    %v3744 = vunpack.c.l.b16 %v3700
    %v3745 = vunpack.c.l.b16 %v3701
    %v3746 = vunpack.c.l.b16 %v3702
    %v3747 = vunpack.c.l.b16 %v3703
    %v3748 = vunpack.c.l.b16 %v3704
    %v3749 = vunpack.c.l.b16 %v3705
    %v3750 = vunpack.c.l.b16 %v3706
    %v3751 = vpack.c.b16 %v3732, %v3731
    %v3752 = vpack.c.b16 %v3734, %v3733
    %v3753 = vpack.c.b16 %v3736, %v3735
    %v3754 = vpack.c.b16 %v3738, %v3737
    %v3755 = vpack.c.b16 %v3740, %v3739
    %v3756 = vpack.c.b16 %v3742, %v3741
    %v3757 = vpack.c.b16 %v3744, %v3743
    %v3758 = vpack.c.b16 %v3746, %v3745
    %v3759 = vpack.c.b16 %v3748, %v3747
    %v3760 = vpack.c.b16 %v3750, %v3749
    %v3772 = vsel %vm238, %v3543, 0
    %v3775 = vsel %vm238, %v3544, 0
    %v3778 = vsel %vm238, %v3545, 0
    %v3781 = vsel %vm238, %v3546, 0
    %v3784 = vsel %vm238, %v3547, 0
    %v3787 = vsel %vm238, %v3548, 0
    %v3790 = vsel %vm238, %v3549, 0
    %v3793 = vsel %vm238, %v3550, 0
    %3795 = vmatprep.subr.bf16.mxu0 0
    %3796 = vmatpush1.bf16.msra.mxu0 %v3751
    %3797 = vmatprep.subr.bf16.mxu0 0
    %3798 = vmatpush1.bf16.msra.mxu0 %v3752
    %3799 = vmatprep.subr.bf16.mxu0 0
    %3800 = vmatpush1.bf16.msra.mxu0 %v3753
    %3801 = vmatprep.subr.bf16.mxu0 0
    %3802 = vmatpush1.bf16.msra.mxu0 %v3754
    %3803 = vmatprep.subr.bf16.mxu0 0
    %3804 = vmatpush1.bf16.msra.mxu0 %v3755
    %3805 = vmatprep.subr.bf16.mxu0 0
    %3806 = vmatpush1.bf16.msra.mxu0 %v3756
    %3807 = vmatprep.subr.bf16.mxu0 0
    %3808 = vmatpush1.bf16.msra.mxu0 %v3757
    %3809 = vmatprep.subr.bf16.mxu0 0
    %3810 = vmatpush1.bf16.msra.mxu0 %v3758
    %3811 = vmatprep.subr.bf16.mxu0 0
    %3812 = vmatpush1.bf16.msra.mxu0 %v3759
    %3813 = vmatprep.subr.bf16.mxu0 0
    %3814 = vmatpush1.bf16.msra.mxu0 %v3760
    %3815 = vmatprep.subr.bf16.mxu0 0
    %3816 = vmatpush1.bf16.msra.mxu0 0
    %3817 = vmatprep.subr.bf16.mxu0 0
    %3818 = vmatpush1.bf16.msra.mxu0 0
    %3819 = vmatprep.subr.bf16.mxu0 0
    %3820 = vmatpush1.bf16.msra.mxu0 0
    %3821 = vmatprep.subr.bf16.mxu0 0
    %3822 = vmatpush1.bf16.msra.mxu0 0
    %3823 = vmatprep.subr.bf16.mxu0 0
    %3824 = vmatpush1.bf16.msra.mxu0 0
    %3825 = vmatprep.subr.bf16.mxu0 0
    %3826 = vmatpush1.bf16.msra.mxu0 0
    %3827 = vmatprep.mubr.bf16.mxu0 %v3772
    %3828 = vmatmul.mubr.bf16.gmra.mrb[0].mxu0 %v3664
    %v3829 = vpop.f32.mrb[0].mxu0
    %v3830 = vadd.f32 %v3710, %v3829
    %v3831 = vpop.f32.mrb[0].mxu0
    %v3832 = vpop.f32.mrb[0].mxu0
    %v3833 = vadd.f32 %v3710, %v3832
    %v3834 = vpop.f32.mrb[0].mxu0
    %3835 = vmatprep.mubr.bf16.mxu0 %v3775
    %3836 = vmatmul.mubr.bf16.gmra.mrb[0].mxu0 %v3667
    %v3837 = vpop.f32.mrb[0].mxu0
    %v3838 = vadd.f32 %v3710, %v3837
    %v3839 = vpop.f32.mrb[0].mxu0
    %v3840 = vpop.f32.mrb[0].mxu0
    %v3841 = vadd.f32 %v3710, %v3840
    %v3842 = vpop.f32.mrb[0].mxu0
    %3843 = vmatprep.mubr.bf16.mxu0 %v3778
    %3844 = vmatmul.mubr.bf16.gmra.mrb[0].mxu0 %v3670
    %v3845 = vpop.f32.mrb[0].mxu0
    %v3846 = vadd.f32 %v3710, %v3845
    %v3847 = vpop.f32.mrb[0].mxu0
    %v3848 = vpop.f32.mrb[0].mxu0
    %v3849 = vadd.f32 %v3710, %v3848
    %v3850 = vpop.f32.mrb[0].mxu0
    %3851 = vmatprep.mubr.bf16.mxu0 %v3781
    %3852 = vmatmul.mubr.bf16.gmra.mrb[0].mxu0 %v3673
    %v3853 = vpop.f32.mrb[0].mxu0
    %v3854 = vadd.f32 %v3710, %v3853
    %v3855 = vpop.f32.mrb[0].mxu0
    %v3856 = vpop.f32.mrb[0].mxu0
    %v3857 = vadd.f32 %v3710, %v3856
    %v3858 = vpop.f32.mrb[0].mxu0
    %3859 = vmatprep.mubr.bf16.mxu0 %v3784
    %3860 = vmatmul.mubr.bf16.gmra.mrb[0].mxu0 %v3676
    %v3861 = vpop.f32.mrb[0].mxu0
    %v3862 = vadd.f32 %v3710, %v3861
    %v3863 = vpop.f32.mrb[0].mxu0
    %v3864 = vpop.f32.mrb[0].mxu0
    %v3865 = vadd.f32 %v3710, %v3864
    %v3866 = vpop.f32.mrb[0].mxu0
    %3867 = vmatprep.mubr.bf16.mxu0 %v3787
    %3868 = vmatmul.mubr.bf16.gmra.mrb[0].mxu0 %v3679
    %v3869 = vpop.f32.mrb[0].mxu0
    %v3870 = vadd.f32 %v3710, %v3869
    %v3871 = vpop.f32.mrb[0].mxu0
    %v3872 = vpop.f32.mrb[0].mxu0
    %v3873 = vadd.f32 %v3710, %v3872
    %v3874 = vpop.f32.mrb[0].mxu0
    %3875 = vmatprep.mubr.bf16.mxu0 %v3790
    %3876 = vmatmul.mubr.bf16.gmra.mrb[0].mxu0 %v3682
    %v3877 = vpop.f32.mrb[0].mxu0
    %v3878 = vadd.f32 %v3710, %v3877
    %v3879 = vpop.f32.mrb[0].mxu0
    %v3880 = vpop.f32.mrb[0].mxu0
    %v3881 = vadd.f32 %v3710, %v3880
    %v3882 = vpop.f32.mrb[0].mxu0
    %3883 = vmatprep.mubr.bf16.mxu0 %v3793
    %3884 = vmatmul.mubr.bf16.gmra.mrb[0].mxu0 %v3685
    %v3885 = vpop.f32.mrb[0].mxu0
    %v3886 = vadd.f32 %v3710, %v3885
    %v3887 = vpop.f32.mrb[0].mxu0
    %v3888 = vpop.f32.mrb[0].mxu0
    %v3889 = vadd.f32 %v3710, %v3888
    %v3890 = vpop.f32.mrb[0].mxu0
    %3891 = vdwg.mxu0
    %v3892 = vsel %vm238, %v3830, 0.0
    %3893 = vadd.xlane.f32.xlu0 %v3892
    %v3894 = vpop.xlane.xlu0 %3893
    %v3895 = vsel %vm238, %v3833, 0.0
    %3896 = vadd.xlane.f32.xlu0 %v3895
    %v3897 = vpop.xlane.xlu0 %3896
    %v3898 = vsel %vm238, %v3838, 0.0
    %3899 = vadd.xlane.f32.xlu0 %v3898
    %v3900 = vpop.xlane.xlu0 %3899
    %v3901 = vsel %vm238, %v3841, 0.0
    %3902 = vadd.xlane.f32.xlu0 %v3901
    %v3903 = vpop.xlane.xlu0 %3902
    %v3904 = vsel %vm238, %v3846, 0.0
    %3905 = vadd.xlane.f32.xlu0 %v3904
    %v3906 = vpop.xlane.xlu0 %3905
    %v3907 = vsel %vm238, %v3849, 0.0
    %3908 = vadd.xlane.f32.xlu0 %v3907
    %v3909 = vpop.xlane.xlu0 %3908
    %v3910 = vsel %vm238, %v3854, 0.0
    %3911 = vadd.xlane.f32.xlu0 %v3910
    %v3912 = vpop.xlane.xlu0 %3911
    %v3913 = vsel %vm238, %v3857, 0.0
    %3914 = vadd.xlane.f32.xlu0 %v3913
    %v3915 = vpop.xlane.xlu0 %3914
    %v3916 = vsel %vm238, %v3862, 0.0
    %3917 = vadd.xlane.f32.xlu0 %v3916
    %v3918 = vpop.xlane.xlu0 %3917
    %v3919 = vsel %vm238, %v3865, 0.0
    %3920 = vadd.xlane.f32.xlu0 %v3919
    %v3921 = vpop.xlane.xlu0 %3920
    %v3922 = vsel %vm238, %v3870, 0.0
    %3923 = vadd.xlane.f32.xlu0 %v3922
    %v3924 = vpop.xlane.xlu0 %3923
    %v3925 = vsel %vm238, %v3873, 0.0
    %3926 = vadd.xlane.f32.xlu0 %v3925
    %v3927 = vpop.xlane.xlu0 %3926
    %v3928 = vsel %vm238, %v3878, 0.0
    %3929 = vadd.xlane.f32.xlu0 %v3928
    %v3930 = vpop.xlane.xlu0 %3929
    %v3931 = vsel %vm238, %v3881, 0.0
    %3932 = vadd.xlane.f32.xlu0 %v3931
    %v3933 = vpop.xlane.xlu0 %3932
    %v3934 = vsel %vm238, %v3886, 0.0
    %3935 = vadd.xlane.f32.xlu0 %v3934
    %v3936 = vpop.xlane.xlu0 %3935
    %v3937 = vsel %vm238, %v3889, 0.0
    %3938 = vadd.xlane.f32.xlu0 %v3937
    %v3939 = vpop.xlane.xlu0 %3938
    %v3940 = vmul.f32 %v3894, %v287
    %v3941 = vmul.f32 %v3897, %v287
    %v3942 = vmul.f32 %v3900, %v287
    %v3943 = vmul.f32 %v3903, %v287
    %v3944 = vmul.f32 %v3906, %v287
    %v3945 = vmul.f32 %v3909, %v287
    %v3946 = vmul.f32 %v3912, %v287
    %v3947 = vmul.f32 %v3915, %v287
    %v3948 = vmul.f32 %v3918, %v287
    %v3949 = vmul.f32 %v3921, %v287
    %v3950 = vmul.f32 %v3924, %v287
    %v3951 = vmul.f32 %v3927, %v287
    %v3952 = vmul.f32 %v3930, %v287
    %v3953 = vmul.f32 %v3933, %v287
    %v3954 = vmul.f32 %v3936, %v287
    %v3955 = vmul.f32 %v3939, %v287
    %v3956 = vsub.f32 %v3830, %v3940
    %v3957 = vsub.f32 %v3833, %v3941
    %v3958 = vsub.f32 %v3838, %v3942
    %v3959 = vsub.f32 %v3841, %v3943
    %v3960 = vsub.f32 %v3846, %v3944
    %v3961 = vsub.f32 %v3849, %v3945
    %v3962 = vsub.f32 %v3854, %v3946
    %v3963 = vsub.f32 %v3857, %v3947
    %v3964 = vsub.f32 %v3862, %v3948
    %v3965 = vsub.f32 %v3865, %v3949
    %v3966 = vsub.f32 %v3870, %v3950
    %v3967 = vsub.f32 %v3873, %v3951
    %v3968 = vsub.f32 %v3878, %v3952
    %v3969 = vsub.f32 %v3881, %v3953
    %v3970 = vsub.f32 %v3886, %v3954
    %v3971 = vsub.f32 %v3889, %v3955
    %v3972 = vmul.f32 %v3956, %v3956
    %v3973 = vmul.f32 %v3957, %v3957
    %v3974 = vmul.f32 %v3958, %v3958
    %v3975 = vmul.f32 %v3959, %v3959
    %v3976 = vmul.f32 %v3960, %v3960
    %v3977 = vmul.f32 %v3961, %v3961
    %v3978 = vmul.f32 %v3962, %v3962
    %v3979 = vmul.f32 %v3963, %v3963
    %v3980 = vmul.f32 %v3964, %v3964
    %v3981 = vmul.f32 %v3965, %v3965
    %v3982 = vmul.f32 %v3966, %v3966
    %v3983 = vmul.f32 %v3967, %v3967
    %v3984 = vmul.f32 %v3968, %v3968
    %v3985 = vmul.f32 %v3969, %v3969
    %v3986 = vmul.f32 %v3970, %v3970
    %v3987 = vmul.f32 %v3971, %v3971
    %v3988 = vsel %vm238, %v3972, 0.0
    %3989 = vadd.xlane.f32.xlu0 %v3988
    %v3990 = vpop.xlane.xlu0 %3989
    %v3991 = vsel %vm238, %v3973, 0.0
    %3992 = vadd.xlane.f32.xlu0 %v3991
    %v3993 = vpop.xlane.xlu0 %3992
    %v3994 = vsel %vm238, %v3974, 0.0
    %3995 = vadd.xlane.f32.xlu0 %v3994
    %v3996 = vpop.xlane.xlu0 %3995
    %v3997 = vsel %vm238, %v3975, 0.0
    %3998 = vadd.xlane.f32.xlu0 %v3997
    %v3999 = vpop.xlane.xlu0 %3998
    %v4000 = vsel %vm238, %v3976, 0.0
    %4001 = vadd.xlane.f32.xlu0 %v4000
    %v4002 = vpop.xlane.xlu0 %4001
    %v4003 = vsel %vm238, %v3977, 0.0
    %4004 = vadd.xlane.f32.xlu0 %v4003
    %v4005 = vpop.xlane.xlu0 %4004
    %v4006 = vsel %vm238, %v3978, 0.0
    %4007 = vadd.xlane.f32.xlu0 %v4006
    %v4008 = vpop.xlane.xlu0 %4007
    %v4009 = vsel %vm238, %v3979, 0.0
    %4010 = vadd.xlane.f32.xlu0 %v4009
    %v4011 = vpop.xlane.xlu0 %4010
    %v4012 = vsel %vm238, %v3980, 0.0
    %4013 = vadd.xlane.f32.xlu0 %v4012
    %v4014 = vpop.xlane.xlu0 %4013
    %v4015 = vsel %vm238, %v3981, 0.0
    %4016 = vadd.xlane.f32.xlu0 %v4015
    %v4017 = vpop.xlane.xlu0 %4016
    %v4018 = vsel %vm238, %v3982, 0.0
    %4019 = vadd.xlane.f32.xlu0 %v4018
    %v4020 = vpop.xlane.xlu0 %4019
    %v4021 = vsel %vm238, %v3983, 0.0
    %4022 = vadd.xlane.f32.xlu0 %v4021
    %v4023 = vpop.xlane.xlu0 %4022
    %v4024 = vsel %vm238, %v3984, 0.0
    %4025 = vadd.xlane.f32.xlu0 %v4024
    %v4026 = vpop.xlane.xlu0 %4025
    %v4027 = vsel %vm238, %v3985, 0.0
    %4028 = vadd.xlane.f32.xlu0 %v4027
    %v4029 = vpop.xlane.xlu0 %4028
    %v4030 = vsel %vm238, %v3986, 0.0
    %4031 = vadd.xlane.f32.xlu0 %v4030
    %v4032 = vpop.xlane.xlu0 %4031
    %v4033 = vsel %vm238, %v3987, 0.0
    %4034 = vadd.xlane.f32.xlu0 %v4033
    %v4035 = vpop.xlane.xlu0 %4034
    %v4036 = vmul.f32 %v3990, %v287
    %v4037 = vmul.f32 %v3993, %v287
    %v4038 = vmul.f32 %v3996, %v287
    %v4039 = vmul.f32 %v3999, %v287
    %v4040 = vmul.f32 %v4002, %v287
    %v4041 = vmul.f32 %v4005, %v287
    %v4042 = vmul.f32 %v4008, %v287
    %v4043 = vmul.f32 %v4011, %v287
    %v4044 = vmul.f32 %v4014, %v287
    %v4045 = vmul.f32 %v4017, %v287
    %v4046 = vmul.f32 %v4020, %v287
    %v4047 = vmul.f32 %v4023, %v287
    %v4048 = vmul.f32 %v4026, %v287
    %v4049 = vmul.f32 %v4029, %v287
    %v4050 = vmul.f32 %v4032, %v287
    %v4051 = vmul.f32 %v4035, %v287
    %v4052 = vadd.f32 %v4036, 1e-05
    %v4053 = vadd.f32 %v4037, 1e-05
    %v4054 = vadd.f32 %v4038, 1e-05
    %v4055 = vadd.f32 %v4039, 1e-05
    %v4056 = vadd.f32 %v4040, 1e-05
    %v4057 = vadd.f32 %v4041, 1e-05
    %v4058 = vadd.f32 %v4042, 1e-05
    %v4059 = vadd.f32 %v4043, 1e-05
    %v4060 = vadd.f32 %v4044, 1e-05
    %v4061 = vadd.f32 %v4045, 1e-05
    %v4062 = vadd.f32 %v4046, 1e-05
    %v4063 = vadd.f32 %v4047, 1e-05
    %v4064 = vadd.f32 %v4048, 1e-05
    %v4065 = vadd.f32 %v4049, 1e-05
    %v4066 = vadd.f32 %v4050, 1e-05
    %v4067 = vadd.f32 %v4051, 1e-05
    %v4068 = vrsqrt.pop %v4052
    %v4069 = vrsqrt.pop %v4053
    %v4070 = vrsqrt.pop %v4054
    %v4071 = vrsqrt.pop %v4055
    %v4072 = vrsqrt.pop %v4056
    %v4073 = vrsqrt.pop %v4057
    %v4074 = vrsqrt.pop %v4058
    %v4075 = vrsqrt.pop %v4059
    %v4076 = vrsqrt.pop %v4060
    %v4077 = vrsqrt.pop %v4061
    %v4078 = vrsqrt.pop %v4062
    %v4079 = vrsqrt.pop %v4063
    %v4080 = vrsqrt.pop %v4064
    %v4081 = vrsqrt.pop %v4065
    %v4082 = vrsqrt.pop %v4066
    %v4083 = vrsqrt.pop %v4067
    %v4084 = vmul.f32 %v3956, %v4068
    %v4085 = vmul.f32 %v3957, %v4069
    %v4086 = vmul.f32 %v3958, %v4070
    %v4087 = vmul.f32 %v3959, %v4071
    %v4088 = vmul.f32 %v3960, %v4072
    %v4089 = vmul.f32 %v3961, %v4073
    %v4090 = vmul.f32 %v3962, %v4074
    %v4091 = vmul.f32 %v3963, %v4075
    %v4092 = vmul.f32 %v3964, %v4076
    %v4093 = vmul.f32 %v3965, %v4077
    %v4094 = vmul.f32 %v3966, %v4078
    %v4095 = vmul.f32 %v3967, %v4079
    %v4096 = vmul.f32 %v3968, %v4080
    %v4097 = vmul.f32 %v3969, %v4081
    %v4098 = vmul.f32 %v3970, %v4082
    %v4099 = vmul.f32 %v3971, %v4083
    %v4100 = vlaneseq
    %v4101 = vshrl.u32 %v4100, 7
    %v4102 = vsub.s32 2, %v4101
    %v4103 = vrot.slane %v34, %v4102
    %v4104 = vmul.f32 %v4084, %v4103
    %v4105 = vmul.f32 %v4085, %v4103
    %v4106 = vmul.f32 %v4086, %v4103
    %v4107 = vmul.f32 %v4087, %v4103
    %v4108 = vmul.f32 %v4088, %v4103
    %v4109 = vmul.f32 %v4089, %v4103
    %v4110 = vmul.f32 %v4090, %v4103
    %v4111 = vmul.f32 %v4091, %v4103
    %v4112 = vmul.f32 %v4092, %v4103
    %v4113 = vmul.f32 %v4093, %v4103
    %v4114 = vmul.f32 %v4094, %v4103
    %v4115 = vmul.f32 %v4095, %v4103
    %v4116 = vmul.f32 %v4096, %v4103
    %v4117 = vmul.f32 %v4097, %v4103
    %v4118 = vmul.f32 %v4098, %v4103
    %v4119 = vmul.f32 %v4099, %v4103
    %v4120 = vlaneseq
    %v4121 = vshrl.u32 %v4120, 7
    %v4122 = vsub.s32 3, %v4121
    %v4123 = vrot.slane %v34, %v4122
    %v4124 = vadd.f32 %v4104, %v4123
    %v4125 = vadd.f32 %v4105, %v4123
    %v4126 = vadd.f32 %v4106, %v4123
    %v4127 = vadd.f32 %v4107, %v4123
    %v4128 = vadd.f32 %v4108, %v4123
    %v4129 = vadd.f32 %v4109, %v4123
    %v4130 = vadd.f32 %v4110, %v4123
    %v4131 = vadd.f32 %v4111, %v4123
    %v4132 = vadd.f32 %v4112, %v4123
    %v4133 = vadd.f32 %v4113, %v4123
    %v4134 = vadd.f32 %v4114, %v4123
    %v4135 = vadd.f32 %v4115, %v4123
    %v4136 = vadd.f32 %v4116, %v4123
    %v4137 = vadd.f32 %v4117, %v4123
    %v4138 = vadd.f32 %v4118, %v4123
    %v4139 = vadd.f32 %v4119, %v4123
    %v4140 = vmax.f32 %v4124, 0.0
    %v4141 = vmax.f32 %v4125, 0.0
    %v4142 = vmax.f32 %v4126, 0.0
    %v4143 = vmax.f32 %v4127, 0.0
    %v4144 = vmax.f32 %v4128, 0.0
    %v4145 = vmax.f32 %v4129, 0.0
    %v4146 = vmax.f32 %v4130, 0.0
    %v4147 = vmax.f32 %v4131, 0.0
    %v4148 = vmax.f32 %v4132, 0.0
    %v4149 = vmax.f32 %v4133, 0.0
    %v4150 = vmax.f32 %v4134, 0.0
    %v4151 = vmax.f32 %v4135, 0.0
    %v4152 = vmax.f32 %v4136, 0.0
    %v4153 = vmax.f32 %v4137, 0.0
    %v4154 = vmax.f32 %v4138, 0.0
    %v4155 = vmax.f32 %v4139, 0.0
    %v4156 = vadd.f32 %v3142, %v4140
    %v4157 = vadd.f32 %v3143, %v4141
    %v4158 = vadd.f32 %v3144, %v4142
    %v4159 = vadd.f32 %v3145, %v4143
    %v4160 = vadd.f32 %v3146, %v4144
    %v4161 = vadd.f32 %v3147, %v4145
    %v4162 = vadd.f32 %v3148, %v4146
    %v4163 = vadd.f32 %v3149, %v4147
    %v4164 = vadd.f32 %v3150, %v4148
    %v4165 = vadd.f32 %v3151, %v4149
    %v4166 = vadd.f32 %v3152, %v4150
    %v4167 = vadd.f32 %v3153, %v4151
    %v4168 = vadd.f32 %v3154, %v4152
    %v4169 = vadd.f32 %v3155, %v4153
    %v4170 = vadd.f32 %v3156, %v4154
    %v4171 = vadd.f32 %v3157, %v4155
    %v4172 = vpack.c.bf16 %v4157, %v4156
    %v4173 = vpack.c.bf16 %v4159, %v4158
    %v4174 = vpack.c.bf16 %v4161, %v4160
    %v4175 = vpack.c.bf16 %v4163, %v4162
    %v4176 = vpack.c.bf16 %v4165, %v4164
    %v4177 = vpack.c.bf16 %v4167, %v4166
    %v4178 = vpack.c.bf16 %v4169, %v4168
    %v4179 = vpack.c.bf16 %v4171, %v4170
    %v4188 = vunpack.c.l.b16 %v4172
    %v4189 = vunpack.c.h.b16 %v4172
    %v4190 = vunpack.c.l.b16 %v4173
    %v4191 = vunpack.c.h.b16 %v4173
    %v4192 = vunpack.c.l.b16 %v4174
    %v4193 = vunpack.c.h.b16 %v4174
    %v4194 = vunpack.c.l.b16 %v4175
    %v4195 = vunpack.c.h.b16 %v4175
    %v4196 = vunpack.c.l.b16 %v4176
    %v4197 = vunpack.c.h.b16 %v4176
    %v4198 = vunpack.c.l.b16 %v4177
    %v4199 = vunpack.c.h.b16 %v4177
    %v4200 = vunpack.c.l.b16 %v4178
    %v4201 = vunpack.c.h.b16 %v4178
    %v4202 = vunpack.c.l.b16 %v4179
    %v4203 = vunpack.c.h.b16 %v4179
    %v4204 = vpack.c.b16 %v4188, %v4188
    %v4205 = vpack.c.b16 %v4189, %v4189
    %v4206 = vpack.c.b16 %v4190, %v4190
    %v4207 = vpack.c.b16 %v4191, %v4191
    %v4208 = vpack.c.b16 %v4192, %v4192
    %v4209 = vpack.c.b16 %v4193, %v4193
    %v4210 = vpack.c.b16 %v4194, %v4194
    %v4211 = vpack.c.b16 %v4195, %v4195
    %v4212 = vpack.c.b16 %v4196, %v4196
    %v4213 = vpack.c.b16 %v4197, %v4197
    %v4214 = vpack.c.b16 %v4198, %v4198
    %v4215 = vpack.c.b16 %v4199, %v4199
    %v4216 = vpack.c.b16 %v4200, %v4200
    %v4217 = vpack.c.b16 %v4201, %v4201
    %v4218 = vpack.c.b16 %v4202, %v4202
    %v4219 = vpack.c.b16 %v4203, %v4203
    %vm4236 = vcmask 257024
    %4237 = vst.msk [vmem:[%s8] sm:$0xf] %vm4236, %v4204
    %4238 = vst.msk [vmem:[%s8 + $0x4] sm:$0xf] %vm4236, %v4205
    %4239 = vst.msk [vmem:[%s8 + $0x8] sm:$0xf] %vm4236, %v4206
    %4240 = vst.msk [vmem:[%s8 + $0xc] sm:$0xf] %vm4236, %v4207
    %4241 = vst.msk [vmem:[%s8 + $0x10] sm:$0xf] %vm4236, %v4208
    %4242 = vst.msk [vmem:[%s8 + $0x14] sm:$0xf] %vm4236, %v4209
    %4243 = vst.msk [vmem:[%s8 + $0x18] sm:$0xf] %vm4236, %v4210
    %4244 = vst.msk [vmem:[%s8 + $0x1c] sm:$0xf] %vm4236, %v4211
    %4245 = vst.msk [vmem:[%s8 + $0x20] sm:$0xf] %vm4236, %v4212
    %4246 = vst.msk [vmem:[%s8 + $0x24] sm:$0xf] %vm4236, %v4213
    %4247 = vst.msk [vmem:[%s8 + $0x28] sm:$0xf] %vm4236, %v4214
    %4248 = vst.msk [vmem:[%s8 + $0x2c] sm:$0xf] %vm4236, %v4215
    %4249 = vst.msk [vmem:[%s8 + $0x30] sm:$0xf] %vm4236, %v4216
    %4250 = vst.msk [vmem:[%s8 + $0x34] sm:$0xf] %vm4236, %v4217
    %4251 = vst.msk [vmem:[%s8 + $0x38] sm:$0xf] %vm4236, %v4218
    %4252 = vst.msk [vmem:[%s8 + $0x3c] sm:$0xf] %vm4236, %v4219
    %v4253 = vld [vmem:[%s6] sm:$0xf]
    %v4254 = vld [vmem:[%s6 + $0x4] sm:$0xf]
    %v4255 = vld [vmem:[%s6 + $0x8] sm:$0xf]
    %v4256 = vld [vmem:[%s6 + $0xc] sm:$0xf]
    %v4257 = vlaneseq
    %v4258 = vshrl.u32 %v4257, 7
    %v4259 = vsub.s32 4, %v4258
    %v4260 = vrot.slane %v34, %v4259
    %v4265 = vunpack.c.l.b16 %v4253
    %v4266 = vunpack.c.l.b16 %v4254
    %v4267 = vunpack.c.l.b16 %v4255
    %v4268 = vunpack.c.l.b16 %v4256
    %v4269 = vpack.c.b16 %v4266, %v4265
    %v4270 = vpack.c.b16 %v4268, %v4267
    %v4274 = vsel %vm238, %v4172, 0
    %v4277 = vsel %vm238, %v4173, 0
    %v4280 = vsel %vm238, %v4174, 0
    %v4283 = vsel %vm238, %v4175, 0
    %v4286 = vsel %vm238, %v4176, 0
    %v4289 = vsel %vm238, %v4177, 0
    %v4292 = vsel %vm238, %v4178, 0
    %v4295 = vsel %vm238, %v4179, 0
    %4297 = vmatprep.subr.bf16.mxu0 0
    %4298 = vmatpush1.bf16.msra.mxu0 %v4269
    %4299 = vmatprep.subr.bf16.mxu0 0
    %4300 = vmatpush1.bf16.msra.mxu0 %v4270
    %4301 = vmatprep.subr.bf16.mxu0 0
    %4302 = vmatpush1.bf16.msra.mxu0 0
    %4303 = vmatprep.subr.bf16.mxu0 0
    %4304 = vmatpush1.bf16.msra.mxu0 0
    %4305 = vmatprep.subr.bf16.mxu0 0
    %4306 = vmatpush1.bf16.msra.mxu0 0
    %4307 = vmatprep.subr.bf16.mxu0 0
    %4308 = vmatpush1.bf16.msra.mxu0 0
    %4309 = vmatprep.subr.bf16.mxu0 0
    %4310 = vmatpush1.bf16.msra.mxu0 0
    %4311 = vmatprep.subr.bf16.mxu0 0
    %4312 = vmatpush1.bf16.msra.mxu0 0
    %4313 = vmatprep.subr.bf16.mxu0 0
    %4314 = vmatpush1.bf16.msra.mxu0 0
    %4315 = vmatprep.subr.bf16.mxu0 0
    %4316 = vmatpush1.bf16.msra.mxu0 0
    %4317 = vmatprep.subr.bf16.mxu0 0
    %4318 = vmatpush1.bf16.msra.mxu0 0
    %4319 = vmatprep.subr.bf16.mxu0 0
    %4320 = vmatpush1.bf16.msra.mxu0 0
    %4321 = vmatprep.subr.bf16.mxu0 0
    %4322 = vmatpush1.bf16.msra.mxu0 0
    %4323 = vmatprep.subr.bf16.mxu0 0
    %4324 = vmatpush1.bf16.msra.mxu0 0
    %4325 = vmatprep.subr.bf16.mxu0 0
    %4326 = vmatpush1.bf16.msra.mxu0 0
    %4327 = vmatprep.subr.bf16.mxu0 0
    %4328 = vmatpush1.bf16.msra.mxu0 0
    %4329 = vmatprep.mubr.bf16.mxu0 0
    %4330 = vmatmul.mubr.bf16.gmra.mrb[0].mxu0 %v4274
    %v4331 = vpop.f32.mrb[0].mxu0
    %v4332 = vadd.f32 %v4260, %v4331
    %v4333 = vpop.f32.mrb[0].mxu0
    %v4334 = vpop.f32.mrb[0].mxu0
    %v4335 = vadd.f32 %v4260, %v4334
    %v4336 = vpop.f32.mrb[0].mxu0
    %4337 = vmatprep.mubr.bf16.mxu0 0
    %4338 = vmatmul.mubr.bf16.gmra.mrb[0].mxu0 %v4277
    %v4339 = vpop.f32.mrb[0].mxu0
    %v4340 = vadd.f32 %v4260, %v4339
    %v4341 = vpop.f32.mrb[0].mxu0
    %v4342 = vpop.f32.mrb[0].mxu0
    %v4343 = vadd.f32 %v4260, %v4342
    %v4344 = vpop.f32.mrb[0].mxu0
    %4345 = vmatprep.mubr.bf16.mxu0 0
    %4346 = vmatmul.mubr.bf16.gmra.mrb[0].mxu0 %v4280
    %v4347 = vpop.f32.mrb[0].mxu0
    %v4348 = vadd.f32 %v4260, %v4347
    %v4349 = vpop.f32.mrb[0].mxu0
    %v4350 = vpop.f32.mrb[0].mxu0
    %v4351 = vadd.f32 %v4260, %v4350
    %v4352 = vpop.f32.mrb[0].mxu0
    %4353 = vmatprep.mubr.bf16.mxu0 0
    %4354 = vmatmul.mubr.bf16.gmra.mrb[0].mxu0 %v4283
    %v4355 = vpop.f32.mrb[0].mxu0
    %v4356 = vadd.f32 %v4260, %v4355
    %v4357 = vpop.f32.mrb[0].mxu0
    %v4358 = vpop.f32.mrb[0].mxu0
    %v4359 = vadd.f32 %v4260, %v4358
    %v4360 = vpop.f32.mrb[0].mxu0
    %4361 = vmatprep.mubr.bf16.mxu0 0
    %4362 = vmatmul.mubr.bf16.gmra.mrb[0].mxu0 %v4286
    %v4363 = vpop.f32.mrb[0].mxu0
    %v4364 = vadd.f32 %v4260, %v4363
    %v4365 = vpop.f32.mrb[0].mxu0
    %v4366 = vpop.f32.mrb[0].mxu0
    %v4367 = vadd.f32 %v4260, %v4366
    %v4368 = vpop.f32.mrb[0].mxu0
    %4369 = vmatprep.mubr.bf16.mxu0 0
    %4370 = vmatmul.mubr.bf16.gmra.mrb[0].mxu0 %v4289
    %v4371 = vpop.f32.mrb[0].mxu0
    %v4372 = vadd.f32 %v4260, %v4371
    %v4373 = vpop.f32.mrb[0].mxu0
    %v4374 = vpop.f32.mrb[0].mxu0
    %v4375 = vadd.f32 %v4260, %v4374
    %v4376 = vpop.f32.mrb[0].mxu0
    %4377 = vmatprep.mubr.bf16.mxu0 0
    %4378 = vmatmul.mubr.bf16.gmra.mrb[0].mxu0 %v4292
    %v4379 = vpop.f32.mrb[0].mxu0
    %v4380 = vadd.f32 %v4260, %v4379
    %v4381 = vpop.f32.mrb[0].mxu0
    %v4382 = vpop.f32.mrb[0].mxu0
    %v4383 = vadd.f32 %v4260, %v4382
    %v4384 = vpop.f32.mrb[0].mxu0
    %4385 = vmatprep.mubr.bf16.mxu0 0
    %4386 = vmatmul.mubr.bf16.gmra.mrb[0].mxu0 %v4295
    %v4387 = vpop.f32.mrb[0].mxu0
    %v4388 = vadd.f32 %v4260, %v4387
    %v4389 = vpop.f32.mrb[0].mxu0
    %v4390 = vpop.f32.mrb[0].mxu0
    %v4391 = vadd.f32 %v4260, %v4390
    %v4392 = vpop.f32.mrb[0].mxu0
    %4393 = vdwg.mxu0
    %v4394 = vld [vmem:[%s3] sm:$0xff]
    %v4395 = vld [vmem:[%s3 + $0x8] sm:$0xff]
    %v4396 = vld [vmem:[%s3 + $0x10] sm:$0xff]
    %v4397 = vld [vmem:[%s3 + $0x18] sm:$0xff]
    %v4398 = vld [vmem:[%s3 + $0x20] sm:$0xff]
    %v4399 = vld [vmem:[%s3 + $0x28] sm:$0xff]
    %v4400 = vld [vmem:[%s3 + $0x30] sm:$0xff]
    %v4401 = vld [vmem:[%s3 + $0x38] sm:$0xff]
    %v4402 = vld [vmem:[%s3 + $0x40] sm:$0xff]
    %v4403 = vld [vmem:[%s3 + $0x48] sm:$0xff]
    %v4404 = vld [vmem:[%s3 + $0x50] sm:$0xff]
    %v4405 = vld [vmem:[%s3 + $0x58] sm:$0xff]
    %v4406 = vld [vmem:[%s3 + $0x60] sm:$0xff]
    %v4407 = vld [vmem:[%s3 + $0x68] sm:$0xff]
    %v4408 = vld [vmem:[%s3 + $0x70] sm:$0xff]
    %v4409 = vld [vmem:[%s3 + $0x78] sm:$0xff]
    %vm4410 = vcmp.gt.f32.partialorder %v4394, 0.0
    %vm4411 = vcmp.gt.f32.partialorder %v4395, 0.0
    %vm4412 = vcmp.gt.f32.partialorder %v4396, 0.0
    %vm4413 = vcmp.gt.f32.partialorder %v4397, 0.0
    %vm4414 = vcmp.gt.f32.partialorder %v4398, 0.0
    %vm4415 = vcmp.gt.f32.partialorder %v4399, 0.0
    %vm4416 = vcmp.gt.f32.partialorder %v4400, 0.0
    %vm4417 = vcmp.gt.f32.partialorder %v4401, 0.0
    %vm4418 = vcmp.gt.f32.partialorder %v4402, 0.0
    %vm4419 = vcmp.gt.f32.partialorder %v4403, 0.0
    %vm4420 = vcmp.gt.f32.partialorder %v4404, 0.0
    %vm4421 = vcmp.gt.f32.partialorder %v4405, 0.0
    %vm4422 = vcmp.gt.f32.partialorder %v4406, 0.0
    %vm4423 = vcmp.gt.f32.partialorder %v4407, 0.0
    %vm4424 = vcmp.gt.f32.partialorder %v4408, 0.0
    %vm4425 = vcmp.gt.f32.partialorder %v4409, 0.0
    %4427 = vset.pattern.permute.xlu0 0
    %4428 = vperm.xlu0 %4427, %v4332
    %v4429 = vpop.permute.xlu0 %4428
    %4432 = vset.pattern.permute.xlu0 0
    %4433 = vperm.xlu0 %4432, %v4335
    %v4434 = vpop.permute.xlu0 %4433
    %4437 = vset.pattern.permute.xlu0 0
    %4438 = vperm.xlu0 %4437, %v4340
    %v4439 = vpop.permute.xlu0 %4438
    %4442 = vset.pattern.permute.xlu0 0
    %4443 = vperm.xlu0 %4442, %v4343
    %v4444 = vpop.permute.xlu0 %4443
    %4447 = vset.pattern.permute.xlu0 0
    %4448 = vperm.xlu0 %4447, %v4348
    %v4449 = vpop.permute.xlu0 %4448
    %4452 = vset.pattern.permute.xlu0 0
    %4453 = vperm.xlu0 %4452, %v4351
    %v4454 = vpop.permute.xlu0 %4453
    %4457 = vset.pattern.permute.xlu0 0
    %4458 = vperm.xlu0 %4457, %v4356
    %v4459 = vpop.permute.xlu0 %4458
    %4462 = vset.pattern.permute.xlu0 0
    %4463 = vperm.xlu0 %4462, %v4359
    %v4464 = vpop.permute.xlu0 %4463
    %4467 = vset.pattern.permute.xlu0 0
    %4468 = vperm.xlu0 %4467, %v4364
    %v4469 = vpop.permute.xlu0 %4468
    %4472 = vset.pattern.permute.xlu0 0
    %4473 = vperm.xlu0 %4472, %v4367
    %v4474 = vpop.permute.xlu0 %4473
    %4477 = vset.pattern.permute.xlu0 0
    %4478 = vperm.xlu0 %4477, %v4372
    %v4479 = vpop.permute.xlu0 %4478
    %4482 = vset.pattern.permute.xlu0 0
    %4483 = vperm.xlu0 %4482, %v4375
    %v4484 = vpop.permute.xlu0 %4483
    %4487 = vset.pattern.permute.xlu0 0
    %4488 = vperm.xlu0 %4487, %v4380
    %v4489 = vpop.permute.xlu0 %4488
    %4492 = vset.pattern.permute.xlu0 0
    %4493 = vperm.xlu0 %4492, %v4383
    %v4494 = vpop.permute.xlu0 %4493
    %4497 = vset.pattern.permute.xlu0 0
    %4498 = vperm.xlu0 %4497, %v4388
    %v4499 = vpop.permute.xlu0 %4498
    %4502 = vset.pattern.permute.xlu0 0
    %4503 = vperm.xlu0 %4502, %v4391
    %v4504 = vpop.permute.xlu0 %4503
    %v4506 = vsel %vm4410, %v4429, -1e+30
    %v4507 = vsel %vm4411, %v4434, -1e+30
    %v4508 = vsel %vm4412, %v4439, -1e+30
    %v4509 = vsel %vm4413, %v4444, -1e+30
    %v4510 = vsel %vm4414, %v4449, -1e+30
    %v4511 = vsel %vm4415, %v4454, -1e+30
    %v4512 = vsel %vm4416, %v4459, -1e+30
    %v4513 = vsel %vm4417, %v4464, -1e+30
    %v4514 = vsel %vm4418, %v4469, -1e+30
    %v4515 = vsel %vm4419, %v4474, -1e+30
    %v4516 = vsel %vm4420, %v4479, -1e+30
    %v4517 = vsel %vm4421, %v4484, -1e+30
    %v4518 = vsel %vm4422, %v4489, -1e+30
    %v4519 = vsel %vm4423, %v4494, -1e+30
    %v4520 = vsel %vm4424, %v4499, -1e+30
    %v4521 = vsel %vm4425, %v4504, -1e+30
    %4522 = vxpose.xlu0.b32.start [1/16] %v4506, 128
    %4523 = vxpose.xlu0.b32.cont [2/16] %v4507, 128
    %4524 = vxpose.xlu0.b32.cont [3/16] %v4508, 128
    %4525 = vxpose.xlu0.b32.cont [4/16] %v4509, 128
    %4526 = vxpose.xlu0.b32.cont [5/16] %v4510, 128
    %4527 = vxpose.xlu0.b32.cont [6/16] %v4511, 128
    %4528 = vxpose.xlu0.b32.cont [7/16] %v4512, 128
    %4529 = vxpose.xlu0.b32.cont [8/16] %v4513, 128
    %4530 = vxpose.xlu0.b32.cont [9/16] %v4514, 128
    %4531 = vxpose.xlu0.b32.cont [10/16] %v4515, 128
    %4532 = vxpose.xlu0.b32.cont [11/16] %v4516, 128
    %4533 = vxpose.xlu0.b32.cont [12/16] %v4517, 128
    %4534 = vxpose.xlu0.b32.cont [13/16] %v4518, 128
    %4535 = vxpose.xlu0.b32.cont [14/16] %v4519, 128
    %4536 = vxpose.xlu0.b32.cont [15/16] %v4520, 128
    %4537 = vxpose.xlu0.b32.end [16/16] %v4521, 128
    %v4538 = vpop.trf.xlu0
    %v4539 = vpop.trf.xlu0
    %v4540 = vpop.trf.xlu0
    %v4541 = vpop.trf.xlu0
    %v4542 = vpop.trf.xlu0
    %v4543 = vpop.trf.xlu0
    %v4544 = vpop.trf.xlu0
    %v4545 = vpop.trf.xlu0
    %v4546 = vpop.trf.xlu0
    %v4547 = vpop.trf.xlu0
    %v4548 = vpop.trf.xlu0
    %v4549 = vpop.trf.xlu0
    %v4550 = vpop.trf.xlu0
    %v4551 = vpop.trf.xlu0
    %v4552 = vpop.trf.xlu0
    %v4553 = vpop.trf.xlu0
    %4554 = vmax.xlane.f32.xlu0 %v4538
    %v4555 = vpop.xlane.xlu0 %4554
    %v4556 = vsub.f32 %v4538, %v4555
    %v4557 = vmul.f32 %v4556, 1.442695
    %v4558 = vpow.pop %v4557
    %4559 = vadd.xlane.f32.xlu0 %v4558
    %v4560 = vpop.xlane.xlu0 %4559
    %v4561 = vmax.f32 %v4560, 1e-20
    %v4562 = vrcp.pop %v4561
    %v4563 = vmul.f32 %v4558, %v4562
    %4564 = vmatprep.subr.mxu0 0.0
    %4565 = vmatpush1.msra.mxu0 %v4156
    %4566 = vmatprep.subr.mxu0 0.0
    %4567 = vmatpush1.msra.mxu0 %v4157
    %4568 = vmatprep.subr.mxu0 0.0
    %4569 = vmatpush1.msra.mxu0 %v4158
    %4570 = vmatprep.subr.mxu0 0.0
    %4571 = vmatpush1.msra.mxu0 %v4159
    %4572 = vmatprep.subr.mxu0 0.0
    %4573 = vmatpush1.msra.mxu0 %v4160
    %4574 = vmatprep.subr.mxu0 0.0
    %4575 = vmatpush1.msra.mxu0 %v4161
    %4576 = vmatprep.subr.mxu0 0.0
    %4577 = vmatpush1.msra.mxu0 %v4162
    %4578 = vmatprep.subr.mxu0 0.0
    %4579 = vmatpush1.msra.mxu0 %v4163
    %4580 = vmatprep.subr.mxu0 0.0
    %4581 = vmatpush1.msra.mxu0 %v4164
    %4582 = vmatprep.subr.mxu0 0.0
    %4583 = vmatpush1.msra.mxu0 %v4165
    %4584 = vmatprep.subr.mxu0 0.0
    %4585 = vmatpush1.msra.mxu0 %v4166
    %4586 = vmatprep.subr.mxu0 0.0
    %4587 = vmatpush1.msra.mxu0 %v4167
    %4588 = vmatprep.subr.mxu0 0.0
    %4589 = vmatpush1.msra.mxu0 %v4168
    %4590 = vmatprep.subr.mxu0 0.0
    %4591 = vmatpush1.msra.mxu0 %v4169
    %4592 = vmatprep.subr.mxu0 0.0
    %4593 = vmatpush1.msra.mxu0 %v4170
    %4594 = vmatprep.subr.mxu0 0.0
    %4595 = vmatpush1.msra.mxu0 %v4171
    %4596 = vmatprep.subr.mxu0 0.0
    %4597 = vmatpush1.msra.mxu0 0.0
    %4598 = vmatprep.subr.mxu0 0.0
    %4599 = vmatpush1.msra.mxu0 0.0
    %4600 = vmatprep.subr.mxu0 0.0
    %4601 = vmatpush1.msra.mxu0 0.0
    %4602 = vmatprep.subr.mxu0 0.0
    %4603 = vmatpush1.msra.mxu0 0.0
    %4604 = vmatprep.subr.mxu0 0.0
    %4605 = vmatpush1.msra.mxu0 0.0
    %4606 = vmatprep.subr.mxu0 0.0
    %4607 = vmatpush1.msra.mxu0 0.0
    %4608 = vmatprep.subr.mxu0 0.0
    %4609 = vmatpush1.msra.mxu0 0.0
    %4610 = vmatprep.subr.mxu0 0.0
    %4611 = vmatpush1.msra.mxu0 0.0
    %4612 = vmatprep.subr.mxu0 0.0
    %4613 = vmatpush1.msra.mxu0 0.0
    %4614 = vmatprep.subr.mxu0 0.0
    %4615 = vmatpush1.msra.mxu0 0.0
    %4616 = vmatprep.subr.mxu0 0.0
    %4617 = vmatpush1.msra.mxu0 0.0
    %4618 = vmatprep.subr.mxu0 0.0
    %4619 = vmatpush1.msra.mxu0 0.0
    %4620 = vmatprep.subr.mxu0 0.0
    %4621 = vmatpush1.msra.mxu0 0.0
    %4622 = vmatprep.subr.mxu0 0.0
    %4623 = vmatpush1.msra.mxu0 0.0
    %4624 = vmatprep.subr.mxu0 0.0
    %4625 = vmatpush1.msra.mxu0 0.0
    %4626 = vmatprep.subr.mxu0 0.0
    %4627 = vmatpush1.msra.mxu0 0.0
    %4628 = vmatprep.mubr.f32.mxu0 0.0
    %4629 = vmatmul.mubr.f32.gmra.mrb[0].mxu0 %v4563
    %v4630 = vpop.f32.mrb[0].mxu0
    %v4631 = vadd.f32 0.0, %v4630
    %v4632 = vpop.f32.mrb[0].mxu0
    %4633 = vdwg.mxu0
    %v4634 = vpack.c.bf16 %v4631, %v4631
    %4635 = vst.msk [vmem:[#allocation2] sm:$0xf] %vm4236, %v4634
    // Predicated region
    $region34: #{tpu_custom_call.1} parent=1 // pred_check
      _
    $region35: #{tpu_custom_call.1} parent=1 // pred_check_branch
      %4637 = sbr.rel (0) target = $region37
    $region36: #{tpu_custom_call.1} parent=1 // pred_region
      _
    $region37: #{tpu_custom_call.1} parent=1 // pred_fallthru
      _
    // Predicated region
    $region38: #{tpu_custom_call.1} parent=1 // pred_check
      _
    $region39: #{tpu_custom_call.1} parent=1 // pred_check_branch
      %4639 = sbr.rel (0) target = $region41
    $region40: #{tpu_custom_call.1} parent=1 // pred_region
      %s4641 = ssub.s32 64, 64
      %4642 = vsyncadd [#allocation3], %s4641
      %s4644 = sshll.u32 [#allocation2], 4
      %s4645 = int_to_ptr.vmem [resolvable:$true] %s4644
      %4647 = dma.vmem_to_hbm [thread:$0]  %s4645, 64, %s9, [#allocation3]
    $region41: #{tpu_custom_call.1} parent=1 // pred_fallthru
      _
    // Predicated region
    $region42: #{tpu_custom_call.1} parent=1 // pred_check
      _
    $region43: #{tpu_custom_call.1} parent=1 // pred_check_branch
      %4649 = sbr.rel (0) target = $region45
    $region44: #{tpu_custom_call.1} parent=1 // pred_region
      _
    $region45: #{tpu_custom_call.1} parent=1 // pred_fallthru
      _
    // Predicated region
    $region46: #{tpu_custom_call.1} parent=1 // pred_check
      _
    $region47: #{tpu_custom_call.1} parent=1 // pred_check_branch
      %4651 = sbr.rel (0) target = $region49
    $region48: #{tpu_custom_call.1} parent=1 // pred_region
      %4652 = dma.done [#allocation3], 64
    $region49: #{tpu_custom_call.1} parent=1 // pred_fallthru
      _
    %4653 = vsyncpa [#allocation3], 1

</llo_original>
